<compile_context>
chip_gen: v5e
topology: v5e:2x2
jax: 0.10.0
libtpu: 0.0.40
codegen_flags: <defaults>
</compile_context>

<pallas_src>
from functools import partial

import jax
import jax.numpy as jnp
from jax.experimental import pallas as pl
from jax.experimental.pallas import tpu as pltpu


# ----------------------------------------------------------------------------
# Kernel A: 1x1 expand conv (MXU), emit BN1 partial statistics only.
# z1 itself is NOT materialized in HBM.
# ----------------------------------------------------------------------------
def expand_stats_kernel(x_ref, w1_ref, s_ref, ss_ref):
    # x_ref : (1, H, W, Cin)   w1_ref: (Cin, Chp)   s_ref/ss_ref: (1, 1, Chp)
    _, H, W, Cin = x_ref.shape
    x = x_ref[0].astype(jnp.float32)
    z1 = jnp.dot(x.reshape(H * W, Cin), w1_ref[...],
                 preferred_element_type=jnp.float32)          # (H*W, Chp)
    s_ref[0, 0, :] = jnp.sum(z1, axis=0)
    ss_ref[0, 0, :] = jnp.sum(z1 * z1, axis=0)


# ----------------------------------------------------------------------------
# Kernel B: recompute 1x1 expand (MXU) + BN1-affine + ReLU6 + depthwise 3x3
# (stride 1, pad 1), write z2 with its REAL channel count, emit BN2 partials.
# W-halo via a small staging buffer whose borders are re-zeroed every step
# (no cross-step state -> safe under megacore 'parallel' sharding).
# H-halo via outer-dim slices/concats on values (essentially free).
# ----------------------------------------------------------------------------
def dw_kernel(x_ref, w1_ref, sc1_ref, sh1_ref, wdw_ref,
              z2_ref, s_ref, ss_ref, apad_ref):
    # x_ref  : (1, H, W, Cin)   w1_ref : (Cin, Chp)   sc1/sh1: (1, Chp)
    # wdw_ref: (3, 3, Chp)      z2_ref : (1, H, W, Chid)
    # s_ref/ss_ref: (1, 1, Chid)        apad_ref (scratch): (H, W+2, Chp)
    _, H, W, Cin = x_ref.shape
    Chp = w1_ref.shape[1]
    Chid = z2_ref.shape[3]
    KH, KW = wdw_ref.shape[0], wdw_ref.shape[1]

    # Recompute the expansion (z1 never round-trips through HBM).
    x = x_ref[0].astype(jnp.float32)
    z1 = jnp.dot(x.reshape(H * W, Cin), w1_ref[...],
                 preferred_element_type=jnp.float32).reshape(H, W, Chp)
    a = jnp.clip(z1 * sc1_ref[0, :] + sh1_ref[0, :], 0.0, 6.0)   # BN1 + ReLU6

    # Stage the activation with a 1-column zero border on each side.  The
    # border columns are rewritten every iteration -> no stale-VMEM hazard.
    zcol = jnp.zeros((H, 1, Chp), jnp.float32)
    apad_ref[:, pl.ds(0, 1), :] = zcol
    apad_ref[:, pl.ds(W + 1, 1), :] = zcol
    apad_ref[:, pl.ds(1, W), :] = a

    # Three column-shifted views (one sublane-offset load each).
    cols = tuple(apad_ref[:, pl.ds(kw, W), :] for kw in range(KW))

    zero_row = jnp.zeros((1, W, Chp), jnp.float32)
    acc = jnp.zeros((H, W, Chp), jnp.float32)
    for kh in range(KH):                      # static 3x3 tap unroll (VPU)
        for kw in range(KW):
            src = cols[kw]
            if kh == 0:      # output row i reads input row i-1 (zero at i=0)
                src = jnp.concatenate([zero_row, src[:H - 1]], axis=0)
            elif kh == 2:    # output row i reads input row i+1 (zero at i=H-1)
                src = jnp.concatenate([src[1:], zero_row], axis=0)
            acc = acc + src * wdw_ref[kh, kw, :]

    z2 = acc[:, :, :Chid]                     # padding stays on-chip only
    z2_ref[0] = z2
    s_ref[0, 0, :] = jnp.sum(z2, axis=(0, 1))
    ss_ref[0, 0, :] = jnp.sum(z2 * z2, axis=(0, 1))


# ----------------------------------------------------------------------------
# Kernel C: BN2-affine + ReLU6 + 1x1 project conv (MXU), write z3 with its
# real channel count, emit BN3 partial statistics.
# ----------------------------------------------------------------------------
def project_kernel(z2_ref, sc2_ref, sh2_ref, w3_ref, z3_ref, s_ref, ss_ref):
    # z2_ref: (1, H, W, Chid)  w3_ref: (Chid, Cout)  z3_ref: (1, H, W, Cout)
    _, H, W, Chid = z2_ref.shape
    Cout = w3_ref.shape[1]
    a = jnp.clip(z2_ref[0] * sc2_ref[0, :] + sh2_ref[0, :], 0.0, 6.0)  # BN2+ReLU6
    out = jnp.dot(a.reshape(H * W, Chid), w3_ref[...],
                  preferred_element_type=jnp.float32)          # (H*W, Cout)
    z3_ref[0] = out.reshape(H, W, Cout)
    s_ref[0, 0, :] = jnp.sum(out, axis=0)
    ss_ref[0, 0, :] = jnp.sum(out * out, axis=0)


# ----------------------------------------------------------------------------
# Host-side helpers.
# ----------------------------------------------------------------------------
def _round_up(x, m):
    return ((x + m - 1) // m) * m


def _pad_axis(v, target, axis, value=0.0):
    if v.shape[axis] == target:
        return v
    widths = [(0, 0)] * v.ndim
    widths[axis] = (0, target - v.shape[axis])
    return jnp.pad(v, widths, constant_values=value)


def _bn_fold(s_part, ss_part, gamma, beta, count, eps):
    """Combine per-image sum / sum-of-squares partials into folded BN scale/shift."""
    axes = tuple(range(s_part.ndim - 1))
    s = jnp.sum(s_part, axis=axes)
    ss = jnp.sum(ss_part, axis=axes)
    mean = s / count
    var = jnp.maximum(ss / count - mean * mean, 0.0)   # biased (training) variance
    scale = gamma * jax.lax.rsqrt(var + eps)
    shift = beta - mean * scale
    return scale[None, :], shift[None, :]              # (1, C) each


# ----------------------------------------------------------------------------
# Forward pass (NCHW in / NCHW out, PyTorch weight layouts).
# ----------------------------------------------------------------------------
@partial(jax.jit, static_argnames=("eps",))
def mobilenetv2_forward(x_nchw, w1, g1, b1, wdw, g2, b2, w3, g3, b3, eps=1e-5):
    N, Cin, H, W = x_nchw.shape
    Chid = w1.shape[0]          # inplanes * t
    Cout = w3.shape[0]          # outplanes
    Chp = _round_up(Chid, 128)  # lane-dense expanded channels (VMEM only)
    count = N * H * W

    # x is the smallest tensor in the pipeline; one XLA transpose to NHWC is
    # negligible next to the activation traffic saved downstream.
    x = jnp.transpose(x_nchw, (0, 2, 3, 1)).astype(jnp.float32)          # NHWC

    # PyTorch weight layouts -> kernel layouts (all tiny; padding weights only).
    w1_m = _pad_axis(jnp.transpose(w1[:, :, 0, 0], (1, 0)), Chp, 1)      # (Cin, Chp)
    wdw_m = _pad_axis(jnp.transpose(wdw[:, 0, :, :], (1, 2, 0)), Chp, 2)  # (3,3,Chp)
    w3_m = jnp.transpose(w3[:, :, 0, 0], (1, 0))                          # (Chid, Cout)
    g1p, b1p = _pad_axis(g1, Chp, 0, 1.0), _pad_axis(b1, Chp, 0)

    par1 = pltpu.CompilerParams(dimension_semantics=("parallel",))

    # -------- Stage A: BN1 partial stats of the (non-materialized) expansion --
    s1, ss1 = pl.pallas_call(
        expand_stats_kernel,
        out_shape=(
            jax.ShapeDtypeStruct((N, 1, Chp), jnp.float32),
            jax.ShapeDtypeStruct((N, 1, Chp), jnp.float32),
        ),
        grid=(N,),
        in_specs=[
            pl.BlockSpec((1, H, W, Cin), lambda n: (n, 0, 0, 0)),
            pl.BlockSpec((Cin, Chp), lambda n: (0, 0)),
        ],
        out_specs=(
            pl.BlockSpec((1, 1, Chp), lambda n: (n, 0, 0)),
            pl.BlockSpec((1, 1, Chp), lambda n: (n, 0, 0)),
        ),
        compiler_params=par1,
    )(x, w1_m)
    scale1, shift1 = _bn_fold(s1, ss1, g1p, b1p, count, eps)   # (1, Chp)

    # -------- Stage B: expand (recompute) + BN1 + ReLU6 + depthwise 3x3 -------
    z2, s2, ss2 = pl.pallas_call(
        dw_kernel,
        out_shape=(
            jax.ShapeDtypeStruct((N, H, W, Chid), jnp.float32),
            jax.ShapeDtypeStruct((N, 1, Chid), jnp.float32),
            jax.ShapeDtypeStruct((N, 1, Chid), jnp.float32),
        ),
        grid=(N,),
        in_specs=[
            pl.BlockSpec((1, H, W, Cin), lambda n: (n, 0, 0, 0)),
            pl.BlockSpec((Cin, Chp), lambda n: (0, 0)),
            pl.BlockSpec((1, Chp), lambda n: (0, 0)),
            pl.BlockSpec((1, Chp), lambda n: (0, 0)),
            pl.BlockSpec((3, 3, Chp), lambda n: (0, 0, 0)),
        ],
        out_specs=(
            pl.BlockSpec((1, H, W, Chid), lambda n: (n, 0, 0, 0)),
            pl.BlockSpec((1, 1, Chid), lambda n: (n, 0, 0)),
            pl.BlockSpec((1, 1, Chid), lambda n: (n, 0, 0)),
        ),
        scratch_shapes=[pltpu.VMEM((H, W + 2, Chp), jnp.float32)],
        compiler_params=par1,
    )(x, w1_m, scale1, shift1, wdw_m)
    scale2, shift2 = _bn_fold(s2, ss2, g2, b2, count, eps)     # (1, Chid)

    # -------- Stage C: BN2 + ReLU6 + 1x1 project (MXU) + BN3 partial stats ----
    z3, s3, ss3 = pl.pallas_call(
        project_kernel,
        out_shape=(
            jax.ShapeDtypeStruct((N, H, W, Cout), jnp.float32),
            jax.ShapeDtypeStruct((N, 1, Cout), jnp.float32),
            jax.ShapeDtypeStruct((N, 1, Cout), jnp.float32),
        ),
        grid=(N,),
        in_specs=[
            pl.BlockSpec((1, H, W, Chid), lambda n: (n, 0, 0, 0)),
            pl.BlockSpec((1, Chid), lambda n: (0, 0)),
            pl.BlockSpec((1, Chid), lambda n: (0, 0)),
            pl.BlockSpec((Chid, Cout), lambda n: (0, 0)),
        ],
        out_specs=(
            pl.BlockSpec((1, H, W, Cout), lambda n: (n, 0, 0, 0)),
            pl.BlockSpec((1, 1, Cout), lambda n: (n, 0, 0)),
            pl.BlockSpec((1, 1, Cout), lambda n: (n, 0, 0)),
        ),
        compiler_params=par1,
    )(z2, scale2, shift2, w3_m)
    scale3, shift3 = _bn_fold(s3, ss3, g3, b3, count, eps)     # (1, Cout)

    # -------- BN3 affine fused with the NCHW transpose (single XLA pass) ------
    out = z3 * scale3.reshape(1, 1, 1, -1) + shift3.reshape(1, 1, 1, -1)
    return jnp.transpose(out, (0, 3, 1, 2))                    # back to NCHW


# ----------------------------------------------------------------------------
# Pure-JAX reference (matches the PyTorch forward in training mode).
# ----------------------------------------------------------------------------
def reference_forward(x, w1, g1, b1, wdw, g2, b2, w3, g3, b3, eps=1e-5):
    hi = jax.lax.Precision.HIGHEST

    def bn(y, g, b):
        mean = jnp.mean(y, axis=(0, 2, 3), keepdims=True)
        var = jnp.mean((y - mean) ** 2, axis=(0, 2, 3), keepdims=True)
        return ((y - mean) / jnp.sqrt(var + eps)) * g[None, :, None, None] \
            + b[None, :, None, None]

    relu6 = lambda v: jnp.clip(v, 0.0, 6.0)
    Chid = w1.shape[0]
    y = jax.lax.conv_general_dilated(x, w1, (1, 1), ((0, 0), (0, 0)),
                                     dimension_numbers=("NCHW", "OIHW", "NCHW"),
                                     precision=hi)
    y = relu6(bn(y, g1, b1))
    y = jax.lax.conv_general_dilated(y, wdw, (1, 1), ((1, 1), (1, 1)),
                                     feature_group_count=Chid,
                                     dimension_numbers=("NCHW", "OIHW", "NCHW"),
                                     precision=hi)
    y = relu6(bn(y, g2, b2))
    y = jax.lax.conv_general_dilated(y, w3, (1, 1), ((0, 0), (0, 0)),
                                     dimension_numbers=("NCHW", "OIHW", "NCHW"),
                                     precision=hi)
    return bn(y, g3, b3)


if __name__ == "__main__":
    N, inplanes, outplanes, H, W, t = 2, 4, 8, 16, 16, 4
    Chid = inplanes * t

    key = jax.random.PRNGKey(0)
    ks = jax.random.split(key, 10)
    x = jax.random.normal(ks[0], (N, inplanes, H, W), dtype=jnp.float32)
    w1 = 0.1 * jax.random.normal(ks[1], (Chid, inplanes, 1, 1), dtype=jnp.float32)
    wdw = 0.1 * jax.random.normal(ks[2], (Chid, 1, 3, 3), dtype=jnp.float32)
    w3 = 0.1 * jax.random.normal(ks[3], (outplanes, Chid, 1, 1), dtype=jnp.float32)
    g1 = 1.0 + 0.1 * jax.random.normal(ks[4], (Chid,), dtype=jnp.float32)
    b1 = 0.1 * jax.random.normal(ks[5], (Chid,), dtype=jnp.float32)
    g2 = 1.0 + 0.1 * jax.random.normal(ks[6], (Chid,), dtype=jnp.float32)
    b2 = 0.1 * jax.random.normal(ks[7], (Chid,), dtype=jnp.float32)
    g3 = 1.0 + 0.1 * jax.random.normal(ks[8], (outplanes,), dtype=jnp.float32)
    b3 = 0.1 * jax.random.normal(ks[9], (outplanes,), dtype=jnp.float32)

    out = mobilenetv2_forward(x, w1, g1, b1, wdw, g2, b2, w3, g3, b3)
    out = jax.block_until_ready(out)

    ref = reference_forward(x, w1, g1, b1, wdw, g2, b2, w3, g3, b3)
    assert out.shape == (N, outplanes, H, W), out.shape
    max_err = float(jnp.max(jnp.abs(out - ref)))
    assert jnp.allclose(out, ref, rtol=1e-3, atol=1e-3), max_err

    print("KERNEL_OK")
</pallas_src>

<mosaic_0001>
module attributes {stable_mosaic.version = 11 : i64} {
  func.func @expand_stats_kernel(%arg0: i32, %arg1: memref<1x16x16x4xf32, #tpu.memory_space<vmem>>, %arg2: memref<4x128xf32, #tpu.memory_space<vmem>>, %arg3: memref<1x1x128xf32, #tpu.memory_space<vmem>>, %arg4: memref<1x1x128xf32, #tpu.memory_space<vmem>>) attributes {dimension_semantics = [#tpu.dimension_semantics<parallel>], iteration_bounds = array<i64: 2>, scalar_prefetch = 0 : i64, scratch_operands = 0 : i64, tpu.core_type = #tpu.core_type<tc>, window_params = [{transform_indices = @transform_0, window_bounds = array<i64: 1, 16, 16, 4>}, {pipeline_mode = #tpu.pipeline_mode<synchronous>, transform_indices = @transform_1, window_bounds = array<i64: 4, 128>}, {transform_indices = @transform_2, window_bounds = array<i64: 1, 1, 128>}, {transform_indices = @transform_3, window_bounds = array<i64: 1, 1, 128>}]} {
    %c0 = arith.constant 0 : index
    %c0_0 = arith.constant 0 : index
    %c0_1 = arith.constant 0 : index
    %c0_2 = arith.constant 0 : index
    %0 = vector.load %arg1[%c0, %c0_0, %c0_1, %c0_2] : memref<1x16x16x4xf32, #tpu.memory_space<vmem>>, vector<1x16x16x4xf32>
    %1 = vector.shape_cast %0 : vector<1x16x16x4xf32> to vector<16x16x4xf32>
    %2 = vector.shape_cast %1 : vector<16x16x4xf32> to vector<256x4xf32>
    %c0_3 = arith.constant 0 : index
    %c0_4 = arith.constant 0 : index
    %3 = vector.load %arg2[%c0_3, %c0_4] : memref<4x128xf32, #tpu.memory_space<vmem>>, vector<4x128xf32>
    %cst = arith.constant dense<0.000000e+00> : vector<256x128xf32>
    %4 = tpu.matmul %2, %3, %cst {dimension_numbers = #tpu.dot_dimension_numbers<[1], [0], [0], [1], [0, 0, 1, 1], [], []>} : vector<256x4xf32>, vector<4x128xf32>, vector<256x128xf32> -> vector<256x128xf32>
    %cst_5 = arith.constant dense<0.000000e+00> : vector<128xf32>
    %5 = vector.multi_reduction <add>, %4, %cst_5 [0] : vector<256x128xf32> to vector<128xf32>
    %c0_6 = arith.constant 0 : index
    %c0_7 = arith.constant 0 : index
    %c0_8 = arith.constant 0 : index
    %6 = vector.load %arg3[%c0_6, %c0_7, %c0_8] : memref<1x1x128xf32, #tpu.memory_space<vmem>>, vector<1x1x128xf32>
    %7 = vector.shape_cast %6 : vector<1x1x128xf32> to vector<128xf32>
    %8 = vector.shape_cast %5 : vector<128xf32> to vector<1x1x128xf32>
    tpu.vector_store %arg3[%c0_6, %c0_7, %c0_8], %8 {strides = array<i32>} : memref<1x1x128xf32, #tpu.memory_space<vmem>>, vector<1x1x128xf32>,
    %9 = arith.mulf %4, %4 : vector<256x128xf32>
    %cst_9 = arith.constant dense<0.000000e+00> : vector<128xf32>
    %10 = vector.multi_reduction <add>, %9, %cst_9 [0] : vector<256x128xf32> to vector<128xf32>
    %c0_10 = arith.constant 0 : index
    %c0_11 = arith.constant 0 : index
    %c0_12 = arith.constant 0 : index
    %11 = vector.load %arg4[%c0_10, %c0_11, %c0_12] : memref<1x1x128xf32, #tpu.memory_space<vmem>>, vector<1x1x128xf32>
    %12 = vector.shape_cast %11 : vector<1x1x128xf32> to vector<128xf32>
    %13 = vector.shape_cast %10 : vector<128xf32> to vector<1x1x128xf32>
    tpu.vector_store %arg4[%c0_10, %c0_11, %c0_12], %13 {strides = array<i32>} : memref<1x1x128xf32, #tpu.memory_space<vmem>>, vector<1x1x128xf32>,
    return
  }
  func.func @transform_0(%arg0: i32) -> (i32, i32, i32, i32) {
    %c0_i32 = arith.constant 0 : i32
    %c0_i32_0 = arith.constant 0 : i32
    %c0_i32_1 = arith.constant 0 : i32
    %c0_i32_2 = arith.constant 0 : i32
    return %arg0, %c0_i32, %c0_i32_0, %c0_i32_1 : i32, i32, i32, i32
  }
  func.func @transform_1(%arg0: i32) -> (i32, i32) {
    %c0_i32 = arith.constant 0 : i32
    %c0_i32_0 = arith.constant 0 : i32
    %c0_i32_1 = arith.constant 0 : i32
    return %c0_i32, %c0_i32_0 : i32, i32
  }
  func.func @transform_2(%arg0: i32) -> (i32, i32, i32) {
    %c0_i32 = arith.constant 0 : i32
    %c0_i32_0 = arith.constant 0 : i32
    %c0_i32_1 = arith.constant 0 : i32
    return %arg0, %c0_i32, %c0_i32_0 : i32, i32, i32
  }
  func.func @transform_3(%arg0: i32) -> (i32, i32, i32) {
    %c0_i32 = arith.constant 0 : i32
    %c0_i32_0 = arith.constant 0 : i32
    %c0_i32_1 = arith.constant 0 : i32
    return %arg0, %c0_i32, %c0_i32_0 : i32, i32, i32
  }
}

module attributes {stable_mosaic.version = 11 : i64} {
  func.func @dw_kernel(%arg0: i32, %arg1: memref<1x16x16x4xf32, #tpu.memory_space<vmem>>, %arg2: memref<4x128xf32, #tpu.memory_space<vmem>>, %arg3: memref<1x128xf32, #tpu.memory_space<vmem>>, %arg4: memref<1x128xf32, #tpu.memory_space<vmem>>, %arg5: memref<3x3x128xf32, #tpu.memory_space<vmem>>, %arg6: memref<1x16x16x16xf32, #tpu.memory_space<vmem>>, %arg7: memref<1x1x16xf32, #tpu.memory_space<vmem>>, %arg8: memref<1x1x16xf32, #tpu.memory_space<vmem>>, %arg9: memref<16x18x128xf32, #tpu.memory_space<vmem>>) attributes {dimension_semantics = [#tpu.dimension_semantics<parallel>], iteration_bounds = array<i64: 2>, scalar_prefetch = 0 : i64, scratch_operands = 1 : i64, tpu.core_type = #tpu.core_type<tc>, window_params = [{transform_indices = @transform_0, window_bounds = array<i64: 1, 16, 16, 4>}, {pipeline_mode = #tpu.pipeline_mode<synchronous>, transform_indices = @transform_1, window_bounds = array<i64: 4, 128>}, {pipeline_mode = #tpu.pipeline_mode<synchronous>, transform_indices = @transform_2, window_bounds = array<i64: 1, 128>}, {pipeline_mode = #tpu.pipeline_mode<synchronous>, transform_indices = @transform_3, window_bounds = array<i64: 1, 128>}, {pipeline_mode = #tpu.pipeline_mode<synchronous>, transform_indices = @transform_4, window_bounds = array<i64: 3, 3, 128>}, {transform_indices = @transform_5, window_bounds = array<i64: 1, 16, 16, 16>}, {transform_indices = @transform_6, window_bounds = array<i64: 1, 1, 16>}, {transform_indices = @transform_7, window_bounds = array<i64: 1, 1, 16>}]} {
    %c0 = arith.constant 0 : index
    %c0_0 = arith.constant 0 : index
    %c0_1 = arith.constant 0 : index
    %c0_2 = arith.constant 0 : index
    %0 = vector.load %arg1[%c0, %c0_0, %c0_1, %c0_2] : memref<1x16x16x4xf32, #tpu.memory_space<vmem>>, vector<1x16x16x4xf32>
    %1 = vector.shape_cast %0 : vector<1x16x16x4xf32> to vector<16x16x4xf32>
    %2 = vector.shape_cast %1 : vector<16x16x4xf32> to vector<256x4xf32>
    %c0_3 = arith.constant 0 : index
    %c0_4 = arith.constant 0 : index
    %3 = vector.load %arg2[%c0_3, %c0_4] : memref<4x128xf32, #tpu.memory_space<vmem>>, vector<4x128xf32>
    %cst = arith.constant dense<0.000000e+00> : vector<256x128xf32>
    %4 = tpu.matmul %2, %3, %cst {dimension_numbers = #tpu.dot_dimension_numbers<[1], [0], [0], [1], [0, 0, 1, 1], [], []>} : vector<256x4xf32>, vector<4x128xf32>, vector<256x128xf32> -> vector<256x128xf32>
    %5 = vector.shape_cast %4 : vector<256x128xf32> to vector<16x16x128xf32>
    %c0_5 = arith.constant 0 : index
    %c0_6 = arith.constant 0 : index
    %6 = vector.load %arg3[%c0_5, %c0_6] : memref<1x128xf32, #tpu.memory_space<vmem>>, vector<1x128xf32>
    %7 = vector.shape_cast %6 : vector<1x128xf32> to vector<128xf32>
    %8 = vector.shape_cast %7 : vector<128xf32> to vector<1x1x128xf32>
    %9 = vector.broadcast %8 : vector<1x1x128xf32> to vector<16x16x128xf32>
    %10 = arith.mulf %5, %9 : vector<16x16x128xf32>
    %c0_7 = arith.constant 0 : index
    %c0_8 = arith.constant 0 : index
    %11 = vector.load %arg4[%c0_7, %c0_8] : memref<1x128xf32, #tpu.memory_space<vmem>>, vector<1x128xf32>
    %12 = vector.shape_cast %11 : vector<1x128xf32> to vector<128xf32>
    %13 = vector.shape_cast %12 : vector<128xf32> to vector<1x1x128xf32>
    %14 = vector.broadcast %13 : vector<1x1x128xf32> to vector<16x16x128xf32>
    %15 = arith.addf %10, %14 : vector<16x16x128xf32>
    %cst_9 = arith.constant 0.000000e+00 : f32
    %cst_10 = arith.constant 6.000000e+00 : f32
    %16 = vector.broadcast %cst_9 : f32 to vector<16x16x128xf32>
    %17 = arith.maximumf %16, %15 : vector<16x16x128xf32>
    %18 = vector.broadcast %cst_10 : f32 to vector<16x16x128xf32>
    %19 = arith.minimumf %18, %17 : vector<16x16x128xf32>
    %cst_11 = arith.constant 0.000000e+00 : f32
    %20 = vector.broadcast %cst_11 : f32 to vector<16x1x128xf32>
    %c0_12 = arith.constant 0 : index
    %c0_13 = arith.constant 0 : index
    %c0_14 = arith.constant 0 : index
    %21 = vector.load %arg9[%c0_12, %c0_13, %c0_14] : memref<16x18x128xf32, #tpu.memory_space<vmem>>, vector<16x1x128xf32>
    tpu.vector_store %arg9[%c0_12, %c0_13, %c0_14], %20 {strides = array<i32>} : memref<16x18x128xf32, #tpu.memory_space<vmem>>, vector<16x1x128xf32>,
    %c0_15 = arith.constant 0 : index
    %c17 = arith.constant 17 : index
    %c0_16 = arith.constant 0 : index
    %22 = vector.load %arg9[%c0_15, %c17, %c0_16] : memref<16x18x128xf32, #tpu.memory_space<vmem>>, vector<16x1x128xf32>
    tpu.vector_store %arg9[%c0_15, %c17, %c0_16], %20 {strides = array<i32>} : memref<16x18x128xf32, #tpu.memory_space<vmem>>, vector<16x1x128xf32>,
    %c0_17 = arith.constant 0 : index
    %c1 = arith.constant 1 : index
    %c0_18 = arith.constant 0 : index
    %23 = vector.load %arg9[%c0_17, %c1, %c0_18] : memref<16x18x128xf32, #tpu.memory_space<vmem>>, vector<16x16x128xf32>
    tpu.vector_store %arg9[%c0_17, %c1, %c0_18], %19 {strides = array<i32>} : memref<16x18x128xf32, #tpu.memory_space<vmem>>, vector<16x16x128xf32>,
    %c0_19 = arith.constant 0 : index
    %c0_20 = arith.constant 0 : index
    %c0_21 = arith.constant 0 : index
    %24 = vector.load %arg9[%c0_19, %c0_20, %c0_21] : memref<16x18x128xf32, #tpu.memory_space<vmem>>, vector<16x16x128xf32>
    %c0_22 = arith.constant 0 : index
    %c1_23 = arith.constant 1 : index
    %c0_24 = arith.constant 0 : index
    %25 = vector.load %arg9[%c0_22, %c1_23, %c0_24] : memref<16x18x128xf32, #tpu.memory_space<vmem>>, vector<16x16x128xf32>
    %c0_25 = arith.constant 0 : index
    %c2 = arith.constant 2 : index
    %c0_26 = arith.constant 0 : index
    %26 = vector.load %arg9[%c0_25, %c2, %c0_26] : memref<16x18x128xf32, #tpu.memory_space<vmem>>, vector<16x16x128xf32>
    %cst_27 = arith.constant 0.000000e+00 : f32
    %27 = vector.broadcast %cst_27 : f32 to vector<1x16x128xf32>
    %cst_28 = arith.constant 0.000000e+00 : f32
    %28 = vector.broadcast %cst_28 : f32 to vector<16x16x128xf32>
    %29 = vector.extract_strided_slice %24 {offsets = [0, 0, 0], sizes = [15, 16, 128], strides = [1, 1, 1]} : vector<16x16x128xf32> to vector<15x16x128xf32>
    %30 = tpu.concatenate %27, %29 in 0 : vector<1x16x128xf32>, vector<15x16x128xf32> -> vector<16x16x128xf32>
    %c0_29 = arith.constant 0 : index
    %c0_30 = arith.constant 0 : index
    %c0_31 = arith.constant 0 : index
    %31 = vector.load %arg5[%c0_29, %c0_30, %c0_31] : memref<3x3x128xf32, #tpu.memory_space<vmem>>, vector<1x1x128xf32>
    %32 = vector.shape_cast %31 : vector<1x1x128xf32> to vector<128xf32>
    %33 = vector.shape_cast %32 : vector<128xf32> to vector<1x1x128xf32>
    %34 = vector.broadcast %33 : vector<1x1x128xf32> to vector<16x16x128xf32>
    %35 = arith.mulf %30, %34 : vector<16x16x128xf32>
    %36 = arith.addf %28, %35 : vector<16x16x128xf32>
    %37 = vector.extract_strided_slice %25 {offsets = [0, 0, 0], sizes = [15, 16, 128], strides = [1, 1, 1]} : vector<16x16x128xf32> to vector<15x16x128xf32>
    %38 = tpu.concatenate %27, %37 in 0 : vector<1x16x128xf32>, vector<15x16x128xf32> -> vector<16x16x128xf32>
    %c0_32 = arith.constant 0 : index
    %c1_33 = arith.constant 1 : index
    %c0_34 = arith.constant 0 : index
    %39 = vector.load %arg5[%c0_32, %c1_33, %c0_34] : memref<3x3x128xf32, #tpu.memory_space<vmem>>, vector<1x1x128xf32>
    %40 = vector.shape_cast %39 : vector<1x1x128xf32> to vector<128xf32>
    %41 = vector.shape_cast %40 : vector<128xf32> to vector<1x1x128xf32>
    %42 = vector.broadcast %41 : vector<1x1x128xf32> to vector<16x16x128xf32>
    %43 = arith.mulf %38, %42 : vector<16x16x128xf32>
    %44 = arith.addf %36, %43 : vector<16x16x128xf32>
    %45 = vector.extract_strided_slice %26 {offsets = [0, 0, 0], sizes = [15, 16, 128], strides = [1, 1, 1]} : vector<16x16x128xf32> to vector<15x16x128xf32>
    %46 = tpu.concatenate %27, %45 in 0 : vector<1x16x128xf32>, vector<15x16x128xf32> -> vector<16x16x128xf32>
    %c0_35 = arith.constant 0 : index
    %c2_36 = arith.constant 2 : index
    %c0_37 = arith.constant 0 : index
    %47 = vector.load %arg5[%c0_35, %c2_36, %c0_37] : memref<3x3x128xf32, #tpu.memory_space<vmem>>, vector<1x1x128xf32>
    %48 = vector.shape_cast %47 : vector<1x1x128xf32> to vector<128xf32>
    %49 = vector.shape_cast %48 : vector<128xf32> to vector<1x1x128xf32>
    %50 = vector.broadcast %49 : vector<1x1x128xf32> to vector<16x16x128xf32>
    %51 = arith.mulf %46, %50 : vector<16x16x128xf32>
    %52 = arith.addf %44, %51 : vector<16x16x128xf32>
    %c1_38 = arith.constant 1 : index
    %c0_39 = arith.constant 0 : index
    %c0_40 = arith.constant 0 : index
    %53 = vector.load %arg5[%c1_38, %c0_39, %c0_40] : memref<3x3x128xf32, #tpu.memory_space<vmem>>, vector<1x1x128xf32>
    %54 = vector.shape_cast %53 : vector<1x1x128xf32> to vector<128xf32>
    %55 = vector.shape_cast %54 : vector<128xf32> to vector<1x1x128xf32>
    %56 = vector.broadcast %55 : vector<1x1x128xf32> to vector<16x16x128xf32>
    %57 = arith.mulf %24, %56 : vector<16x16x128xf32>
    %58 = arith.addf %52, %57 : vector<16x16x128xf32>
    %c1_41 = arith.constant 1 : index
    %c1_42 = arith.constant 1 : index
    %c0_43 = arith.constant 0 : index
    %59 = vector.load %arg5[%c1_41, %c1_42, %c0_43] : memref<3x3x128xf32, #tpu.memory_space<vmem>>, vector<1x1x128xf32>
    %60 = vector.shape_cast %59 : vector<1x1x128xf32> to vector<128xf32>
    %61 = vector.shape_cast %60 : vector<128xf32> to vector<1x1x128xf32>
    %62 = vector.broadcast %61 : vector<1x1x128xf32> to vector<16x16x128xf32>
    %63 = arith.mulf %25, %62 : vector<16x16x128xf32>
    %64 = arith.addf %58, %63 : vector<16x16x128xf32>
    %c1_44 = arith.constant 1 : index
    %c2_45 = arith.constant 2 : index
    %c0_46 = arith.constant 0 : index
    %65 = vector.load %arg5[%c1_44, %c2_45, %c0_46] : memref<3x3x128xf32, #tpu.memory_space<vmem>>, vector<1x1x128xf32>
    %66 = vector.shape_cast %65 : vector<1x1x128xf32> to vector<128xf32>
    %67 = vector.shape_cast %66 : vector<128xf32> to vector<1x1x128xf32>
    %68 = vector.broadcast %67 : vector<1x1x128xf32> to vector<16x16x128xf32>
    %69 = arith.mulf %26, %68 : vector<16x16x128xf32>
    %70 = arith.addf %64, %69 : vector<16x16x128xf32>
    %71 = vector.extract_strided_slice %24 {offsets = [1, 0, 0], sizes = [15, 16, 128], strides = [1, 1, 1]} : vector<16x16x128xf32> to vector<15x16x128xf32>
    %72 = tpu.concatenate %71, %27 in 0 : vector<15x16x128xf32>, vector<1x16x128xf32> -> vector<16x16x128xf32>
    %c2_47 = arith.constant 2 : index
    %c0_48 = arith.constant 0 : index
    %c0_49 = arith.constant 0 : index
    %73 = vector.load %arg5[%c2_47, %c0_48, %c0_49] : memref<3x3x128xf32, #tpu.memory_space<vmem>>, vector<1x1x128xf32>
    %74 = vector.shape_cast %73 : vector<1x1x128xf32> to vector<128xf32>
    %75 = vector.shape_cast %74 : vector<128xf32> to vector<1x1x128xf32>
    %76 = vector.broadcast %75 : vector<1x1x128xf32> to vector<16x16x128xf32>
    %77 = arith.mulf %72, %76 : vector<16x16x128xf32>
    %78 = arith.addf %70, %77 : vector<16x16x128xf32>
    %79 = vector.extract_strided_slice %25 {offsets = [1, 0, 0], sizes = [15, 16, 128], strides = [1, 1, 1]} : vector<16x16x128xf32> to vector<15x16x128xf32>
    %80 = tpu.concatenate %79, %27 in 0 : vector<15x16x128xf32>, vector<1x16x128xf32> -> vector<16x16x128xf32>
    %c2_50 = arith.constant 2 : index
    %c1_51 = arith.constant 1 : index
    %c0_52 = arith.constant 0 : index
    %81 = vector.load %arg5[%c2_50, %c1_51, %c0_52] : memref<3x3x128xf32, #tpu.memory_space<vmem>>, vector<1x1x128xf32>
    %82 = vector.shape_cast %81 : vector<1x1x128xf32> to vector<128xf32>
    %83 = vector.shape_cast %82 : vector<128xf32> to vector<1x1x128xf32>
    %84 = vector.broadcast %83 : vector<1x1x128xf32> to vector<16x16x128xf32>
    %85 = arith.mulf %80, %84 : vector<16x16x128xf32>
    %86 = arith.addf %78, %85 : vector<16x16x128xf32>
    %87 = vector.extract_strided_slice %26 {offsets = [1, 0, 0], sizes = [15, 16, 128], strides = [1, 1, 1]} : vector<16x16x128xf32> to vector<15x16x128xf32>
    %88 = tpu.concatenate %87, %27 in 0 : vector<15x16x128xf32>, vector<1x16x128xf32> -> vector<16x16x128xf32>
    %c2_53 = arith.constant 2 : index
    %c2_54 = arith.constant 2 : index
    %c0_55 = arith.constant 0 : index
    %89 = vector.load %arg5[%c2_53, %c2_54, %c0_55] : memref<3x3x128xf32, #tpu.memory_space<vmem>>, vector<1x1x128xf32>
    %90 = vector.shape_cast %89 : vector<1x1x128xf32> to vector<128xf32>
    %91 = vector.shape_cast %90 : vector<128xf32> to vector<1x1x128xf32>
    %92 = vector.broadcast %91 : vector<1x1x128xf32> to vector<16x16x128xf32>
    %93 = arith.mulf %88, %92 : vector<16x16x128xf32>
    %94 = arith.addf %86, %93 : vector<16x16x128xf32>
    %95 = vector.extract_strided_slice %94 {offsets = [0, 0, 0], sizes = [16, 16, 16], strides = [1, 1, 1]} : vector<16x16x128xf32> to vector<16x16x16xf32>
    %c0_56 = arith.constant 0 : index
    %c0_57 = arith.constant 0 : index
    %c0_58 = arith.constant 0 : index
    %c0_59 = arith.constant 0 : index
    %96 = vector.load %arg6[%c0_56, %c0_57, %c0_58, %c0_59] : memref<1x16x16x16xf32, #tpu.memory_space<vmem>>, vector<1x16x16x16xf32>
    %97 = vector.shape_cast %96 : vector<1x16x16x16xf32> to vector<16x16x16xf32>
    %98 = vector.shape_cast %95 : vector<16x16x16xf32> to vector<1x16x16x16xf32>
    tpu.vector_store %arg6[%c0_56, %c0_57, %c0_58, %c0_59], %98 {strides = array<i32>} : memref<1x16x16x16xf32, #tpu.memory_space<vmem>>, vector<1x16x16x16xf32>,
    %cst_60 = arith.constant dense<0.000000e+00> : vector<16xf32>
    %99 = vector.multi_reduction <add>, %95, %cst_60 [0, 1] : vector<16x16x16xf32> to vector<16xf32>
    %c0_61 = arith.constant 0 : index
    %c0_62 = arith.constant 0 : index
    %c0_63 = arith.constant 0 : index
    %100 = vector.load %arg7[%c0_61, %c0_62, %c0_63] : memref<1x1x16xf32, #tpu.memory_space<vmem>>, vector<1x1x16xf32>
    %101 = vector.shape_cast %100 : vector<1x1x16xf32> to vector<16xf32>
    %102 = vector.shape_cast %99 : vector<16xf32> to vector<1x1x16xf32>
    tpu.vector_store %arg7[%c0_61, %c0_62, %c0_63], %102 {strides = array<i32>} : memref<1x1x16xf32, #tpu.memory_space<vmem>>, vector<1x1x16xf32>,
    %103 = arith.mulf %95, %95 : vector<16x16x16xf32>
    %cst_64 = arith.constant dense<0.000000e+00> : vector<16xf32>
    %104 = vector.multi_reduction <add>, %103, %cst_64 [0, 1] : vector<16x16x16xf32> to vector<16xf32>
    %c0_65 = arith.constant 0 : index
    %c0_66 = arith.constant 0 : index
    %c0_67 = arith.constant 0 : index
    %105 = vector.load %arg8[%c0_65, %c0_66, %c0_67] : memref<1x1x16xf32, #tpu.memory_space<vmem>>, vector<1x1x16xf32>
    %106 = vector.shape_cast %105 : vector<1x1x16xf32> to vector<16xf32>
    %107 = vector.shape_cast %104 : vector<16xf32> to vector<1x1x16xf32>
    tpu.vector_store %arg8[%c0_65, %c0_66, %c0_67], %107 {strides = array<i32>} : memref<1x1x16xf32, #tpu.memory_space<vmem>>, vector<1x1x16xf32>,
    return
  }
  func.func @transform_0(%arg0: i32) -> (i32, i32, i32, i32) {
    %c0_i32 = arith.constant 0 : i32
    %c0_i32_0 = arith.constant 0 : i32
    %c0_i32_1 = arith.constant 0 : i32
    %c0_i32_2 = arith.constant 0 : i32
    return %arg0, %c0_i32, %c0_i32_0, %c0_i32_1 : i32, i32, i32, i32
  }
  func.func @transform_1(%arg0: i32) -> (i32, i32) {
    %c0_i32 = arith.constant 0 : i32
    %c0_i32_0 = arith.constant 0 : i32
    %c0_i32_1 = arith.constant 0 : i32
    return %c0_i32, %c0_i32_0 : i32, i32
  }
  func.func @transform_2(%arg0: i32) -> (i32, i32) {
    %c0_i32 = arith.constant 0 : i32
    %c0_i32_0 = arith.constant 0 : i32
    %c0_i32_1 = arith.constant 0 : i32
    return %c0_i32, %c0_i32_0 : i32, i32
  }
  func.func @transform_3(%arg0: i32) -> (i32, i32) {
    %c0_i32 = arith.constant 0 : i32
    %c0_i32_0 = arith.constant 0 : i32
    %c0_i32_1 = arith.constant 0 : i32
    return %c0_i32, %c0_i32_0 : i32, i32
  }
  func.func @transform_4(%arg0: i32) -> (i32, i32, i32) {
    %c0_i32 = arith.constant 0 : i32
    %c0_i32_0 = arith.constant 0 : i32
    %c0_i32_1 = arith.constant 0 : i32
    %c0_i32_2 = arith.constant 0 : i32
    return %c0_i32, %c0_i32_0, %c0_i32_1 : i32, i32, i32
  }
  func.func @transform_5(%arg0: i32) -> (i32, i32, i32, i32) {
    %c0_i32 = arith.constant 0 : i32
    %c0_i32_0 = arith.constant 0 : i32
    %c0_i32_1 = arith.constant 0 : i32
    %c0_i32_2 = arith.constant 0 : i32
    return %arg0, %c0_i32, %c0_i32_0, %c0_i32_1 : i32, i32, i32, i32
  }
  func.func @transform_6(%arg0: i32) -> (i32, i32, i32) {
    %c0_i32 = arith.constant 0 : i32
    %c0_i32_0 = arith.constant 0 : i32
    %c0_i32_1 = arith.constant 0 : i32
    return %arg0, %c0_i32, %c0_i32_0 : i32, i32, i32
  }
  func.func @transform_7(%arg0: i32) -> (i32, i32, i32) {
    %c0_i32 = arith.constant 0 : i32
    %c0_i32_0 = arith.constant 0 : i32
    %c0_i32_1 = arith.constant 0 : i32
    return %arg0, %c0_i32, %c0_i32_0 : i32, i32, i32
  }
}

module attributes {stable_mosaic.version = 11 : i64} {
  func.func @project_kernel(%arg0: i32, %arg1: memref<1x16x16x16xf32, #tpu.memory_space<vmem>>, %arg2: memref<1x16xf32, #tpu.memory_space<vmem>>, %arg3: memref<1x16xf32, #tpu.memory_space<vmem>>, %arg4: memref<16x8xf32, #tpu.memory_space<vmem>>, %arg5: memref<1x16x16x8xf32, #tpu.memory_space<vmem>>, %arg6: memref<1x1x8xf32, #tpu.memory_space<vmem>>, %arg7: memref<1x1x8xf32, #tpu.memory_space<vmem>>) attributes {dimension_semantics = [#tpu.dimension_semantics<parallel>], iteration_bounds = array<i64: 2>, scalar_prefetch = 0 : i64, scratch_operands = 0 : i64, tpu.core_type = #tpu.core_type<tc>, window_params = [{transform_indices = @transform_0, window_bounds = array<i64: 1, 16, 16, 16>}, {pipeline_mode = #tpu.pipeline_mode<synchronous>, transform_indices = @transform_1, window_bounds = array<i64: 1, 16>}, {pipeline_mode = #tpu.pipeline_mode<synchronous>, transform_indices = @transform_2, window_bounds = array<i64: 1, 16>}, {pipeline_mode = #tpu.pipeline_mode<synchronous>, transform_indices = @transform_3, window_bounds = array<i64: 16, 8>}, {transform_indices = @transform_4, window_bounds = array<i64: 1, 16, 16, 8>}, {transform_indices = @transform_5, window_bounds = array<i64: 1, 1, 8>}, {transform_indices = @transform_6, window_bounds = array<i64: 1, 1, 8>}]} {
    %c0 = arith.constant 0 : index
    %c0_0 = arith.constant 0 : index
    %c0_1 = arith.constant 0 : index
    %c0_2 = arith.constant 0 : index
    %0 = vector.load %arg1[%c0, %c0_0, %c0_1, %c0_2] : memref<1x16x16x16xf32, #tpu.memory_space<vmem>>, vector<1x16x16x16xf32>
    %1 = vector.shape_cast %0 : vector<1x16x16x16xf32> to vector<16x16x16xf32>
    %c0_3 = arith.constant 0 : index
    %c0_4 = arith.constant 0 : index
    %2 = vector.load %arg2[%c0_3, %c0_4] : memref<1x16xf32, #tpu.memory_space<vmem>>, vector<1x16xf32>
    %3 = vector.shape_cast %2 : vector<1x16xf32> to vector<16xf32>
    %4 = vector.shape_cast %3 : vector<16xf32> to vector<1x1x16xf32>
    %5 = vector.broadcast %4 : vector<1x1x16xf32> to vector<16x16x16xf32>
    %6 = arith.mulf %1, %5 : vector<16x16x16xf32>
    %c0_5 = arith.constant 0 : index
    %c0_6 = arith.constant 0 : index
    %7 = vector.load %arg3[%c0_5, %c0_6] : memref<1x16xf32, #tpu.memory_space<vmem>>, vector<1x16xf32>
    %8 = vector.shape_cast %7 : vector<1x16xf32> to vector<16xf32>
    %9 = vector.shape_cast %8 : vector<16xf32> to vector<1x1x16xf32>
    %10 = vector.broadcast %9 : vector<1x1x16xf32> to vector<16x16x16xf32>
    %11 = arith.addf %6, %10 : vector<16x16x16xf32>
    %cst = arith.constant 0.000000e+00 : f32
    %cst_7 = arith.constant 6.000000e+00 : f32
    %12 = vector.broadcast %cst : f32 to vector<16x16x16xf32>
    %13 = arith.maximumf %12, %11 : vector<16x16x16xf32>
    %14 = vector.broadcast %cst_7 : f32 to vector<16x16x16xf32>
    %15 = arith.minimumf %14, %13 : vector<16x16x16xf32>
    %16 = vector.shape_cast %15 : vector<16x16x16xf32> to vector<256x16xf32>
    %c0_8 = arith.constant 0 : index
    %c0_9 = arith.constant 0 : index
    %17 = vector.load %arg4[%c0_8, %c0_9] : memref<16x8xf32, #tpu.memory_space<vmem>>, vector<16x8xf32>
    %cst_10 = arith.constant dense<0.000000e+00> : vector<256x8xf32>
    %18 = tpu.matmul %16, %17, %cst_10 {dimension_numbers = #tpu.dot_dimension_numbers<[1], [0], [0], [1], [0, 0, 1, 1], [], []>} : vector<256x16xf32>, vector<16x8xf32>, vector<256x8xf32> -> vector<256x8xf32>
    %19 = vector.shape_cast %18 : vector<256x8xf32> to vector<16x16x8xf32>
    %c0_11 = arith.constant 0 : index
    %c0_12 = arith.constant 0 : index
    %c0_13 = arith.constant 0 : index
    %c0_14 = arith.constant 0 : index
    %20 = vector.load %arg5[%c0_11, %c0_12, %c0_13, %c0_14] : memref<1x16x16x8xf32, #tpu.memory_space<vmem>>, vector<1x16x16x8xf32>
    %21 = vector.shape_cast %20 : vector<1x16x16x8xf32> to vector<16x16x8xf32>
    %22 = vector.shape_cast %19 : vector<16x16x8xf32> to vector<1x16x16x8xf32>
    tpu.vector_store %arg5[%c0_11, %c0_12, %c0_13, %c0_14], %22 {strides = array<i32>} : memref<1x16x16x8xf32, #tpu.memory_space<vmem>>, vector<1x16x16x8xf32>,
    %cst_15 = arith.constant dense<0.000000e+00> : vector<8xf32>
    %23 = vector.multi_reduction <add>, %18, %cst_15 [0] : vector<256x8xf32> to vector<8xf32>
    %c0_16 = arith.constant 0 : index
    %c0_17 = arith.constant 0 : index
    %c0_18 = arith.constant 0 : index
    %24 = vector.load %arg6[%c0_16, %c0_17, %c0_18] : memref<1x1x8xf32, #tpu.memory_space<vmem>>, vector<1x1x8xf32>
    %25 = vector.shape_cast %24 : vector<1x1x8xf32> to vector<8xf32>
    %26 = vector.shape_cast %23 : vector<8xf32> to vector<1x1x8xf32>
    tpu.vector_store %arg6[%c0_16, %c0_17, %c0_18], %26 {strides = array<i32>} : memref<1x1x8xf32, #tpu.memory_space<vmem>>, vector<1x1x8xf32>,
    %27 = arith.mulf %18, %18 : vector<256x8xf32>
    %cst_19 = arith.constant dense<0.000000e+00> : vector<8xf32>
    %28 = vector.multi_reduction <add>, %27, %cst_19 [0] : vector<256x8xf32> to vector<8xf32>
    %c0_20 = arith.constant 0 : index
    %c0_21 = arith.constant 0 : index
    %c0_22 = arith.constant 0 : index
    %29 = vector.load %arg7[%c0_20, %c0_21, %c0_22] : memref<1x1x8xf32, #tpu.memory_space<vmem>>, vector<1x1x8xf32>
    %30 = vector.shape_cast %29 : vector<1x1x8xf32> to vector<8xf32>
    %31 = vector.shape_cast %28 : vector<8xf32> to vector<1x1x8xf32>
    tpu.vector_store %arg7[%c0_20, %c0_21, %c0_22], %31 {strides = array<i32>} : memref<1x1x8xf32, #tpu.memory_space<vmem>>, vector<1x1x8xf32>,
    return
  }
  func.func @transform_0(%arg0: i32) -> (i32, i32, i32, i32) {
    %c0_i32 = arith.constant 0 : i32
    %c0_i32_0 = arith.constant 0 : i32
    %c0_i32_1 = arith.constant 0 : i32
    %c0_i32_2 = arith.constant 0 : i32
    return %arg0, %c0_i32, %c0_i32_0, %c0_i32_1 : i32, i32, i32, i32
  }
  func.func @transform_1(%arg0: i32) -> (i32, i32) {
    %c0_i32 = arith.constant 0 : i32
    %c0_i32_0 = arith.constant 0 : i32
    %c0_i32_1 = arith.constant 0 : i32
    return %c0_i32, %c0_i32_0 : i32, i32
  }
  func.func @transform_2(%arg0: i32) -> (i32, i32) {
    %c0_i32 = arith.constant 0 : i32
    %c0_i32_0 = arith.constant 0 : i32
    %c0_i32_1 = arith.constant 0 : i32
    return %c0_i32, %c0_i32_0 : i32, i32
  }
  func.func @transform_3(%arg0: i32) -> (i32, i32) {
    %c0_i32 = arith.constant 0 : i32
    %c0_i32_0 = arith.constant 0 : i32
    %c0_i32_1 = arith.constant 0 : i32
    return %c0_i32, %c0_i32_0 : i32, i32
  }
  func.func @transform_4(%arg0: i32) -> (i32, i32, i32, i32) {
    %c0_i32 = arith.constant 0 : i32
    %c0_i32_0 = arith.constant 0 : i32
    %c0_i32_1 = arith.constant 0 : i32
    %c0_i32_2 = arith.constant 0 : i32
    return %arg0, %c0_i32, %c0_i32_0, %c0_i32_1 : i32, i32, i32, i32
  }
  func.func @transform_5(%arg0: i32) -> (i32, i32, i32) {
    %c0_i32 = arith.constant 0 : i32
    %c0_i32_0 = arith.constant 0 : i32
    %c0_i32_1 = arith.constant 0 : i32
    return %arg0, %c0_i32, %c0_i32_0 : i32, i32, i32
  }
  func.func @transform_6(%arg0: i32) -> (i32, i32, i32) {
    %c0_i32 = arith.constant 0 : i32
    %c0_i32_0 = arith.constant 0 : i32
    %c0_i32_1 = arith.constant 0 : i32
    return %arg0, %c0_i32, %c0_i32_0 : i32, i32, i32
  }
}

</mosaic_0001>

<llo_original>
// kernel: mobilenetv2_forward.3
$region0: #{mobilenetv2_forward.3}
  #allocation0 [shape = 'u32[]', space=smem, size = 0x4, offset = 0x4, fixed_abs, tag = 'smem constant byte address 0x4 - core index']
  #allocation1 [shape = 'u32[72,128]{1,0:T(1,128)}', space=vmem, size = 0x9000, scoped, tag = 'internal scratch']
  %s0 = inlined_call_operand.vmem [shape: f32[2,16,16,4], index: 0, kind: input, shape index: {}]
  %s1 = inlined_call_operand.vmem [shape: f32[4,128], index: 1, kind: input, shape index: {}]
  %s2 = inlined_call_operand.vmem [shape: f32[2,1,128], index: 2, kind: output, shape index: {0}]
  %s3 = inlined_call_operand.vmem [shape: f32[2,1,128], index: 3, kind: output, shape index: {1}]
  %4 = xla_tuple %s2, %s3
  %s5 = sld [smem:[#allocation0]]
  $region49: #{mobilenetv2_forward.3} parent=0
    _
  %s7 = ssub.s32 1, %s5
  %s8 = scalar_select 0, %s7, %s5
  loop: start=0, step=1, limit=4
  $region2: #{mobilenetv2_forward.3} parent=0 // loop_pre_header
    _
  $region3: #{mobilenetv2_forward.3} parent=0 // loop_header
    %s10 = sphi 0, %s14
    %p11 = scmp.ge.s32.totalorder %s10, 4
    %s20 = sphi 0, %s22
    %s23 = sphi 0, %s20
    %s24 = sphi 0, %s23
    %s40 = sphi 0, %s24
    %s44 = sphi 0, %s44
    %s46 = sphi 0, %s44
    %s47 = sphi 0, %s46
    %s61 = sphi 0, %s47
    %s67 = sphi 0, %s69
    %s70 = sphi 0, %s67
    %s71 = sphi 0, %s70
    %s87 = sphi 0, %s71
    %s93 = sphi 0, %s95
    %s96 = sphi 0, %s93
    %s97 = sphi 0, %s96
    %s113 = sphi 0, %s97
  $region4: #{mobilenetv2_forward.3} parent=0 // loop_header_branch
    %13 = sbr.rel (%p11) target = $region8
  $region5: #{mobilenetv2_forward.3} parent=0 // loop_body
    %s15 = ssub.s32 %s10, 1
    %s16 = ssub.s32 %s10, 2
    %s17 = sadd.s32 %s10, 1
    %s18 = ssub.s32 %s10, %s17
    %p19 = scmp.eq.s32.totalorder %s18, 0
    %s21 = sadd.s32 %s20, 1
    %s22 = scalar_select %p19, %s20, %s21
    %p25 = pneg %p19
    %p26 = scmp.eq.s32.totalorder %s10, 1
    %p27 = por %p25, %p26
    %p28 = scmp.ne.s32.totalorder %s20, %s23
    %p29 = scmp.eq.s32.totalorder %s10, 0
    %p30 = por %p28, %p29
    %p31 = scmp.ne.s32.totalorder %s20, %s23
    %p32 = scmp.eq.s32.totalorder %s15, 1
    %p33 = por %p31, %p32
    %p34 = scmp.ne.s32.totalorder %s23, %s24
    %p35 = scmp.eq.s32.totalorder %s15, 0
    %p36 = por %p34, %p35
    %p37 = scmp.ne.s32.totalorder %s23, %s24
    %p38 = scmp.eq.s32.totalorder %s16, 1
    %p39 = por %p37, %p38
    %p41 = scmp.ne.s32.totalorder %s24, %s40
    %p42 = scmp.eq.s32.totalorder %s16, 0
    %p43 = por %p41, %p42
    %s45 = sadd.s32 %s44, 1
    %p48 = scmp.eq.s32.totalorder %s10, 1
    %p49 = scmp.ne.s32.totalorder %s44, %s46
    %p50 = scmp.eq.s32.totalorder %s10, 0
    %p51 = por %p49, %p50
    %p52 = scmp.ne.s32.totalorder %s44, %s46
    %p53 = scmp.eq.s32.totalorder %s15, 1
    %p54 = por %p52, %p53
    %p55 = scmp.ne.s32.totalorder %s46, %s47
    %p56 = scmp.eq.s32.totalorder %s15, 0
    %p57 = por %p55, %p56
    %p58 = scmp.ne.s32.totalorder %s46, %s47
    %p59 = scmp.eq.s32.totalorder %s16, 1
    %p60 = por %p58, %p59
    %p62 = scmp.ne.s32.totalorder %s47, %s61
    %p63 = scmp.eq.s32.totalorder %s16, 0
    %p64 = por %p62, %p63
    %s65 = ssub.s32 %s10, %s17
    %p66 = scmp.eq.s32.totalorder %s65, 0
    %s68 = sadd.s32 %s67, 1
    %s69 = scalar_select %p66, %s67, %s68
    %p72 = pneg %p66
    %p73 = scmp.eq.s32.totalorder %s10, 1
    %p74 = por %p72, %p73
    %p75 = scmp.ne.s32.totalorder %s67, %s70
    %p76 = scmp.eq.s32.totalorder %s10, 0
    %p77 = por %p75, %p76
    %p78 = scmp.ne.s32.totalorder %s67, %s70
    %p79 = scmp.eq.s32.totalorder %s15, 1
    %p80 = por %p78, %p79
    %p81 = scmp.ne.s32.totalorder %s70, %s71
    %p82 = scmp.eq.s32.totalorder %s15, 0
    %p83 = por %p81, %p82
    %p84 = scmp.ne.s32.totalorder %s70, %s71
    %p85 = scmp.eq.s32.totalorder %s16, 1
    %p86 = por %p84, %p85
    %p88 = scmp.ne.s32.totalorder %s71, %s87
    %p89 = scmp.eq.s32.totalorder %s16, 0
    %p90 = por %p88, %p89
    %s91 = ssub.s32 %s10, %s17
    %p92 = scmp.eq.s32.totalorder %s91, 0
    %s94 = sadd.s32 %s93, 1
    %s95 = scalar_select %p92, %s93, %s94
    %p98 = pneg %p92
    %p99 = scmp.eq.s32.totalorder %s10, 1
    %p100 = por %p98, %p99
    %p101 = scmp.ne.s32.totalorder %s93, %s96
    %p102 = scmp.eq.s32.totalorder %s10, 0
    %p103 = por %p101, %p102
    %p104 = scmp.ne.s32.totalorder %s93, %s96
    %p105 = scmp.eq.s32.totalorder %s15, 1
    %p106 = por %p104, %p105
    %p107 = scmp.ne.s32.totalorder %s96, %s97
    %p108 = scmp.eq.s32.totalorder %s15, 0
    %p109 = por %p107, %p108
    %p110 = scmp.ne.s32.totalorder %s96, %s97
    %p111 = scmp.eq.s32.totalorder %s16, 1
    %p112 = por %p110, %p111
    %p114 = scmp.ne.s32.totalorder %s97, %s113
    %p115 = scmp.eq.s32.totalorder %s16, 0
    %p116 = por %p114, %p115
    %p117 = scmp.le.s32.totalorder 1, %s10
    %p118 = scmp.lt.s32.totalorder %s10, 3
    %p119 = pnand %p117, %p118
    %p120 = pneg %p119
    // Predicated region
    $region9: #{mobilenetv2_forward.3} parent=5 // pred_check
      _
    $region10: #{mobilenetv2_forward.3} parent=5 // pred_check_branch
      %122 = sbr.rel (%p119) target = $region12
    $region11: #{mobilenetv2_forward.3} parent=5 // pred_region
      %s123 = ssub.s32 %s10, 1
      // Predicated region
      $region13: #{mobilenetv2_forward.3} parent=11 // pred_check
        %p124 = pneg %p57
      $region14: #{mobilenetv2_forward.3} parent=11 // pred_check_branch
        %126 = sbr.rel (%p124) target = $region16
      $region15: #{mobilenetv2_forward.3} parent=11 // pred_region
        _
      $region16: #{mobilenetv2_forward.3} parent=11 // pred_fallthru
        _
    $region12: #{mobilenetv2_forward.3} parent=5 // pred_fallthru
      _
    %p127 = scmp.lt.s32.totalorder %s10, 2
    // Predicated region
    $region17: #{mobilenetv2_forward.3} parent=5 // pred_check
      %p128 = pneg %p127
    $region18: #{mobilenetv2_forward.3} parent=5 // pred_check_branch
      %130 = sbr.rel (%p128) target = $region20
    $region19: #{mobilenetv2_forward.3} parent=5 // pred_region
      // Predicated region
      $region21: #{mobilenetv2_forward.3} parent=19 // pred_check
        %p131 = pneg %p30
      $region22: #{mobilenetv2_forward.3} parent=19 // pred_check_branch
        %133 = sbr.rel (%p131) target = $region24
      $region23: #{mobilenetv2_forward.3} parent=19 // pred_region
        %p134 = scmp.lt.s32.totalorder %s10, 1
        %s135 = scalar_select %p134, %s10, 1
        %s136 = smul.addr %s135, 32
        %s137 = smul.addr %s136, 8
        %s138 = scalar_lea.vmem %s0, %s137
      $region24: #{mobilenetv2_forward.3} parent=19 // pred_fallthru
        _
    $region20: #{mobilenetv2_forward.3} parent=5 // pred_fallthru
      _
    %p139 = scmp.le.s32.totalorder 1, %s10
    %p140 = scmp.lt.s32.totalorder %s10, 3
    %p141 = pnand %p139, %p140
    %p142 = pneg %p141
    // Predicated region
    $region25: #{mobilenetv2_forward.3} parent=5 // pred_check
      _
    $region26: #{mobilenetv2_forward.3} parent=5 // pred_check_branch
      %144 = sbr.rel (%p141) target = $region28
    $region27: #{mobilenetv2_forward.3} parent=5 // pred_region
      %s145 = ssub.s32 %s10, 1
      %p146 = scmp.lt.s32.totalorder %s15, 1
      %s147 = scalar_select %p146, %s15, 1
      %s148 = smul.addr %s147, 32
      %s149 = smul.addr %s148, 8
      %s150 = scalar_lea.vmem %s0, %s149
      %p151 = pneg %p36
      %p152 = pneg %p33
      %p153 = pneg %p57
      %p154 = pneg %p54
      %p155 = pneg %p83
      %p156 = pneg %p80
      %p157 = scmp.lt.s32.totalorder %s15, 1
      %s158 = scalar_select %p157, %s15, 1
      %s159 = scalar_lea.vmem %s2, %s158
      %p160 = pneg %p109
      %p161 = pneg %p106
      %p162 = scmp.lt.s32.totalorder %s15, 1
      %s163 = scalar_select %p162, %s15, 1
      %s164 = scalar_lea.vmem %s3, %s163
      %p165 = scmp.lt.s32.totalorder %s15, 1
      %s166 = scalar_select %p165, %s15, 1
      %s167 = smul.addr %s166, 32
      %s168 = smul.addr %s167, 8
      %s169 = scalar_lea.vmem %s0, %s168
      %p170 = scmp.lt.s32.totalorder %s15, 1
      %s171 = scalar_select %p170, %s15, 1
      %s172 = scalar_lea.vmem %s2, %s171
      %p173 = scmp.lt.s32.totalorder %s15, 1
      %s174 = scalar_select %p173, %s15, 1
      %s175 = scalar_lea.vmem %s3, %s174
      %v176 = vld [vmem:[%s169] sm:$0xff]
      %v177 = vld [vmem:[%s169 + $0x8] sm:$0xff]
      %v178 = vld [vmem:[%s169 + $0x10] sm:$0xff]
      %v179 = vld [vmem:[%s169 + $0x18] sm:$0xff]
      %v180 = vld [vmem:[%s169 + $0x20] sm:$0xff]
      %v181 = vld [vmem:[%s169 + $0x28] sm:$0xff]
      %v182 = vld [vmem:[%s169 + $0x30] sm:$0xff]
      %v183 = vld [vmem:[%s169 + $0x38] sm:$0xff]
      %v184 = vld [vmem:[%s169 + $0x40] sm:$0xff]
      %v185 = vld [vmem:[%s169 + $0x48] sm:$0xff]
      %v186 = vld [vmem:[%s169 + $0x50] sm:$0xff]
      %v187 = vld [vmem:[%s169 + $0x58] sm:$0xff]
      %v188 = vld [vmem:[%s169 + $0x60] sm:$0xff]
      %v189 = vld [vmem:[%s169 + $0x68] sm:$0xff]
      %v190 = vld [vmem:[%s169 + $0x70] sm:$0xff]
      %v191 = vld [vmem:[%s169 + $0x78] sm:$0xff]
      %v192 = vld [vmem:[%s169 + $0x80] sm:$0xff]
      %v193 = vld [vmem:[%s169 + $0x88] sm:$0xff]
      %v194 = vld [vmem:[%s169 + $0x90] sm:$0xff]
      %v195 = vld [vmem:[%s169 + $0x98] sm:$0xff]
      %v196 = vld [vmem:[%s169 + $0xa0] sm:$0xff]
      %v197 = vld [vmem:[%s169 + $0xa8] sm:$0xff]
      %v198 = vld [vmem:[%s169 + $0xb0] sm:$0xff]
      %v199 = vld [vmem:[%s169 + $0xb8] sm:$0xff]
      %v200 = vld [vmem:[%s169 + $0xc0] sm:$0xff]
      %v201 = vld [vmem:[%s169 + $0xc8] sm:$0xff]
      %v202 = vld [vmem:[%s169 + $0xd0] sm:$0xff]
      %v203 = vld [vmem:[%s169 + $0xd8] sm:$0xff]
      %v204 = vld [vmem:[%s169 + $0xe0] sm:$0xff]
      %v205 = vld [vmem:[%s169 + $0xe8] sm:$0xff]
      %v206 = vld [vmem:[%s169 + $0xf0] sm:$0xff]
      %v207 = vld [vmem:[%s169 + $0xf8] sm:$0xff]
      %v208 = vld [vmem:[%s1] sm:$0xf]
      %vm209 = vcmask 31744
      %v211 = vsel %vm209, %v176, 0
      %v214 = vsel %vm209, %v177, 0
      %v217 = vsel %vm209, %v178, 0
      %v220 = vsel %vm209, %v179, 0
      %v223 = vsel %vm209, %v180, 0
      %v226 = vsel %vm209, %v181, 0
      %v229 = vsel %vm209, %v182, 0
      %v232 = vsel %vm209, %v183, 0
      %v235 = vsel %vm209, %v184, 0
      %v238 = vsel %vm209, %v185, 0
      %v241 = vsel %vm209, %v186, 0
      %v244 = vsel %vm209, %v187, 0
      %v247 = vsel %vm209, %v188, 0
      %v250 = vsel %vm209, %v189, 0
      %v253 = vsel %vm209, %v190, 0
      %v256 = vsel %vm209, %v191, 0
      %v259 = vsel %vm209, %v192, 0
      %v262 = vsel %vm209, %v193, 0
      %v265 = vsel %vm209, %v194, 0
      %v268 = vsel %vm209, %v195, 0
      %v271 = vsel %vm209, %v196, 0
      %v274 = vsel %vm209, %v197, 0
      %v277 = vsel %vm209, %v198, 0
      %v280 = vsel %vm209, %v199, 0
      %v283 = vsel %vm209, %v200, 0
      %v286 = vsel %vm209, %v201, 0
      %v289 = vsel %vm209, %v202, 0
      %v292 = vsel %vm209, %v203, 0
      %v295 = vsel %vm209, %v204, 0
      %v298 = vsel %vm209, %v205, 0
      %v301 = vsel %vm209, %v206, 0
      %v304 = vsel %vm209, %v207, 0
      %vm306 = vcmask 1043456
      %v308 = vsel %vm306, %v208, 0
      %310 = vmatpush.msra.mxu0 0.0
      %311 = vmatpush.msra.mxu0 0.0
      %312 = vmatpush.msra.mxu0 0.0
      %313 = vmatpush.msra.mxu0 0.0
      %314 = vmatpush.msra.mxu0 0.0
      %315 = vmatpush.msra.mxu0 0.0
      %316 = vmatpush.msra.mxu0 0.0
      %317 = vmatpush.msra.mxu0 0.0
      %318 = vmatpush.msra.mxu0 0.0
      %319 = vmatpush.msra.mxu0 0.0
      %320 = vmatpush.msra.mxu0 0.0
      %321 = vmatpush.msra.mxu0 0.0
      %322 = vmatpush.msra.mxu0 0.0
      %323 = vmatpush.msra.mxu0 0.0
      %324 = vmatpush.msra.mxu0 0.0
      %325 = vmatpush.msra.mxu0 %v308
      %326 = vmatmul.f32.gmra.mxu0 %v211
      %v327 = vpop.f32.mrf.mxu0
      %v328 = vadd.f32 0.0, %v327
      %329 = vmatmul.f32.gmra.mxu0 %v214
      %v330 = vpop.f32.mrf.mxu0
      %v331 = vadd.f32 0.0, %v330
      %332 = vmatmul.f32.gmra.mxu0 %v217
      %v333 = vpop.f32.mrf.mxu0
      %v334 = vadd.f32 0.0, %v333
      %335 = vmatmul.f32.gmra.mxu0 %v220
      %v336 = vpop.f32.mrf.mxu0
      %v337 = vadd.f32 0.0, %v336
      %338 = vmatmul.f32.gmra.mxu0 %v223
      %v339 = vpop.f32.mrf.mxu0
      %v340 = vadd.f32 0.0, %v339
      %341 = vmatmul.f32.gmra.mxu0 %v226
      %v342 = vpop.f32.mrf.mxu0
      %v343 = vadd.f32 0.0, %v342
      %344 = vmatmul.f32.gmra.mxu0 %v229
      %v345 = vpop.f32.mrf.mxu0
      %v346 = vadd.f32 0.0, %v345
      %347 = vmatmul.f32.gmra.mxu0 %v232
      %v348 = vpop.f32.mrf.mxu0
      %v349 = vadd.f32 0.0, %v348
      %350 = vmatmul.f32.gmra.mxu0 %v235
      %v351 = vpop.f32.mrf.mxu0
      %v352 = vadd.f32 0.0, %v351
      %353 = vmatmul.f32.gmra.mxu0 %v238
      %v354 = vpop.f32.mrf.mxu0
      %v355 = vadd.f32 0.0, %v354
      %356 = vmatmul.f32.gmra.mxu0 %v241
      %v357 = vpop.f32.mrf.mxu0
      %v358 = vadd.f32 0.0, %v357
      %359 = vmatmul.f32.gmra.mxu0 %v244
      %v360 = vpop.f32.mrf.mxu0
      %v361 = vadd.f32 0.0, %v360
      %362 = vmatmul.f32.gmra.mxu0 %v247
      %v363 = vpop.f32.mrf.mxu0
      %v364 = vadd.f32 0.0, %v363
      %365 = vmatmul.f32.gmra.mxu0 %v250
      %v366 = vpop.f32.mrf.mxu0
      %v367 = vadd.f32 0.0, %v366
      %368 = vmatmul.f32.gmra.mxu0 %v253
      %v369 = vpop.f32.mrf.mxu0
      %v370 = vadd.f32 0.0, %v369
      %371 = vmatmul.f32.gmra.mxu0 %v256
      %v372 = vpop.f32.mrf.mxu0
      %v373 = vadd.f32 0.0, %v372
      %374 = vmatmul.f32.gmra.mxu0 %v259
      %v375 = vpop.f32.mrf.mxu0
      %v376 = vadd.f32 0.0, %v375
      %377 = vmatmul.f32.gmra.mxu0 %v262
      %v378 = vpop.f32.mrf.mxu0
      %v379 = vadd.f32 0.0, %v378
      %380 = vmatmul.f32.gmra.mxu0 %v265
      %v381 = vpop.f32.mrf.mxu0
      %v382 = vadd.f32 0.0, %v381
      %383 = vmatmul.f32.gmra.mxu0 %v268
      %v384 = vpop.f32.mrf.mxu0
      %v385 = vadd.f32 0.0, %v384
      %386 = vmatmul.f32.gmra.mxu0 %v271
      %v387 = vpop.f32.mrf.mxu0
      %v388 = vadd.f32 0.0, %v387
      %389 = vmatmul.f32.gmra.mxu0 %v274
      %v390 = vpop.f32.mrf.mxu0
      %v391 = vadd.f32 0.0, %v390
      %392 = vmatmul.f32.gmra.mxu0 %v277
      %v393 = vpop.f32.mrf.mxu0
      %v394 = vadd.f32 0.0, %v393
      %395 = vmatmul.f32.gmra.mxu0 %v280
      %v396 = vpop.f32.mrf.mxu0
      %v397 = vadd.f32 0.0, %v396
      %398 = vmatmul.f32.gmra.mxu0 %v283
      %v399 = vpop.f32.mrf.mxu0
      %v400 = vadd.f32 0.0, %v399
      %401 = vmatmul.f32.gmra.mxu0 %v286
      %v402 = vpop.f32.mrf.mxu0
      %v403 = vadd.f32 0.0, %v402
      %404 = vmatmul.f32.gmra.mxu0 %v289
      %v405 = vpop.f32.mrf.mxu0
      %v406 = vadd.f32 0.0, %v405
      %407 = vmatmul.f32.gmra.mxu0 %v292
      %v408 = vpop.f32.mrf.mxu0
      %v409 = vadd.f32 0.0, %v408
      %410 = vmatmul.f32.gmra.mxu0 %v295
      %v411 = vpop.f32.mrf.mxu0
      %v412 = vadd.f32 0.0, %v411
      %413 = vmatmul.f32.gmra.mxu0 %v298
      %v414 = vpop.f32.mrf.mxu0
      %v415 = vadd.f32 0.0, %v414
      %416 = vmatmul.f32.gmra.mxu0 %v301
      %v417 = vpop.f32.mrf.mxu0
      %v418 = vadd.f32 0.0, %v417
      %419 = vmatmul.f32.gmra.mxu0 %v304
      %v420 = vpop.f32.mrf.mxu0
      %v421 = vadd.f32 0.0, %v420
      %422 = vdwg.mxu0
      %v423 = vadd.f32 %v328, %v331
      %v424 = vadd.f32 %v423, %v334
      %v425 = vadd.f32 %v424, %v337
      %v426 = vadd.f32 %v425, %v340
      %v427 = vadd.f32 %v426, %v343
      %v428 = vadd.f32 %v427, %v346
      %v429 = vadd.f32 %v428, %v349
      %v430 = vadd.f32 %v429, %v352
      %v431 = vadd.f32 %v430, %v355
      %v432 = vadd.f32 %v431, %v358
      %v433 = vadd.f32 %v432, %v361
      %v434 = vadd.f32 %v433, %v364
      %v435 = vadd.f32 %v434, %v367
      %v436 = vadd.f32 %v435, %v370
      %v437 = vadd.f32 %v436, %v373
      %v438 = vadd.f32 %v437, %v376
      %v439 = vadd.f32 %v438, %v379
      %v440 = vadd.f32 %v439, %v382
      %v441 = vadd.f32 %v440, %v385
      %v442 = vadd.f32 %v441, %v388
      %v443 = vadd.f32 %v442, %v391
      %v444 = vadd.f32 %v443, %v394
      %v445 = vadd.f32 %v444, %v397
      %v446 = vadd.f32 %v445, %v400
      %v447 = vadd.f32 %v446, %v403
      %v448 = vadd.f32 %v447, %v406
      %v449 = vadd.f32 %v448, %v409
      %v450 = vadd.f32 %v449, %v412
      %v451 = vadd.f32 %v450, %v415
      %v452 = vadd.f32 %v451, %v418
      %v453 = vadd.f32 %v452, %v421
      %v454 = vrot.slane %v453, 4
      %v455 = vadd.f32 %v453, %v454
      %v456 = vrot.slane %v455, 2
      %v457 = vadd.f32 %v455, %v456
      %v458 = vrot.slane %v457, 1
      %v459 = vadd.f32 %v457, %v458
      %460 = vst [vmem:[%s172] sm:$0x1] %v459
      %v461 = vmul.f32 %v328, %v328
      %v462 = vmul.f32 %v331, %v331
      %v463 = vmul.f32 %v334, %v334
      %v464 = vmul.f32 %v337, %v337
      %v465 = vmul.f32 %v340, %v340
      %v466 = vmul.f32 %v343, %v343
      %v467 = vmul.f32 %v346, %v346
      %v468 = vmul.f32 %v349, %v349
      %v469 = vmul.f32 %v352, %v352
      %v470 = vmul.f32 %v355, %v355
      %v471 = vmul.f32 %v358, %v358
      %v472 = vmul.f32 %v361, %v361
      %v473 = vmul.f32 %v364, %v364
      %v474 = vmul.f32 %v367, %v367
      %v475 = vmul.f32 %v370, %v370
      %v476 = vmul.f32 %v373, %v373
      %v477 = vmul.f32 %v376, %v376
      %v478 = vmul.f32 %v379, %v379
      %v479 = vmul.f32 %v382, %v382
      %v480 = vmul.f32 %v385, %v385
      %v481 = vmul.f32 %v388, %v388
      %v482 = vmul.f32 %v391, %v391
      %v483 = vmul.f32 %v394, %v394
      %v484 = vmul.f32 %v397, %v397
      %v485 = vmul.f32 %v400, %v400
      %v486 = vmul.f32 %v403, %v403
      %v487 = vmul.f32 %v406, %v406
      %v488 = vmul.f32 %v409, %v409
      %v489 = vmul.f32 %v412, %v412
      %v490 = vmul.f32 %v415, %v415
      %v491 = vmul.f32 %v418, %v418
      %v492 = vmul.f32 %v421, %v421
      %v493 = vadd.f32 %v461, %v462
      %v494 = vadd.f32 %v493, %v463
      %v495 = vadd.f32 %v494, %v464
      %v496 = vadd.f32 %v495, %v465
      %v497 = vadd.f32 %v496, %v466
      %v498 = vadd.f32 %v497, %v467
      %v499 = vadd.f32 %v498, %v468
      %v500 = vadd.f32 %v499, %v469
      %v501 = vadd.f32 %v500, %v470
      %v502 = vadd.f32 %v501, %v471
      %v503 = vadd.f32 %v502, %v472
      %v504 = vadd.f32 %v503, %v473
      %v505 = vadd.f32 %v504, %v474
      %v506 = vadd.f32 %v505, %v475
      %v507 = vadd.f32 %v506, %v476
      %v508 = vadd.f32 %v507, %v477
      %v509 = vadd.f32 %v508, %v478
      %v510 = vadd.f32 %v509, %v479
      %v511 = vadd.f32 %v510, %v480
      %v512 = vadd.f32 %v511, %v481
      %v513 = vadd.f32 %v512, %v482
      %v514 = vadd.f32 %v513, %v483
      %v515 = vadd.f32 %v514, %v484
      %v516 = vadd.f32 %v515, %v485
      %v517 = vadd.f32 %v516, %v486
      %v518 = vadd.f32 %v517, %v487
      %v519 = vadd.f32 %v518, %v488
      %v520 = vadd.f32 %v519, %v489
      %v521 = vadd.f32 %v520, %v490
      %v522 = vadd.f32 %v521, %v491
      %v523 = vadd.f32 %v522, %v492
      %v524 = vrot.slane %v523, 4
      %v525 = vadd.f32 %v523, %v524
      %v526 = vrot.slane %v525, 2
      %v527 = vadd.f32 %v525, %v526
      %v528 = vrot.slane %v527, 1
      %v529 = vadd.f32 %v527, %v528
      %530 = vst [vmem:[%s175] sm:$0x1] %v529
      %p531 = scmp.lt.s32.totalorder %s15, 1
      %s532 = scalar_select %p531, %s15, 1
      %s533 = scalar_lea.vmem %s2, %s532
      %p534 = scmp.lt.s32.totalorder %s15, 1
      %s535 = scalar_select %p534, %s15, 1
      %s536 = scalar_lea.vmem %s3, %s535
      // Predicated region
      $region29: #{mobilenetv2_forward.3} parent=27 // pred_check
        %p537 = pneg %p80
      $region30: #{mobilenetv2_forward.3} parent=27 // pred_check_branch
        %539 = sbr.rel (%p537) target = $region32
      $region31: #{mobilenetv2_forward.3} parent=27 // pred_region
        _
      $region32: #{mobilenetv2_forward.3} parent=27 // pred_fallthru
        _
      // Predicated region
      $region33: #{mobilenetv2_forward.3} parent=27 // pred_check
        %p540 = pneg %p106
      $region34: #{mobilenetv2_forward.3} parent=27 // pred_check_branch
        %542 = sbr.rel (%p540) target = $region36
      $region35: #{mobilenetv2_forward.3} parent=27 // pred_region
        _
      $region36: #{mobilenetv2_forward.3} parent=27 // pred_fallthru
        _
    $region28: #{mobilenetv2_forward.3} parent=5 // pred_fallthru
      _
    %p543 = scmp.le.s32.totalorder 2, %s10
    // Predicated region
    $region37: #{mobilenetv2_forward.3} parent=5 // pred_check
      %p544 = pneg %p543
    $region38: #{mobilenetv2_forward.3} parent=5 // pred_check_branch
      %546 = sbr.rel (%p544) target = $region40
    $region39: #{mobilenetv2_forward.3} parent=5 // pred_region
      %s547 = ssub.s32 %s10, 2
      // Predicated region
      $region41: #{mobilenetv2_forward.3} parent=39 // pred_check
        %p548 = pneg %p86
      $region42: #{mobilenetv2_forward.3} parent=39 // pred_check_branch
        %550 = sbr.rel (%p548) target = $region44
      $region43: #{mobilenetv2_forward.3} parent=39 // pred_region
        %p551 = scmp.lt.s32.totalorder %s16, 1
        %s552 = scalar_select %p551, %s16, 1
        %s553 = scalar_lea.vmem %s2, %s552
      $region44: #{mobilenetv2_forward.3} parent=39 // pred_fallthru
        _
      // Predicated region
      $region45: #{mobilenetv2_forward.3} parent=39 // pred_check
        %p554 = pneg %p112
      $region46: #{mobilenetv2_forward.3} parent=39 // pred_check_branch
        %556 = sbr.rel (%p554) target = $region48
      $region47: #{mobilenetv2_forward.3} parent=39 // pred_region
        %p557 = scmp.lt.s32.totalorder %s16, 1
        %s558 = scalar_select %p557, %s16, 1
        %s559 = scalar_lea.vmem %s3, %s558
      $region48: #{mobilenetv2_forward.3} parent=39 // pred_fallthru
        _
    $region40: #{mobilenetv2_forward.3} parent=5 // pred_fallthru
      _
  $region6: #{mobilenetv2_forward.3} parent=0 // loop_footer
    %s14 = sadd.s32 1, %s10
  $region7: #{mobilenetv2_forward.3} parent=0 // loop_footer_branch
    %9 = sbr.rel target = $region3
  $region8: #{mobilenetv2_forward.3} parent=0 // loop_exit
    _

// kernel: mobilenetv2_forward.5
$region0: #{mobilenetv2_forward.5}
  #allocation0 [shape = 'u32[]', space=smem, size = 0x4, offset = 0x4, fixed_abs, tag = 'smem constant byte address 0x4 - core index']
  #allocation1 [shape = 'u32[72,128]{1,0:T(1,128)}', space=vmem, size = 0x9000, scoped, tag = 'internal scratch']
  %s0 = inlined_call_operand.vmem [shape: f32[2,16,16,16], index: 0, kind: input, shape index: {}]
  %s1 = inlined_call_operand.vmem [shape: f32[1,16], index: 1, kind: input, shape index: {}]
  %s2 = inlined_call_operand.vmem [shape: f32[1,16], index: 2, kind: input, shape index: {}]
  %s3 = inlined_call_operand.vmem [shape: f32[16,8], index: 3, kind: input, shape index: {}]
  %s4 = inlined_call_operand.vmem [shape: f32[2,16,16,8], index: 4, kind: output, shape index: {0}]
  %s5 = inlined_call_operand.vmem [shape: f32[2,1,8], index: 5, kind: output, shape index: {1}]
  %s6 = inlined_call_operand.vmem [shape: f32[2,1,8], index: 6, kind: output, shape index: {2}]
  %7 = xla_tuple %s4, %s5, %s6
  %s8 = sld [smem:[#allocation0]]
  $region65: #{mobilenetv2_forward.5} parent=0
    _
  %s10 = ssub.s32 1, %s8
  %s11 = scalar_select 0, %s10, %s8
  loop: start=0, step=1, limit=4
  $region2: #{mobilenetv2_forward.5} parent=0 // loop_pre_header
    _
  $region3: #{mobilenetv2_forward.5} parent=0 // loop_header
    %s13 = sphi 0, %s17
    %p14 = scmp.ge.s32.totalorder %s13, 4
    %s23 = sphi 0, %s25
    %s26 = sphi 0, %s23
    %s27 = sphi 0, %s26
    %s43 = sphi 0, %s27
    %s47 = sphi 0, %s47
    %s49 = sphi 0, %s47
    %s50 = sphi 0, %s49
    %s64 = sphi 0, %s50
    %s68 = sphi 0, %s68
    %s70 = sphi 0, %s68
    %s71 = sphi 0, %s70
    %s85 = sphi 0, %s71
    %s89 = sphi 0, %s89
    %s91 = sphi 0, %s89
    %s92 = sphi 0, %s91
    %s106 = sphi 0, %s92
    %s112 = sphi 0, %s114
    %s115 = sphi 0, %s112
    %s116 = sphi 0, %s115
    %s132 = sphi 0, %s116
    %s138 = sphi 0, %s140
    %s141 = sphi 0, %s138
    %s142 = sphi 0, %s141
    %s158 = sphi 0, %s142
    %s164 = sphi 0, %s166
    %s167 = sphi 0, %s164
    %s168 = sphi 0, %s167
    %s184 = sphi 0, %s168
  $region4: #{mobilenetv2_forward.5} parent=0 // loop_header_branch
    %16 = sbr.rel (%p14) target = $region8
  $region5: #{mobilenetv2_forward.5} parent=0 // loop_body
    %s18 = ssub.s32 %s13, 1
    %s19 = ssub.s32 %s13, 2
    %s20 = sadd.s32 %s13, 1
    %s21 = ssub.s32 %s13, %s20
    %p22 = scmp.eq.s32.totalorder %s21, 0
    %s24 = sadd.s32 %s23, 1
    %s25 = scalar_select %p22, %s23, %s24
    %p28 = pneg %p22
    %p29 = scmp.eq.s32.totalorder %s13, 1
    %p30 = por %p28, %p29
    %p31 = scmp.ne.s32.totalorder %s23, %s26
    %p32 = scmp.eq.s32.totalorder %s13, 0
    %p33 = por %p31, %p32
    %p34 = scmp.ne.s32.totalorder %s23, %s26
    %p35 = scmp.eq.s32.totalorder %s18, 1
    %p36 = por %p34, %p35
    %p37 = scmp.ne.s32.totalorder %s26, %s27
    %p38 = scmp.eq.s32.totalorder %s18, 0
    %p39 = por %p37, %p38
    %p40 = scmp.ne.s32.totalorder %s26, %s27
    %p41 = scmp.eq.s32.totalorder %s19, 1
    %p42 = por %p40, %p41
    %p44 = scmp.ne.s32.totalorder %s27, %s43
    %p45 = scmp.eq.s32.totalorder %s19, 0
    %p46 = por %p44, %p45
    %s48 = sadd.s32 %s47, 1
    %p51 = scmp.eq.s32.totalorder %s13, 1
    %p52 = scmp.ne.s32.totalorder %s47, %s49
    %p53 = scmp.eq.s32.totalorder %s13, 0
    %p54 = por %p52, %p53
    %p55 = scmp.ne.s32.totalorder %s47, %s49
    %p56 = scmp.eq.s32.totalorder %s18, 1
    %p57 = por %p55, %p56
    %p58 = scmp.ne.s32.totalorder %s49, %s50
    %p59 = scmp.eq.s32.totalorder %s18, 0
    %p60 = por %p58, %p59
    %p61 = scmp.ne.s32.totalorder %s49, %s50
    %p62 = scmp.eq.s32.totalorder %s19, 1
    %p63 = por %p61, %p62
    %p65 = scmp.ne.s32.totalorder %s50, %s64
    %p66 = scmp.eq.s32.totalorder %s19, 0
    %p67 = por %p65, %p66
    %s69 = sadd.s32 %s68, 1
    %p72 = scmp.eq.s32.totalorder %s13, 1
    %p73 = scmp.ne.s32.totalorder %s68, %s70
    %p74 = scmp.eq.s32.totalorder %s13, 0
    %p75 = por %p73, %p74
    %p76 = scmp.ne.s32.totalorder %s68, %s70
    %p77 = scmp.eq.s32.totalorder %s18, 1
    %p78 = por %p76, %p77
    %p79 = scmp.ne.s32.totalorder %s70, %s71
    %p80 = scmp.eq.s32.totalorder %s18, 0
    %p81 = por %p79, %p80
    %p82 = scmp.ne.s32.totalorder %s70, %s71
    %p83 = scmp.eq.s32.totalorder %s19, 1
    %p84 = por %p82, %p83
    %p86 = scmp.ne.s32.totalorder %s71, %s85
    %p87 = scmp.eq.s32.totalorder %s19, 0
    %p88 = por %p86, %p87
    %s90 = sadd.s32 %s89, 1
    %p93 = scmp.eq.s32.totalorder %s13, 1
    %p94 = scmp.ne.s32.totalorder %s89, %s91
    %p95 = scmp.eq.s32.totalorder %s13, 0
    %p96 = por %p94, %p95
    %p97 = scmp.ne.s32.totalorder %s89, %s91
    %p98 = scmp.eq.s32.totalorder %s18, 1
    %p99 = por %p97, %p98
    %p100 = scmp.ne.s32.totalorder %s91, %s92
    %p101 = scmp.eq.s32.totalorder %s18, 0
    %p102 = por %p100, %p101
    %p103 = scmp.ne.s32.totalorder %s91, %s92
    %p104 = scmp.eq.s32.totalorder %s19, 1
    %p105 = por %p103, %p104
    %p107 = scmp.ne.s32.totalorder %s92, %s106
    %p108 = scmp.eq.s32.totalorder %s19, 0
    %p109 = por %p107, %p108
    %s110 = ssub.s32 %s13, %s20
    %p111 = scmp.eq.s32.totalorder %s110, 0
    %s113 = sadd.s32 %s112, 1
    %s114 = scalar_select %p111, %s112, %s113
    %p117 = pneg %p111
    %p118 = scmp.eq.s32.totalorder %s13, 1
    %p119 = por %p117, %p118
    %p120 = scmp.ne.s32.totalorder %s112, %s115
    %p121 = scmp.eq.s32.totalorder %s13, 0
    %p122 = por %p120, %p121
    %p123 = scmp.ne.s32.totalorder %s112, %s115
    %p124 = scmp.eq.s32.totalorder %s18, 1
    %p125 = por %p123, %p124
    %p126 = scmp.ne.s32.totalorder %s115, %s116
    %p127 = scmp.eq.s32.totalorder %s18, 0
    %p128 = por %p126, %p127
    %p129 = scmp.ne.s32.totalorder %s115, %s116
    %p130 = scmp.eq.s32.totalorder %s19, 1
    %p131 = por %p129, %p130
    %p133 = scmp.ne.s32.totalorder %s116, %s132
    %p134 = scmp.eq.s32.totalorder %s19, 0
    %p135 = por %p133, %p134
    %s136 = ssub.s32 %s13, %s20
    %p137 = scmp.eq.s32.totalorder %s136, 0
    %s139 = sadd.s32 %s138, 1
    %s140 = scalar_select %p137, %s138, %s139
    %p143 = pneg %p137
    %p144 = scmp.eq.s32.totalorder %s13, 1
    %p145 = por %p143, %p144
    %p146 = scmp.ne.s32.totalorder %s138, %s141
    %p147 = scmp.eq.s32.totalorder %s13, 0
    %p148 = por %p146, %p147
    %p149 = scmp.ne.s32.totalorder %s138, %s141
    %p150 = scmp.eq.s32.totalorder %s18, 1
    %p151 = por %p149, %p150
    %p152 = scmp.ne.s32.totalorder %s141, %s142
    %p153 = scmp.eq.s32.totalorder %s18, 0
    %p154 = por %p152, %p153
    %p155 = scmp.ne.s32.totalorder %s141, %s142
    %p156 = scmp.eq.s32.totalorder %s19, 1
    %p157 = por %p155, %p156
    %p159 = scmp.ne.s32.totalorder %s142, %s158
    %p160 = scmp.eq.s32.totalorder %s19, 0
    %p161 = por %p159, %p160
    %s162 = ssub.s32 %s13, %s20
    %p163 = scmp.eq.s32.totalorder %s162, 0
    %s165 = sadd.s32 %s164, 1
    %s166 = scalar_select %p163, %s164, %s165
    %p169 = pneg %p163
    %p170 = scmp.eq.s32.totalorder %s13, 1
    %p171 = por %p169, %p170
    %p172 = scmp.ne.s32.totalorder %s164, %s167
    %p173 = scmp.eq.s32.totalorder %s13, 0
    %p174 = por %p172, %p173
    %p175 = scmp.ne.s32.totalorder %s164, %s167
    %p176 = scmp.eq.s32.totalorder %s18, 1
    %p177 = por %p175, %p176
    %p178 = scmp.ne.s32.totalorder %s167, %s168
    %p179 = scmp.eq.s32.totalorder %s18, 0
    %p180 = por %p178, %p179
    %p181 = scmp.ne.s32.totalorder %s167, %s168
    %p182 = scmp.eq.s32.totalorder %s19, 1
    %p183 = por %p181, %p182
    %p185 = scmp.ne.s32.totalorder %s168, %s184
    %p186 = scmp.eq.s32.totalorder %s19, 0
    %p187 = por %p185, %p186
    %p188 = scmp.le.s32.totalorder 1, %s13
    %p189 = scmp.lt.s32.totalorder %s13, 3
    %p190 = pnand %p188, %p189
    %p191 = pneg %p190
    // Predicated region
    $region9: #{mobilenetv2_forward.5} parent=5 // pred_check
      _
    $region10: #{mobilenetv2_forward.5} parent=5 // pred_check_branch
      %193 = sbr.rel (%p190) target = $region12
    $region11: #{mobilenetv2_forward.5} parent=5 // pred_region
      %s194 = ssub.s32 %s13, 1
      // Predicated region
      $region13: #{mobilenetv2_forward.5} parent=11 // pred_check
        %p195 = pneg %p60
      $region14: #{mobilenetv2_forward.5} parent=11 // pred_check_branch
        %197 = sbr.rel (%p195) target = $region16
      $region15: #{mobilenetv2_forward.5} parent=11 // pred_region
        _
      $region16: #{mobilenetv2_forward.5} parent=11 // pred_fallthru
        _
      // Predicated region
      $region17: #{mobilenetv2_forward.5} parent=11 // pred_check
        %p198 = pneg %p81
      $region18: #{mobilenetv2_forward.5} parent=11 // pred_check_branch
        %200 = sbr.rel (%p198) target = $region20
      $region19: #{mobilenetv2_forward.5} parent=11 // pred_region
        _
      $region20: #{mobilenetv2_forward.5} parent=11 // pred_fallthru
        _
      // Predicated region
      $region21: #{mobilenetv2_forward.5} parent=11 // pred_check
        %p201 = pneg %p102
      $region22: #{mobilenetv2_forward.5} parent=11 // pred_check_branch
        %203 = sbr.rel (%p201) target = $region24
      $region23: #{mobilenetv2_forward.5} parent=11 // pred_region
        _
      $region24: #{mobilenetv2_forward.5} parent=11 // pred_fallthru
        _
    $region12: #{mobilenetv2_forward.5} parent=5 // pred_fallthru
      _
    %p204 = scmp.lt.s32.totalorder %s13, 2
    // Predicated region
    $region25: #{mobilenetv2_forward.5} parent=5 // pred_check
      %p205 = pneg %p204
    $region26: #{mobilenetv2_forward.5} parent=5 // pred_check_branch
      %207 = sbr.rel (%p205) target = $region28
    $region27: #{mobilenetv2_forward.5} parent=5 // pred_region
      // Predicated region
      $region29: #{mobilenetv2_forward.5} parent=27 // pred_check
        %p208 = pneg %p33
      $region30: #{mobilenetv2_forward.5} parent=27 // pred_check_branch
        %210 = sbr.rel (%p208) target = $region32
      $region31: #{mobilenetv2_forward.5} parent=27 // pred_region
        %p211 = scmp.lt.s32.totalorder %s13, 1
        %s212 = scalar_select %p211, %s13, 1
        %s213 = smul.addr %s212, 32
        %s214 = smul.addr %s213, 8
        %s215 = scalar_lea.vmem %s0, %s214
      $region32: #{mobilenetv2_forward.5} parent=27 // pred_fallthru
        _
    $region28: #{mobilenetv2_forward.5} parent=5 // pred_fallthru
      _
    %p216 = scmp.le.s32.totalorder 1, %s13
    %p217 = scmp.lt.s32.totalorder %s13, 3
    %p218 = pnand %p216, %p217
    %p219 = pneg %p218
    // Predicated region
    $region33: #{mobilenetv2_forward.5} parent=5 // pred_check
      _
    $region34: #{mobilenetv2_forward.5} parent=5 // pred_check_branch
      %221 = sbr.rel (%p218) target = $region36
    $region35: #{mobilenetv2_forward.5} parent=5 // pred_region
      %s222 = ssub.s32 %s13, 1
      %p223 = scmp.lt.s32.totalorder %s18, 1
      %s224 = scalar_select %p223, %s18, 1
      %s225 = smul.addr %s224, 32
      %s226 = smul.addr %s225, 8
      %s227 = scalar_lea.vmem %s0, %s226
      %p228 = pneg %p39
      %p229 = pneg %p36
      %p230 = pneg %p60
      %p231 = pneg %p57
      %p232 = pneg %p81
      %p233 = pneg %p78
      %p234 = pneg %p102
      %p235 = pneg %p99
      %p236 = pneg %p128
      %p237 = pneg %p125
      %p238 = scmp.lt.s32.totalorder %s18, 1
      %s239 = scalar_select %p238, %s18, 1
      %s240 = smul.addr %s239, 32
      %s241 = smul.addr %s240, 8
      %s242 = scalar_lea.vmem %s4, %s241
      %p243 = pneg %p154
      %p244 = pneg %p151
      %p245 = scmp.lt.s32.totalorder %s18, 1
      %s246 = scalar_select %p245, %s18, 1
      %s247 = scalar_lea.vmem %s5, %s246
      %p248 = pneg %p180
      %p249 = pneg %p177
      %p250 = scmp.lt.s32.totalorder %s18, 1
      %s251 = scalar_select %p250, %s18, 1
      %s252 = scalar_lea.vmem %s6, %s251
      %p253 = scmp.lt.s32.totalorder %s18, 1
      %s254 = scalar_select %p253, %s18, 1
      %s255 = smul.addr %s254, 32
      %s256 = smul.addr %s255, 8
      %s257 = scalar_lea.vmem %s0, %s256
      %p258 = scmp.lt.s32.totalorder %s18, 1
      %s259 = scalar_select %p258, %s18, 1
      %s260 = smul.addr %s259, 32
      %s261 = smul.addr %s260, 8
      %s262 = scalar_lea.vmem %s4, %s261
      %p263 = scmp.lt.s32.totalorder %s18, 1
      %s264 = scalar_select %p263, %s18, 1
      %s265 = scalar_lea.vmem %s5, %s264
      %p266 = scmp.lt.s32.totalorder %s18, 1
      %s267 = scalar_select %p266, %s18, 1
      %s268 = scalar_lea.vmem %s6, %s267
      %v269 = vld [vmem:[%s257] sm:$0xff]
      %v270 = vld [vmem:[%s257 + $0x8] sm:$0xff]
      %v271 = vld [vmem:[%s257 + $0x10] sm:$0xff]
      %v272 = vld [vmem:[%s257 + $0x18] sm:$0xff]
      %v273 = vld [vmem:[%s257 + $0x20] sm:$0xff]
      %v274 = vld [vmem:[%s257 + $0x28] sm:$0xff]
      %v275 = vld [vmem:[%s257 + $0x30] sm:$0xff]
      %v276 = vld [vmem:[%s257 + $0x38] sm:$0xff]
      %v277 = vld [vmem:[%s257 + $0x40] sm:$0xff]
      %v278 = vld [vmem:[%s257 + $0x48] sm:$0xff]
      %v279 = vld [vmem:[%s257 + $0x50] sm:$0xff]
      %v280 = vld [vmem:[%s257 + $0x58] sm:$0xff]
      %v281 = vld [vmem:[%s257 + $0x60] sm:$0xff]
      %v282 = vld [vmem:[%s257 + $0x68] sm:$0xff]
      %v283 = vld [vmem:[%s257 + $0x70] sm:$0xff]
      %v284 = vld [vmem:[%s257 + $0x78] sm:$0xff]
      %v285 = vld [vmem:[%s257 + $0x80] sm:$0xff]
      %v286 = vld [vmem:[%s257 + $0x88] sm:$0xff]
      %v287 = vld [vmem:[%s257 + $0x90] sm:$0xff]
      %v288 = vld [vmem:[%s257 + $0x98] sm:$0xff]
      %v289 = vld [vmem:[%s257 + $0xa0] sm:$0xff]
      %v290 = vld [vmem:[%s257 + $0xa8] sm:$0xff]
      %v291 = vld [vmem:[%s257 + $0xb0] sm:$0xff]
      %v292 = vld [vmem:[%s257 + $0xb8] sm:$0xff]
      %v293 = vld [vmem:[%s257 + $0xc0] sm:$0xff]
      %v294 = vld [vmem:[%s257 + $0xc8] sm:$0xff]
      %v295 = vld [vmem:[%s257 + $0xd0] sm:$0xff]
      %v296 = vld [vmem:[%s257 + $0xd8] sm:$0xff]
      %v297 = vld [vmem:[%s257 + $0xe0] sm:$0xff]
      %v298 = vld [vmem:[%s257 + $0xe8] sm:$0xff]
      %v299 = vld [vmem:[%s257 + $0xf0] sm:$0xff]
      %v300 = vld [vmem:[%s257 + $0xf8] sm:$0xff]
      %v301 = vld [vmem:[%s1] sm:$0x1]
      %v303 = vperm.slane %v301, 0
      %v305 = vmul.f32 %v269, %v303
      %v306 = vmul.f32 %v270, %v303
      %v307 = vmul.f32 %v271, %v303
      %v308 = vmul.f32 %v272, %v303
      %v309 = vmul.f32 %v273, %v303
      %v310 = vmul.f32 %v274, %v303
      %v311 = vmul.f32 %v275, %v303
      %v312 = vmul.f32 %v276, %v303
      %v313 = vmul.f32 %v277, %v303
      %v314 = vmul.f32 %v278, %v303
      %v315 = vmul.f32 %v279, %v303
      %v316 = vmul.f32 %v280, %v303
      %v317 = vmul.f32 %v281, %v303
      %v318 = vmul.f32 %v282, %v303
      %v319 = vmul.f32 %v283, %v303
      %v320 = vmul.f32 %v284, %v303
      %v321 = vmul.f32 %v285, %v303
      %v322 = vmul.f32 %v286, %v303
      %v323 = vmul.f32 %v287, %v303
      %v324 = vmul.f32 %v288, %v303
      %v325 = vmul.f32 %v289, %v303
      %v326 = vmul.f32 %v290, %v303
      %v327 = vmul.f32 %v291, %v303
      %v328 = vmul.f32 %v292, %v303
      %v329 = vmul.f32 %v293, %v303
      %v330 = vmul.f32 %v294, %v303
      %v331 = vmul.f32 %v295, %v303
      %v332 = vmul.f32 %v296, %v303
      %v333 = vmul.f32 %v297, %v303
      %v334 = vmul.f32 %v298, %v303
      %v335 = vmul.f32 %v299, %v303
      %v336 = vmul.f32 %v300, %v303
      %v337 = vld [vmem:[%s2] sm:$0x1]
      %v339 = vperm.slane %v337, 0
      %v341 = vadd.f32 %v305, %v339
      %v342 = vadd.f32 %v306, %v339
      %v343 = vadd.f32 %v307, %v339
      %v344 = vadd.f32 %v308, %v339
      %v345 = vadd.f32 %v309, %v339
      %v346 = vadd.f32 %v310, %v339
      %v347 = vadd.f32 %v311, %v339
      %v348 = vadd.f32 %v312, %v339
      %v349 = vadd.f32 %v313, %v339
      %v350 = vadd.f32 %v314, %v339
      %v351 = vadd.f32 %v315, %v339
      %v352 = vadd.f32 %v316, %v339
      %v353 = vadd.f32 %v317, %v339
      %v354 = vadd.f32 %v318, %v339
      %v355 = vadd.f32 %v319, %v339
      %v356 = vadd.f32 %v320, %v339
      %v357 = vadd.f32 %v321, %v339
      %v358 = vadd.f32 %v322, %v339
      %v359 = vadd.f32 %v323, %v339
      %v360 = vadd.f32 %v324, %v339
      %v361 = vadd.f32 %v325, %v339
      %v362 = vadd.f32 %v326, %v339
      %v363 = vadd.f32 %v327, %v339
      %v364 = vadd.f32 %v328, %v339
      %v365 = vadd.f32 %v329, %v339
      %v366 = vadd.f32 %v330, %v339
      %v367 = vadd.f32 %v331, %v339
      %v368 = vadd.f32 %v332, %v339
      %v369 = vadd.f32 %v333, %v339
      %v370 = vadd.f32 %v334, %v339
      %v371 = vadd.f32 %v335, %v339
      %v372 = vadd.f32 %v336, %v339
      %v373 = vmax.f32 %v341, 0.0
      %v374 = vmax.f32 %v342, 0.0
      %v375 = vmax.f32 %v343, 0.0
      %v376 = vmax.f32 %v344, 0.0
      %v377 = vmax.f32 %v345, 0.0
      %v378 = vmax.f32 %v346, 0.0
      %v379 = vmax.f32 %v347, 0.0
      %v380 = vmax.f32 %v348, 0.0
      %v381 = vmax.f32 %v349, 0.0
      %v382 = vmax.f32 %v350, 0.0
      %v383 = vmax.f32 %v351, 0.0
      %v384 = vmax.f32 %v352, 0.0
      %v385 = vmax.f32 %v353, 0.0
      %v386 = vmax.f32 %v354, 0.0
      %v387 = vmax.f32 %v355, 0.0
      %v388 = vmax.f32 %v356, 0.0
      %v389 = vmax.f32 %v357, 0.0
      %v390 = vmax.f32 %v358, 0.0
      %v391 = vmax.f32 %v359, 0.0
      %v392 = vmax.f32 %v360, 0.0
      %v393 = vmax.f32 %v361, 0.0
      %v394 = vmax.f32 %v362, 0.0
      %v395 = vmax.f32 %v363, 0.0
      %v396 = vmax.f32 %v364, 0.0
      %v397 = vmax.f32 %v365, 0.0
      %v398 = vmax.f32 %v366, 0.0
      %v399 = vmax.f32 %v367, 0.0
      %v400 = vmax.f32 %v368, 0.0
      %v401 = vmax.f32 %v369, 0.0
      %v402 = vmax.f32 %v370, 0.0
      %v403 = vmax.f32 %v371, 0.0
      %v404 = vmax.f32 %v372, 0.0
      %v405 = vmin.f32 %v373, 6.0
      %v406 = vmin.f32 %v374, 6.0
      %v407 = vmin.f32 %v375, 6.0
      %v408 = vmin.f32 %v376, 6.0
      %v409 = vmin.f32 %v377, 6.0
      %v410 = vmin.f32 %v378, 6.0
      %v411 = vmin.f32 %v379, 6.0
      %v412 = vmin.f32 %v380, 6.0
      %v413 = vmin.f32 %v381, 6.0
      %v414 = vmin.f32 %v382, 6.0
      %v415 = vmin.f32 %v383, 6.0
      %v416 = vmin.f32 %v384, 6.0
      %v417 = vmin.f32 %v385, 6.0
      %v418 = vmin.f32 %v386, 6.0
      %v419 = vmin.f32 %v387, 6.0
      %v420 = vmin.f32 %v388, 6.0
      %v421 = vmin.f32 %v389, 6.0
      %v422 = vmin.f32 %v390, 6.0
      %v423 = vmin.f32 %v391, 6.0
      %v424 = vmin.f32 %v392, 6.0
      %v425 = vmin.f32 %v393, 6.0
      %v426 = vmin.f32 %v394, 6.0
      %v427 = vmin.f32 %v395, 6.0
      %v428 = vmin.f32 %v396, 6.0
      %v429 = vmin.f32 %v397, 6.0
      %v430 = vmin.f32 %v398, 6.0
      %v431 = vmin.f32 %v399, 6.0
      %v432 = vmin.f32 %v400, 6.0
      %v433 = vmin.f32 %v401, 6.0
      %v434 = vmin.f32 %v402, 6.0
      %v435 = vmin.f32 %v403, 6.0
      %v436 = vmin.f32 %v404, 6.0
      %v437 = vld [vmem:[%s3] sm:$0xff]
      %v438 = vld [vmem:[%s3 + $0x8] sm:$0xff]
      %vm439 = vcmask 130048
      %v441 = vsel %vm439, %v405, 0
      %v444 = vsel %vm439, %v406, 0
      %v447 = vsel %vm439, %v407, 0
      %v450 = vsel %vm439, %v408, 0
      %v453 = vsel %vm439, %v409, 0
      %v456 = vsel %vm439, %v410, 0
      %v459 = vsel %vm439, %v411, 0
      %v462 = vsel %vm439, %v412, 0
      %v465 = vsel %vm439, %v413, 0
      %v468 = vsel %vm439, %v414, 0
      %v471 = vsel %vm439, %v415, 0
      %v474 = vsel %vm439, %v416, 0
      %v477 = vsel %vm439, %v417, 0
      %v480 = vsel %vm439, %v418, 0
      %v483 = vsel %vm439, %v419, 0
      %v486 = vsel %vm439, %v420, 0
      %v489 = vsel %vm439, %v421, 0
      %v492 = vsel %vm439, %v422, 0
      %v495 = vsel %vm439, %v423, 0
      %v498 = vsel %vm439, %v424, 0
      %v501 = vsel %vm439, %v425, 0
      %v504 = vsel %vm439, %v426, 0
      %v507 = vsel %vm439, %v427, 0
      %v510 = vsel %vm439, %v428, 0
      %v513 = vsel %vm439, %v429, 0
      %v516 = vsel %vm439, %v430, 0
      %v519 = vsel %vm439, %v431, 0
      %v522 = vsel %vm439, %v432, 0
      %v525 = vsel %vm439, %v433, 0
      %v528 = vsel %vm439, %v434, 0
      %v531 = vsel %vm439, %v435, 0
      %v534 = vsel %vm439, %v436, 0
      %536 = vmatpush.msra.mxu0 0.0
      %537 = vmatpush.msra.mxu0 0.0
      %538 = vmatpush.msra.mxu0 0.0
      %539 = vmatpush.msra.mxu0 0.0
      %540 = vmatpush.msra.mxu0 0.0
      %541 = vmatpush.msra.mxu0 0.0
      %542 = vmatpush.msra.mxu0 0.0
      %543 = vmatpush.msra.mxu0 0.0
      %544 = vmatpush.msra.mxu0 0.0
      %545 = vmatpush.msra.mxu0 0.0
      %546 = vmatpush.msra.mxu0 0.0
      %547 = vmatpush.msra.mxu0 0.0
      %548 = vmatpush.msra.mxu0 0.0
      %549 = vmatpush.msra.mxu0 0.0
      %550 = vmatpush.msra.mxu0 %v438
      %551 = vmatpush.msra.mxu0 %v437
      %552 = vmatmul.f32.gmra.mxu0 %v441
      %v553 = vpop.f32.mrf.mxu0
      %v554 = vadd.f32 0.0, %v553
      %555 = vmatmul.f32.gmra.mxu0 %v444
      %v556 = vpop.f32.mrf.mxu0
      %v557 = vadd.f32 0.0, %v556
      %558 = vmatmul.f32.gmra.mxu0 %v447
      %v559 = vpop.f32.mrf.mxu0
      %v560 = vadd.f32 0.0, %v559
      %561 = vmatmul.f32.gmra.mxu0 %v450
      %v562 = vpop.f32.mrf.mxu0
      %v563 = vadd.f32 0.0, %v562
      %564 = vmatmul.f32.gmra.mxu0 %v453
      %v565 = vpop.f32.mrf.mxu0
      %v566 = vadd.f32 0.0, %v565
      %567 = vmatmul.f32.gmra.mxu0 %v456
      %v568 = vpop.f32.mrf.mxu0
      %v569 = vadd.f32 0.0, %v568
      %570 = vmatmul.f32.gmra.mxu0 %v459
      %v571 = vpop.f32.mrf.mxu0
      %v572 = vadd.f32 0.0, %v571
      %573 = vmatmul.f32.gmra.mxu0 %v462
      %v574 = vpop.f32.mrf.mxu0
      %v575 = vadd.f32 0.0, %v574
      %576 = vmatmul.f32.gmra.mxu0 %v465
      %v577 = vpop.f32.mrf.mxu0
      %v578 = vadd.f32 0.0, %v577
      %579 = vmatmul.f32.gmra.mxu0 %v468
      %v580 = vpop.f32.mrf.mxu0
      %v581 = vadd.f32 0.0, %v580
      %582 = vmatmul.f32.gmra.mxu0 %v471
      %v583 = vpop.f32.mrf.mxu0
      %v584 = vadd.f32 0.0, %v583
      %585 = vmatmul.f32.gmra.mxu0 %v474
      %v586 = vpop.f32.mrf.mxu0
      %v587 = vadd.f32 0.0, %v586
      %588 = vmatmul.f32.gmra.mxu0 %v477
      %v589 = vpop.f32.mrf.mxu0
      %v590 = vadd.f32 0.0, %v589
      %591 = vmatmul.f32.gmra.mxu0 %v480
      %v592 = vpop.f32.mrf.mxu0
      %v593 = vadd.f32 0.0, %v592
      %594 = vmatmul.f32.gmra.mxu0 %v483
      %v595 = vpop.f32.mrf.mxu0
      %v596 = vadd.f32 0.0, %v595
      %597 = vmatmul.f32.gmra.mxu0 %v486
      %v598 = vpop.f32.mrf.mxu0
      %v599 = vadd.f32 0.0, %v598
      %600 = vmatmul.f32.gmra.mxu0 %v489
      %v601 = vpop.f32.mrf.mxu0
      %v602 = vadd.f32 0.0, %v601
      %603 = vmatmul.f32.gmra.mxu0 %v492
      %v604 = vpop.f32.mrf.mxu0
      %v605 = vadd.f32 0.0, %v604
      %606 = vmatmul.f32.gmra.mxu0 %v495
      %v607 = vpop.f32.mrf.mxu0
      %v608 = vadd.f32 0.0, %v607
      %609 = vmatmul.f32.gmra.mxu0 %v498
      %v610 = vpop.f32.mrf.mxu0
      %v611 = vadd.f32 0.0, %v610
      %612 = vmatmul.f32.gmra.mxu0 %v501
      %v613 = vpop.f32.mrf.mxu0
      %v614 = vadd.f32 0.0, %v613
      %615 = vmatmul.f32.gmra.mxu0 %v504
      %v616 = vpop.f32.mrf.mxu0
      %v617 = vadd.f32 0.0, %v616
      %618 = vmatmul.f32.gmra.mxu0 %v507
      %v619 = vpop.f32.mrf.mxu0
      %v620 = vadd.f32 0.0, %v619
      %621 = vmatmul.f32.gmra.mxu0 %v510
      %v622 = vpop.f32.mrf.mxu0
      %v623 = vadd.f32 0.0, %v622
      %624 = vmatmul.f32.gmra.mxu0 %v513
      %v625 = vpop.f32.mrf.mxu0
      %v626 = vadd.f32 0.0, %v625
      %627 = vmatmul.f32.gmra.mxu0 %v516
      %v628 = vpop.f32.mrf.mxu0
      %v629 = vadd.f32 0.0, %v628
      %630 = vmatmul.f32.gmra.mxu0 %v519
      %v631 = vpop.f32.mrf.mxu0
      %v632 = vadd.f32 0.0, %v631
      %633 = vmatmul.f32.gmra.mxu0 %v522
      %v634 = vpop.f32.mrf.mxu0
      %v635 = vadd.f32 0.0, %v634
      %636 = vmatmul.f32.gmra.mxu0 %v525
      %v637 = vpop.f32.mrf.mxu0
      %v638 = vadd.f32 0.0, %v637
      %639 = vmatmul.f32.gmra.mxu0 %v528
      %v640 = vpop.f32.mrf.mxu0
      %v641 = vadd.f32 0.0, %v640
      %642 = vmatmul.f32.gmra.mxu0 %v531
      %v643 = vpop.f32.mrf.mxu0
      %v644 = vadd.f32 0.0, %v643
      %645 = vmatmul.f32.gmra.mxu0 %v534
      %v646 = vpop.f32.mrf.mxu0
      %v647 = vadd.f32 0.0, %v646
      %648 = vdwg.mxu0
      %vm649 = vcmask 64512
      %650 = vst.msk [vmem:[%s262] sm:$0xff] %vm649, %v554
      %651 = vst.msk [vmem:[%s262 + $0x8] sm:$0xff] %vm649, %v557
      %652 = vst.msk [vmem:[%s262 + $0x10] sm:$0xff] %vm649, %v560
      %653 = vst.msk [vmem:[%s262 + $0x18] sm:$0xff] %vm649, %v563
      %654 = vst.msk [vmem:[%s262 + $0x20] sm:$0xff] %vm649, %v566
      %655 = vst.msk [vmem:[%s262 + $0x28] sm:$0xff] %vm649, %v569
      %656 = vst.msk [vmem:[%s262 + $0x30] sm:$0xff] %vm649, %v572
      %657 = vst.msk [vmem:[%s262 + $0x38] sm:$0xff] %vm649, %v575
      %658 = vst.msk [vmem:[%s262 + $0x40] sm:$0xff] %vm649, %v578
      %659 = vst.msk [vmem:[%s262 + $0x48] sm:$0xff] %vm649, %v581
      %660 = vst.msk [vmem:[%s262 + $0x50] sm:$0xff] %vm649, %v584
      %661 = vst.msk [vmem:[%s262 + $0x58] sm:$0xff] %vm649, %v587
      %662 = vst.msk [vmem:[%s262 + $0x60] sm:$0xff] %vm649, %v590
      %663 = vst.msk [vmem:[%s262 + $0x68] sm:$0xff] %vm649, %v593
      %664 = vst.msk [vmem:[%s262 + $0x70] sm:$0xff] %vm649, %v596
      %665 = vst.msk [vmem:[%s262 + $0x78] sm:$0xff] %vm649, %v599
      %666 = vst.msk [vmem:[%s262 + $0x80] sm:$0xff] %vm649, %v602
      %667 = vst.msk [vmem:[%s262 + $0x88] sm:$0xff] %vm649, %v605
      %668 = vst.msk [vmem:[%s262 + $0x90] sm:$0xff] %vm649, %v608
      %669 = vst.msk [vmem:[%s262 + $0x98] sm:$0xff] %vm649, %v611
      %670 = vst.msk [vmem:[%s262 + $0xa0] sm:$0xff] %vm649, %v614
      %671 = vst.msk [vmem:[%s262 + $0xa8] sm:$0xff] %vm649, %v617
      %672 = vst.msk [vmem:[%s262 + $0xb0] sm:$0xff] %vm649, %v620
      %673 = vst.msk [vmem:[%s262 + $0xb8] sm:$0xff] %vm649, %v623
      %674 = vst.msk [vmem:[%s262 + $0xc0] sm:$0xff] %vm649, %v626
      %675 = vst.msk [vmem:[%s262 + $0xc8] sm:$0xff] %vm649, %v629
      %676 = vst.msk [vmem:[%s262 + $0xd0] sm:$0xff] %vm649, %v632
      %677 = vst.msk [vmem:[%s262 + $0xd8] sm:$0xff] %vm649, %v635
      %678 = vst.msk [vmem:[%s262 + $0xe0] sm:$0xff] %vm649, %v638
      %679 = vst.msk [vmem:[%s262 + $0xe8] sm:$0xff] %vm649, %v641
      %680 = vst.msk [vmem:[%s262 + $0xf0] sm:$0xff] %vm649, %v644
      %681 = vst.msk [vmem:[%s262 + $0xf8] sm:$0xff] %vm649, %v647
      %v682 = vsel %vm649, %v554, 0.0
      %v683 = vsel %vm649, %v557, 0.0
      %v684 = vadd.f32 %v682, %v683
      %v685 = vsel %vm649, %v560, 0.0
      %v686 = vadd.f32 %v684, %v685
      %v687 = vsel %vm649, %v563, 0.0
      %v688 = vadd.f32 %v686, %v687
      %v689 = vsel %vm649, %v566, 0.0
      %v690 = vadd.f32 %v688, %v689
      %v691 = vsel %vm649, %v569, 0.0
      %v692 = vadd.f32 %v690, %v691
      %v693 = vsel %vm649, %v572, 0.0
      %v694 = vadd.f32 %v692, %v693
      %v695 = vsel %vm649, %v575, 0.0
      %v696 = vadd.f32 %v694, %v695
      %v697 = vsel %vm649, %v578, 0.0
      %v698 = vadd.f32 %v696, %v697
      %v699 = vsel %vm649, %v581, 0.0
      %v700 = vadd.f32 %v698, %v699
      %v701 = vsel %vm649, %v584, 0.0
      %v702 = vadd.f32 %v700, %v701
      %v703 = vsel %vm649, %v587, 0.0
      %v704 = vadd.f32 %v702, %v703
      %v705 = vsel %vm649, %v590, 0.0
      %v706 = vadd.f32 %v704, %v705
      %v707 = vsel %vm649, %v593, 0.0
      %v708 = vadd.f32 %v706, %v707
      %v709 = vsel %vm649, %v596, 0.0
      %v710 = vadd.f32 %v708, %v709
      %v711 = vsel %vm649, %v599, 0.0
      %v712 = vadd.f32 %v710, %v711
      %v713 = vsel %vm649, %v602, 0.0
      %v714 = vadd.f32 %v712, %v713
      %v715 = vsel %vm649, %v605, 0.0
      %v716 = vadd.f32 %v714, %v715
      %v717 = vsel %vm649, %v608, 0.0
      %v718 = vadd.f32 %v716, %v717
      %v719 = vsel %vm649, %v611, 0.0
      %v720 = vadd.f32 %v718, %v719
      %v721 = vsel %vm649, %v614, 0.0
      %v722 = vadd.f32 %v720, %v721
      %v723 = vsel %vm649, %v617, 0.0
      %v724 = vadd.f32 %v722, %v723
      %v725 = vsel %vm649, %v620, 0.0
      %v726 = vadd.f32 %v724, %v725
      %v727 = vsel %vm649, %v623, 0.0
      %v728 = vadd.f32 %v726, %v727
      %v729 = vsel %vm649, %v626, 0.0
      %v730 = vadd.f32 %v728, %v729
      %v731 = vsel %vm649, %v629, 0.0
      %v732 = vadd.f32 %v730, %v731
      %v733 = vsel %vm649, %v632, 0.0
      %v734 = vadd.f32 %v732, %v733
      %v735 = vsel %vm649, %v635, 0.0
      %v736 = vadd.f32 %v734, %v735
      %v737 = vsel %vm649, %v638, 0.0
      %v738 = vadd.f32 %v736, %v737
      %v739 = vsel %vm649, %v641, 0.0
      %v740 = vadd.f32 %v738, %v739
      %v741 = vsel %vm649, %v644, 0.0
      %v742 = vadd.f32 %v740, %v741
      %v743 = vsel %vm649, %v647, 0.0
      %v744 = vadd.f32 %v742, %v743
      %v745 = vrot.slane %v744, 4
      %v746 = vadd.f32 %v744, %v745
      %v747 = vrot.slane %v746, 2
      %v748 = vadd.f32 %v746, %v747
      %v749 = vrot.slane %v748, 1
      %v750 = vadd.f32 %v748, %v749
      %vm751 = vcmask 57344
      %752 = vst.msk [vmem:[%s265] sm:$0x1] %vm751, %v750
      %v753 = vmul.f32 %v554, %v554
      %v754 = vmul.f32 %v557, %v557
      %v755 = vmul.f32 %v560, %v560
      %v756 = vmul.f32 %v563, %v563
      %v757 = vmul.f32 %v566, %v566
      %v758 = vmul.f32 %v569, %v569
      %v759 = vmul.f32 %v572, %v572
      %v760 = vmul.f32 %v575, %v575
      %v761 = vmul.f32 %v578, %v578
      %v762 = vmul.f32 %v581, %v581
      %v763 = vmul.f32 %v584, %v584
      %v764 = vmul.f32 %v587, %v587
      %v765 = vmul.f32 %v590, %v590
      %v766 = vmul.f32 %v593, %v593
      %v767 = vmul.f32 %v596, %v596
      %v768 = vmul.f32 %v599, %v599
      %v769 = vmul.f32 %v602, %v602
      %v770 = vmul.f32 %v605, %v605
      %v771 = vmul.f32 %v608, %v608
      %v772 = vmul.f32 %v611, %v611
      %v773 = vmul.f32 %v614, %v614
      %v774 = vmul.f32 %v617, %v617
      %v775 = vmul.f32 %v620, %v620
      %v776 = vmul.f32 %v623, %v623
      %v777 = vmul.f32 %v626, %v626
      %v778 = vmul.f32 %v629, %v629
      %v779 = vmul.f32 %v632, %v632
      %v780 = vmul.f32 %v635, %v635
      %v781 = vmul.f32 %v638, %v638
      %v782 = vmul.f32 %v641, %v641
      %v783 = vmul.f32 %v644, %v644
      %v784 = vmul.f32 %v647, %v647
      %v785 = vsel %vm649, %v753, 0.0
      %v786 = vsel %vm649, %v754, 0.0
      %v787 = vadd.f32 %v785, %v786
      %v788 = vsel %vm649, %v755, 0.0
      %v789 = vadd.f32 %v787, %v788
      %v790 = vsel %vm649, %v756, 0.0
      %v791 = vadd.f32 %v789, %v790
      %v792 = vsel %vm649, %v757, 0.0
      %v793 = vadd.f32 %v791, %v792
      %v794 = vsel %vm649, %v758, 0.0
      %v795 = vadd.f32 %v793, %v794
      %v796 = vsel %vm649, %v759, 0.0
      %v797 = vadd.f32 %v795, %v796
      %v798 = vsel %vm649, %v760, 0.0
      %v799 = vadd.f32 %v797, %v798
      %v800 = vsel %vm649, %v761, 0.0
      %v801 = vadd.f32 %v799, %v800
      %v802 = vsel %vm649, %v762, 0.0
      %v803 = vadd.f32 %v801, %v802
      %v804 = vsel %vm649, %v763, 0.0
      %v805 = vadd.f32 %v803, %v804
      %v806 = vsel %vm649, %v764, 0.0
      %v807 = vadd.f32 %v805, %v806
      %v808 = vsel %vm649, %v765, 0.0
      %v809 = vadd.f32 %v807, %v808
      %v810 = vsel %vm649, %v766, 0.0
      %v811 = vadd.f32 %v809, %v810
      %v812 = vsel %vm649, %v767, 0.0
      %v813 = vadd.f32 %v811, %v812
      %v814 = vsel %vm649, %v768, 0.0
      %v815 = vadd.f32 %v813, %v814
      %v816 = vsel %vm649, %v769, 0.0
      %v817 = vadd.f32 %v815, %v816
      %v818 = vsel %vm649, %v770, 0.0
      %v819 = vadd.f32 %v817, %v818
      %v820 = vsel %vm649, %v771, 0.0
      %v821 = vadd.f32 %v819, %v820
      %v822 = vsel %vm649, %v772, 0.0
      %v823 = vadd.f32 %v821, %v822
      %v824 = vsel %vm649, %v773, 0.0
      %v825 = vadd.f32 %v823, %v824
      %v826 = vsel %vm649, %v774, 0.0
      %v827 = vadd.f32 %v825, %v826
      %v828 = vsel %vm649, %v775, 0.0
      %v829 = vadd.f32 %v827, %v828
      %v830 = vsel %vm649, %v776, 0.0
      %v831 = vadd.f32 %v829, %v830
      %v832 = vsel %vm649, %v777, 0.0
      %v833 = vadd.f32 %v831, %v832
      %v834 = vsel %vm649, %v778, 0.0
      %v835 = vadd.f32 %v833, %v834
      %v836 = vsel %vm649, %v779, 0.0
      %v837 = vadd.f32 %v835, %v836
      %v838 = vsel %vm649, %v780, 0.0
      %v839 = vadd.f32 %v837, %v838
      %v840 = vsel %vm649, %v781, 0.0
      %v841 = vadd.f32 %v839, %v840
      %v842 = vsel %vm649, %v782, 0.0
      %v843 = vadd.f32 %v841, %v842
      %v844 = vsel %vm649, %v783, 0.0
      %v845 = vadd.f32 %v843, %v844
      %v846 = vsel %vm649, %v784, 0.0
      %v847 = vadd.f32 %v845, %v846
      %v848 = vrot.slane %v847, 4
      %v849 = vadd.f32 %v847, %v848
      %v850 = vrot.slane %v849, 2
      %v851 = vadd.f32 %v849, %v850
      %v852 = vrot.slane %v851, 1
      %v853 = vadd.f32 %v851, %v852
      %854 = vst.msk [vmem:[%s268] sm:$0x1] %vm751, %v853
      %p855 = scmp.lt.s32.totalorder %s18, 1
      %s856 = scalar_select %p855, %s18, 1
      %s857 = smul.addr %s856, 32
      %s858 = smul.addr %s857, 8
      %s859 = scalar_lea.vmem %s4, %s858
      %p860 = scmp.lt.s32.totalorder %s18, 1
      %s861 = scalar_select %p860, %s18, 1
      %s862 = scalar_lea.vmem %s5, %s861
      %p863 = scmp.lt.s32.totalorder %s18, 1
      %s864 = scalar_select %p863, %s18, 1
      %s865 = scalar_lea.vmem %s6, %s864
      // Predicated region
      $region37: #{mobilenetv2_forward.5} parent=35 // pred_check
        %p866 = pneg %p125
      $region38: #{mobilenetv2_forward.5} parent=35 // pred_check_branch
        %868 = sbr.rel (%p866) target = $region40
      $region39: #{mobilenetv2_forward.5} parent=35 // pred_region
        _
      $region40: #{mobilenetv2_forward.5} parent=35 // pred_fallthru
        _
      // Predicated region
      $region41: #{mobilenetv2_forward.5} parent=35 // pred_check
        %p869 = pneg %p151
      $region42: #{mobilenetv2_forward.5} parent=35 // pred_check_branch
        %871 = sbr.rel (%p869) target = $region44
      $region43: #{mobilenetv2_forward.5} parent=35 // pred_region
        _
      $region44: #{mobilenetv2_forward.5} parent=35 // pred_fallthru
        _
      // Predicated region
      $region45: #{mobilenetv2_forward.5} parent=35 // pred_check
        %p872 = pneg %p177
      $region46: #{mobilenetv2_forward.5} parent=35 // pred_check_branch
        %874 = sbr.rel (%p872) target = $region48
      $region47: #{mobilenetv2_forward.5} parent=35 // pred_region
        _
      $region48: #{mobilenetv2_forward.5} parent=35 // pred_fallthru
        _
    $region36: #{mobilenetv2_forward.5} parent=5 // pred_fallthru
      _
    %p875 = scmp.le.s32.totalorder 2, %s13
    // Predicated region
    $region49: #{mobilenetv2_forward.5} parent=5 // pred_check
      %p876 = pneg %p875
    $region50: #{mobilenetv2_forward.5} parent=5 // pred_check_branch
      %878 = sbr.rel (%p876) target = $region52
    $region51: #{mobilenetv2_forward.5} parent=5 // pred_region
      %s879 = ssub.s32 %s13, 2
      // Predicated region
      $region53: #{mobilenetv2_forward.5} parent=51 // pred_check
        %p880 = pneg %p131
      $region54: #{mobilenetv2_forward.5} parent=51 // pred_check_branch
        %882 = sbr.rel (%p880) target = $region56
      $region55: #{mobilenetv2_forward.5} parent=51 // pred_region
        %p883 = scmp.lt.s32.totalorder %s19, 1
        %s884 = scalar_select %p883, %s19, 1
        %s885 = smul.addr %s884, 32
        %s886 = smul.addr %s885, 8
        %s887 = scalar_lea.vmem %s4, %s886
      $region56: #{mobilenetv2_forward.5} parent=51 // pred_fallthru
        _
      // Predicated region
      $region57: #{mobilenetv2_forward.5} parent=51 // pred_check
        %p888 = pneg %p157
      $region58: #{mobilenetv2_forward.5} parent=51 // pred_check_branch
        %890 = sbr.rel (%p888) target = $region60
      $region59: #{mobilenetv2_forward.5} parent=51 // pred_region
        %p891 = scmp.lt.s32.totalorder %s19, 1
        %s892 = scalar_select %p891, %s19, 1
        %s893 = scalar_lea.vmem %s5, %s892
      $region60: #{mobilenetv2_forward.5} parent=51 // pred_fallthru
        _
      // Predicated region
      $region61: #{mobilenetv2_forward.5} parent=51 // pred_check
        %p894 = pneg %p183
      $region62: #{mobilenetv2_forward.5} parent=51 // pred_check_branch
        %896 = sbr.rel (%p894) target = $region64
      $region63: #{mobilenetv2_forward.5} parent=51 // pred_region
        %p897 = scmp.lt.s32.totalorder %s19, 1
        %s898 = scalar_select %p897, %s19, 1
        %s899 = scalar_lea.vmem %s6, %s898
      $region64: #{mobilenetv2_forward.5} parent=51 // pred_fallthru
        _
    $region52: #{mobilenetv2_forward.5} parent=5 // pred_fallthru
      _
  $region6: #{mobilenetv2_forward.5} parent=0 // loop_footer
    %s17 = sadd.s32 1, %s13
  $region7: #{mobilenetv2_forward.5} parent=0 // loop_footer_branch
    %12 = sbr.rel target = $region3
  $region8: #{mobilenetv2_forward.5} parent=0 // loop_exit
    _

// kernel: mobilenetv2_forward.4
$region0: #{mobilenetv2_forward.4}
  #allocation0 [shape = 'u32[]', space=smem, size = 0x4, offset = 0x4, fixed_abs, tag = 'smem constant byte address 0x4 - core index']
  #allocation1 [shape = 'u32[72,128]{1,0:T(1,128)}', space=vmem, size = 0x9000, scoped, tag = 'internal scratch']
  #allocation2 [shape = 'f32[16,18,128]{2,1,0:T(8,128)}', space=vmem, size = 0x30000, scoped, tag = 'scratch operand']
  %s0 = inlined_call_operand.vmem [shape: f32[2,16,16,4], index: 0, kind: input, shape index: {}]
  %s1 = inlined_call_operand.vmem [shape: f32[4,128], index: 1, kind: input, shape index: {}]
  %s2 = inlined_call_operand.vmem [shape: f32[1,128], index: 2, kind: input, shape index: {}]
  %s3 = inlined_call_operand.vmem [shape: f32[1,128], index: 3, kind: input, shape index: {}]
  %s4 = inlined_call_operand.vmem [shape: f32[3,3,128], index: 4, kind: input, shape index: {}]
  %s5 = inlined_call_operand.vmem [shape: f32[2,16,16,16], index: 5, kind: output, shape index: {0}]
  %s6 = inlined_call_operand.vmem [shape: f32[2,1,16], index: 6, kind: output, shape index: {1}]
  %s7 = inlined_call_operand.vmem [shape: f32[2,1,16], index: 7, kind: output, shape index: {2}]
  %8 = xla_tuple %s5, %s6, %s7
  %s9 = sld [smem:[#allocation0]]
  $region69: #{mobilenetv2_forward.4} parent=0
    _
  %s11 = ssub.s32 1, %s9
  %s12 = scalar_select 0, %s11, %s9
  loop: start=0, step=1, limit=4
  $region2: #{mobilenetv2_forward.4} parent=0 // loop_pre_header
    _
  $region3: #{mobilenetv2_forward.4} parent=0 // loop_header
    %s14 = sphi 0, %s18
    %p15 = scmp.ge.s32.totalorder %s14, 4
    %s24 = sphi 0, %s26
    %s27 = sphi 0, %s24
    %s28 = sphi 0, %s27
    %s44 = sphi 0, %s28
    %s48 = sphi 0, %s48
    %s50 = sphi 0, %s48
    %s51 = sphi 0, %s50
    %s65 = sphi 0, %s51
    %s69 = sphi 0, %s69
    %s71 = sphi 0, %s69
    %s72 = sphi 0, %s71
    %s86 = sphi 0, %s72
    %s90 = sphi 0, %s90
    %s92 = sphi 0, %s90
    %s93 = sphi 0, %s92
    %s107 = sphi 0, %s93
    %s111 = sphi 0, %s111
    %s113 = sphi 0, %s111
    %s114 = sphi 0, %s113
    %s128 = sphi 0, %s114
    %s134 = sphi 0, %s136
    %s137 = sphi 0, %s134
    %s138 = sphi 0, %s137
    %s154 = sphi 0, %s138
    %s160 = sphi 0, %s162
    %s163 = sphi 0, %s160
    %s164 = sphi 0, %s163
    %s180 = sphi 0, %s164
    %s186 = sphi 0, %s188
    %s189 = sphi 0, %s186
    %s190 = sphi 0, %s189
    %s206 = sphi 0, %s190
  $region4: #{mobilenetv2_forward.4} parent=0 // loop_header_branch
    %17 = sbr.rel (%p15) target = $region8
  $region5: #{mobilenetv2_forward.4} parent=0 // loop_body
    %s19 = ssub.s32 %s14, 1
    %s20 = ssub.s32 %s14, 2
    %s21 = sadd.s32 %s14, 1
    %s22 = ssub.s32 %s14, %s21
    %p23 = scmp.eq.s32.totalorder %s22, 0
    %s25 = sadd.s32 %s24, 1
    %s26 = scalar_select %p23, %s24, %s25
    %p29 = pneg %p23
    %p30 = scmp.eq.s32.totalorder %s14, 1
    %p31 = por %p29, %p30
    %p32 = scmp.ne.s32.totalorder %s24, %s27
    %p33 = scmp.eq.s32.totalorder %s14, 0
    %p34 = por %p32, %p33
    %p35 = scmp.ne.s32.totalorder %s24, %s27
    %p36 = scmp.eq.s32.totalorder %s19, 1
    %p37 = por %p35, %p36
    %p38 = scmp.ne.s32.totalorder %s27, %s28
    %p39 = scmp.eq.s32.totalorder %s19, 0
    %p40 = por %p38, %p39
    %p41 = scmp.ne.s32.totalorder %s27, %s28
    %p42 = scmp.eq.s32.totalorder %s20, 1
    %p43 = por %p41, %p42
    %p45 = scmp.ne.s32.totalorder %s28, %s44
    %p46 = scmp.eq.s32.totalorder %s20, 0
    %p47 = por %p45, %p46
    %s49 = sadd.s32 %s48, 1
    %p52 = scmp.eq.s32.totalorder %s14, 1
    %p53 = scmp.ne.s32.totalorder %s48, %s50
    %p54 = scmp.eq.s32.totalorder %s14, 0
    %p55 = por %p53, %p54
    %p56 = scmp.ne.s32.totalorder %s48, %s50
    %p57 = scmp.eq.s32.totalorder %s19, 1
    %p58 = por %p56, %p57
    %p59 = scmp.ne.s32.totalorder %s50, %s51
    %p60 = scmp.eq.s32.totalorder %s19, 0
    %p61 = por %p59, %p60
    %p62 = scmp.ne.s32.totalorder %s50, %s51
    %p63 = scmp.eq.s32.totalorder %s20, 1
    %p64 = por %p62, %p63
    %p66 = scmp.ne.s32.totalorder %s51, %s65
    %p67 = scmp.eq.s32.totalorder %s20, 0
    %p68 = por %p66, %p67
    %s70 = sadd.s32 %s69, 1
    %p73 = scmp.eq.s32.totalorder %s14, 1
    %p74 = scmp.ne.s32.totalorder %s69, %s71
    %p75 = scmp.eq.s32.totalorder %s14, 0
    %p76 = por %p74, %p75
    %p77 = scmp.ne.s32.totalorder %s69, %s71
    %p78 = scmp.eq.s32.totalorder %s19, 1
    %p79 = por %p77, %p78
    %p80 = scmp.ne.s32.totalorder %s71, %s72
    %p81 = scmp.eq.s32.totalorder %s19, 0
    %p82 = por %p80, %p81
    %p83 = scmp.ne.s32.totalorder %s71, %s72
    %p84 = scmp.eq.s32.totalorder %s20, 1
    %p85 = por %p83, %p84
    %p87 = scmp.ne.s32.totalorder %s72, %s86
    %p88 = scmp.eq.s32.totalorder %s20, 0
    %p89 = por %p87, %p88
    %s91 = sadd.s32 %s90, 1
    %p94 = scmp.eq.s32.totalorder %s14, 1
    %p95 = scmp.ne.s32.totalorder %s90, %s92
    %p96 = scmp.eq.s32.totalorder %s14, 0
    %p97 = por %p95, %p96
    %p98 = scmp.ne.s32.totalorder %s90, %s92
    %p99 = scmp.eq.s32.totalorder %s19, 1
    %p100 = por %p98, %p99
    %p101 = scmp.ne.s32.totalorder %s92, %s93
    %p102 = scmp.eq.s32.totalorder %s19, 0
    %p103 = por %p101, %p102
    %p104 = scmp.ne.s32.totalorder %s92, %s93
    %p105 = scmp.eq.s32.totalorder %s20, 1
    %p106 = por %p104, %p105
    %p108 = scmp.ne.s32.totalorder %s93, %s107
    %p109 = scmp.eq.s32.totalorder %s20, 0
    %p110 = por %p108, %p109
    %s112 = sadd.s32 %s111, 1
    %p115 = scmp.eq.s32.totalorder %s14, 1
    %p116 = scmp.ne.s32.totalorder %s111, %s113
    %p117 = scmp.eq.s32.totalorder %s14, 0
    %p118 = por %p116, %p117
    %p119 = scmp.ne.s32.totalorder %s111, %s113
    %p120 = scmp.eq.s32.totalorder %s19, 1
    %p121 = por %p119, %p120
    %p122 = scmp.ne.s32.totalorder %s113, %s114
    %p123 = scmp.eq.s32.totalorder %s19, 0
    %p124 = por %p122, %p123
    %p125 = scmp.ne.s32.totalorder %s113, %s114
    %p126 = scmp.eq.s32.totalorder %s20, 1
    %p127 = por %p125, %p126
    %p129 = scmp.ne.s32.totalorder %s114, %s128
    %p130 = scmp.eq.s32.totalorder %s20, 0
    %p131 = por %p129, %p130
    %s132 = ssub.s32 %s14, %s21
    %p133 = scmp.eq.s32.totalorder %s132, 0
    %s135 = sadd.s32 %s134, 1
    %s136 = scalar_select %p133, %s134, %s135
    %p139 = pneg %p133
    %p140 = scmp.eq.s32.totalorder %s14, 1
    %p141 = por %p139, %p140
    %p142 = scmp.ne.s32.totalorder %s134, %s137
    %p143 = scmp.eq.s32.totalorder %s14, 0
    %p144 = por %p142, %p143
    %p145 = scmp.ne.s32.totalorder %s134, %s137
    %p146 = scmp.eq.s32.totalorder %s19, 1
    %p147 = por %p145, %p146
    %p148 = scmp.ne.s32.totalorder %s137, %s138
    %p149 = scmp.eq.s32.totalorder %s19, 0
    %p150 = por %p148, %p149
    %p151 = scmp.ne.s32.totalorder %s137, %s138
    %p152 = scmp.eq.s32.totalorder %s20, 1
    %p153 = por %p151, %p152
    %p155 = scmp.ne.s32.totalorder %s138, %s154
    %p156 = scmp.eq.s32.totalorder %s20, 0
    %p157 = por %p155, %p156
    %s158 = ssub.s32 %s14, %s21
    %p159 = scmp.eq.s32.totalorder %s158, 0
    %s161 = sadd.s32 %s160, 1
    %s162 = scalar_select %p159, %s160, %s161
    %p165 = pneg %p159
    %p166 = scmp.eq.s32.totalorder %s14, 1
    %p167 = por %p165, %p166
    %p168 = scmp.ne.s32.totalorder %s160, %s163
    %p169 = scmp.eq.s32.totalorder %s14, 0
    %p170 = por %p168, %p169
    %p171 = scmp.ne.s32.totalorder %s160, %s163
    %p172 = scmp.eq.s32.totalorder %s19, 1
    %p173 = por %p171, %p172
    %p174 = scmp.ne.s32.totalorder %s163, %s164
    %p175 = scmp.eq.s32.totalorder %s19, 0
    %p176 = por %p174, %p175
    %p177 = scmp.ne.s32.totalorder %s163, %s164
    %p178 = scmp.eq.s32.totalorder %s20, 1
    %p179 = por %p177, %p178
    %p181 = scmp.ne.s32.totalorder %s164, %s180
    %p182 = scmp.eq.s32.totalorder %s20, 0
    %p183 = por %p181, %p182
    %s184 = ssub.s32 %s14, %s21
    %p185 = scmp.eq.s32.totalorder %s184, 0
    %s187 = sadd.s32 %s186, 1
    %s188 = scalar_select %p185, %s186, %s187
    %p191 = pneg %p185
    %p192 = scmp.eq.s32.totalorder %s14, 1
    %p193 = por %p191, %p192
    %p194 = scmp.ne.s32.totalorder %s186, %s189
    %p195 = scmp.eq.s32.totalorder %s14, 0
    %p196 = por %p194, %p195
    %p197 = scmp.ne.s32.totalorder %s186, %s189
    %p198 = scmp.eq.s32.totalorder %s19, 1
    %p199 = por %p197, %p198
    %p200 = scmp.ne.s32.totalorder %s189, %s190
    %p201 = scmp.eq.s32.totalorder %s19, 0
    %p202 = por %p200, %p201
    %p203 = scmp.ne.s32.totalorder %s189, %s190
    %p204 = scmp.eq.s32.totalorder %s20, 1
    %p205 = por %p203, %p204
    %p207 = scmp.ne.s32.totalorder %s190, %s206
    %p208 = scmp.eq.s32.totalorder %s20, 0
    %p209 = por %p207, %p208
    %p210 = scmp.le.s32.totalorder 1, %s14
    %p211 = scmp.lt.s32.totalorder %s14, 3
    %p212 = pnand %p210, %p211
    %p213 = pneg %p212
    // Predicated region
    $region9: #{mobilenetv2_forward.4} parent=5 // pred_check
      _
    $region10: #{mobilenetv2_forward.4} parent=5 // pred_check_branch
      %215 = sbr.rel (%p212) target = $region12
    $region11: #{mobilenetv2_forward.4} parent=5 // pred_region
      %s216 = ssub.s32 %s14, 1
      // Predicated region
      $region13: #{mobilenetv2_forward.4} parent=11 // pred_check
        %p217 = pneg %p61
      $region14: #{mobilenetv2_forward.4} parent=11 // pred_check_branch
        %219 = sbr.rel (%p217) target = $region16
      $region15: #{mobilenetv2_forward.4} parent=11 // pred_region
        _
      $region16: #{mobilenetv2_forward.4} parent=11 // pred_fallthru
        _
      // Predicated region
      $region17: #{mobilenetv2_forward.4} parent=11 // pred_check
        %p220 = pneg %p82
      $region18: #{mobilenetv2_forward.4} parent=11 // pred_check_branch
        %222 = sbr.rel (%p220) target = $region20
      $region19: #{mobilenetv2_forward.4} parent=11 // pred_region
        _
      $region20: #{mobilenetv2_forward.4} parent=11 // pred_fallthru
        _
      // Predicated region
      $region21: #{mobilenetv2_forward.4} parent=11 // pred_check
        %p223 = pneg %p103
      $region22: #{mobilenetv2_forward.4} parent=11 // pred_check_branch
        %225 = sbr.rel (%p223) target = $region24
      $region23: #{mobilenetv2_forward.4} parent=11 // pred_region
        _
      $region24: #{mobilenetv2_forward.4} parent=11 // pred_fallthru
        _
      // Predicated region
      $region25: #{mobilenetv2_forward.4} parent=11 // pred_check
        %p226 = pneg %p124
      $region26: #{mobilenetv2_forward.4} parent=11 // pred_check_branch
        %228 = sbr.rel (%p226) target = $region28
      $region27: #{mobilenetv2_forward.4} parent=11 // pred_region
        _
      $region28: #{mobilenetv2_forward.4} parent=11 // pred_fallthru
        _
    $region12: #{mobilenetv2_forward.4} parent=5 // pred_fallthru
      _
    %p229 = scmp.lt.s32.totalorder %s14, 2
    // Predicated region
    $region29: #{mobilenetv2_forward.4} parent=5 // pred_check
      %p230 = pneg %p229
    $region30: #{mobilenetv2_forward.4} parent=5 // pred_check_branch
      %232 = sbr.rel (%p230) target = $region32
    $region31: #{mobilenetv2_forward.4} parent=5 // pred_region
      // Predicated region
      $region33: #{mobilenetv2_forward.4} parent=31 // pred_check
        %p233 = pneg %p34
      $region34: #{mobilenetv2_forward.4} parent=31 // pred_check_branch
        %235 = sbr.rel (%p233) target = $region36
      $region35: #{mobilenetv2_forward.4} parent=31 // pred_region
        %p236 = scmp.lt.s32.totalorder %s14, 1
        %s237 = scalar_select %p236, %s14, 1
        %s238 = smul.addr %s237, 32
        %s239 = smul.addr %s238, 8
        %s240 = scalar_lea.vmem %s0, %s239
      $region36: #{mobilenetv2_forward.4} parent=31 // pred_fallthru
        _
    $region32: #{mobilenetv2_forward.4} parent=5 // pred_fallthru
      _
    %p241 = scmp.le.s32.totalorder 1, %s14
    %p242 = scmp.lt.s32.totalorder %s14, 3
    %p243 = pnand %p241, %p242
    %p244 = pneg %p243
    // Predicated region
    $region37: #{mobilenetv2_forward.4} parent=5 // pred_check
      _
    $region38: #{mobilenetv2_forward.4} parent=5 // pred_check_branch
      %246 = sbr.rel (%p243) target = $region40
    $region39: #{mobilenetv2_forward.4} parent=5 // pred_region
      %s247 = ssub.s32 %s14, 1
      %p248 = scmp.lt.s32.totalorder %s19, 1
      %s249 = scalar_select %p248, %s19, 1
      %s250 = smul.addr %s249, 32
      %s251 = smul.addr %s250, 8
      %s252 = scalar_lea.vmem %s0, %s251
      %p253 = pneg %p40
      %p254 = pneg %p37
      %p255 = pneg %p61
      %p256 = pneg %p58
      %p257 = pneg %p82
      %p258 = pneg %p79
      %p259 = pneg %p103
      %p260 = pneg %p100
      %p261 = pneg %p124
      %p262 = pneg %p121
      %p263 = pneg %p150
      %p264 = pneg %p147
      %p265 = scmp.lt.s32.totalorder %s19, 1
      %s266 = scalar_select %p265, %s19, 1
      %s267 = smul.addr %s266, 32
      %s268 = smul.addr %s267, 8
      %s269 = scalar_lea.vmem %s5, %s268
      %p270 = pneg %p176
      %p271 = pneg %p173
      %p272 = scmp.lt.s32.totalorder %s19, 1
      %s273 = scalar_select %p272, %s19, 1
      %s274 = scalar_lea.vmem %s6, %s273
      %p275 = pneg %p202
      %p276 = pneg %p199
      %p277 = scmp.lt.s32.totalorder %s19, 1
      %s278 = scalar_select %p277, %s19, 1
      %s279 = scalar_lea.vmem %s7, %s278
      %p280 = scmp.lt.s32.totalorder %s19, 1
      %s281 = scalar_select %p280, %s19, 1
      %s282 = smul.addr %s281, 32
      %s283 = smul.addr %s282, 8
      %s284 = scalar_lea.vmem %s0, %s283
      %p285 = scmp.lt.s32.totalorder %s19, 1
      %s286 = scalar_select %p285, %s19, 1
      %s287 = smul.addr %s286, 32
      %s288 = smul.addr %s287, 8
      %s289 = scalar_lea.vmem %s5, %s288
      %p290 = scmp.lt.s32.totalorder %s19, 1
      %s291 = scalar_select %p290, %s19, 1
      %s292 = scalar_lea.vmem %s6, %s291
      %p293 = scmp.lt.s32.totalorder %s19, 1
      %s294 = scalar_select %p293, %s19, 1
      %s295 = scalar_lea.vmem %s7, %s294
      %v296 = vld [vmem:[%s284] sm:$0xff]
      %v297 = vld [vmem:[%s284 + $0x8] sm:$0xff]
      %v298 = vld [vmem:[%s284 + $0x10] sm:$0xff]
      %v299 = vld [vmem:[%s284 + $0x18] sm:$0xff]
      %v300 = vld [vmem:[%s284 + $0x20] sm:$0xff]
      %v301 = vld [vmem:[%s284 + $0x28] sm:$0xff]
      %v302 = vld [vmem:[%s284 + $0x30] sm:$0xff]
      %v303 = vld [vmem:[%s284 + $0x38] sm:$0xff]
      %v304 = vld [vmem:[%s284 + $0x40] sm:$0xff]
      %v305 = vld [vmem:[%s284 + $0x48] sm:$0xff]
      %v306 = vld [vmem:[%s284 + $0x50] sm:$0xff]
      %v307 = vld [vmem:[%s284 + $0x58] sm:$0xff]
      %v308 = vld [vmem:[%s284 + $0x60] sm:$0xff]
      %v309 = vld [vmem:[%s284 + $0x68] sm:$0xff]
      %v310 = vld [vmem:[%s284 + $0x70] sm:$0xff]
      %v311 = vld [vmem:[%s284 + $0x78] sm:$0xff]
      %v312 = vld [vmem:[%s284 + $0x80] sm:$0xff]
      %v313 = vld [vmem:[%s284 + $0x88] sm:$0xff]
      %v314 = vld [vmem:[%s284 + $0x90] sm:$0xff]
      %v315 = vld [vmem:[%s284 + $0x98] sm:$0xff]
      %v316 = vld [vmem:[%s284 + $0xa0] sm:$0xff]
      %v317 = vld [vmem:[%s284 + $0xa8] sm:$0xff]
      %v318 = vld [vmem:[%s284 + $0xb0] sm:$0xff]
      %v319 = vld [vmem:[%s284 + $0xb8] sm:$0xff]
      %v320 = vld [vmem:[%s284 + $0xc0] sm:$0xff]
      %v321 = vld [vmem:[%s284 + $0xc8] sm:$0xff]
      %v322 = vld [vmem:[%s284 + $0xd0] sm:$0xff]
      %v323 = vld [vmem:[%s284 + $0xd8] sm:$0xff]
      %v324 = vld [vmem:[%s284 + $0xe0] sm:$0xff]
      %v325 = vld [vmem:[%s284 + $0xe8] sm:$0xff]
      %v326 = vld [vmem:[%s284 + $0xf0] sm:$0xff]
      %v327 = vld [vmem:[%s284 + $0xf8] sm:$0xff]
      %v328 = vld [vmem:[%s1] sm:$0xf]
      %vm329 = vcmask 31744
      %v331 = vsel %vm329, %v296, 0
      %v334 = vsel %vm329, %v297, 0
      %v337 = vsel %vm329, %v298, 0
      %v340 = vsel %vm329, %v299, 0
      %v343 = vsel %vm329, %v300, 0
      %v346 = vsel %vm329, %v301, 0
      %v349 = vsel %vm329, %v302, 0
      %v352 = vsel %vm329, %v303, 0
      %v355 = vsel %vm329, %v304, 0
      %v358 = vsel %vm329, %v305, 0
      %v361 = vsel %vm329, %v306, 0
      %v364 = vsel %vm329, %v307, 0
      %v367 = vsel %vm329, %v308, 0
      %v370 = vsel %vm329, %v309, 0
      %v373 = vsel %vm329, %v310, 0
      %v376 = vsel %vm329, %v311, 0
      %v379 = vsel %vm329, %v312, 0
      %v382 = vsel %vm329, %v313, 0
      %v385 = vsel %vm329, %v314, 0
      %v388 = vsel %vm329, %v315, 0
      %v391 = vsel %vm329, %v316, 0
      %v394 = vsel %vm329, %v317, 0
      %v397 = vsel %vm329, %v318, 0
      %v400 = vsel %vm329, %v319, 0
      %v403 = vsel %vm329, %v320, 0
      %v406 = vsel %vm329, %v321, 0
      %v409 = vsel %vm329, %v322, 0
      %v412 = vsel %vm329, %v323, 0
      %v415 = vsel %vm329, %v324, 0
      %v418 = vsel %vm329, %v325, 0
      %v421 = vsel %vm329, %v326, 0
      %v424 = vsel %vm329, %v327, 0
      %vm426 = vcmask 1043456
      %v428 = vsel %vm426, %v328, 0
      %430 = vmatpush.msra.mxu0 0.0
      %431 = vmatpush.msra.mxu0 0.0
      %432 = vmatpush.msra.mxu0 0.0
      %433 = vmatpush.msra.mxu0 0.0
      %434 = vmatpush.msra.mxu0 0.0
      %435 = vmatpush.msra.mxu0 0.0
      %436 = vmatpush.msra.mxu0 0.0
      %437 = vmatpush.msra.mxu0 0.0
      %438 = vmatpush.msra.mxu0 0.0
      %439 = vmatpush.msra.mxu0 0.0
      %440 = vmatpush.msra.mxu0 0.0
      %441 = vmatpush.msra.mxu0 0.0
      %442 = vmatpush.msra.mxu0 0.0
      %443 = vmatpush.msra.mxu0 0.0
      %444 = vmatpush.msra.mxu0 0.0
      %445 = vmatpush.msra.mxu0 %v428
      %446 = vmatmul.f32.gmra.mxu0 %v331
      %v447 = vpop.f32.mrf.mxu0
      %v448 = vadd.f32 0.0, %v447
      %449 = vmatmul.f32.gmra.mxu0 %v334
      %v450 = vpop.f32.mrf.mxu0
      %v451 = vadd.f32 0.0, %v450
      %452 = vmatmul.f32.gmra.mxu0 %v337
      %v453 = vpop.f32.mrf.mxu0
      %v454 = vadd.f32 0.0, %v453
      %455 = vmatmul.f32.gmra.mxu0 %v340
      %v456 = vpop.f32.mrf.mxu0
      %v457 = vadd.f32 0.0, %v456
      %458 = vmatmul.f32.gmra.mxu0 %v343
      %v459 = vpop.f32.mrf.mxu0
      %v460 = vadd.f32 0.0, %v459
      %461 = vmatmul.f32.gmra.mxu0 %v346
      %v462 = vpop.f32.mrf.mxu0
      %v463 = vadd.f32 0.0, %v462
      %464 = vmatmul.f32.gmra.mxu0 %v349
      %v465 = vpop.f32.mrf.mxu0
      %v466 = vadd.f32 0.0, %v465
      %467 = vmatmul.f32.gmra.mxu0 %v352
      %v468 = vpop.f32.mrf.mxu0
      %v469 = vadd.f32 0.0, %v468
      %470 = vmatmul.f32.gmra.mxu0 %v355
      %v471 = vpop.f32.mrf.mxu0
      %v472 = vadd.f32 0.0, %v471
      %473 = vmatmul.f32.gmra.mxu0 %v358
      %v474 = vpop.f32.mrf.mxu0
      %v475 = vadd.f32 0.0, %v474
      %476 = vmatmul.f32.gmra.mxu0 %v361
      %v477 = vpop.f32.mrf.mxu0
      %v478 = vadd.f32 0.0, %v477
      %479 = vmatmul.f32.gmra.mxu0 %v364
      %v480 = vpop.f32.mrf.mxu0
      %v481 = vadd.f32 0.0, %v480
      %482 = vmatmul.f32.gmra.mxu0 %v367
      %v483 = vpop.f32.mrf.mxu0
      %v484 = vadd.f32 0.0, %v483
      %485 = vmatmul.f32.gmra.mxu0 %v370
      %v486 = vpop.f32.mrf.mxu0
      %v487 = vadd.f32 0.0, %v486
      %488 = vmatmul.f32.gmra.mxu0 %v373
      %v489 = vpop.f32.mrf.mxu0
      %v490 = vadd.f32 0.0, %v489
      %491 = vmatmul.f32.gmra.mxu0 %v376
      %v492 = vpop.f32.mrf.mxu0
      %v493 = vadd.f32 0.0, %v492
      %494 = vmatmul.f32.gmra.mxu0 %v379
      %v495 = vpop.f32.mrf.mxu0
      %v496 = vadd.f32 0.0, %v495
      %497 = vmatmul.f32.gmra.mxu0 %v382
      %v498 = vpop.f32.mrf.mxu0
      %v499 = vadd.f32 0.0, %v498
      %500 = vmatmul.f32.gmra.mxu0 %v385
      %v501 = vpop.f32.mrf.mxu0
      %v502 = vadd.f32 0.0, %v501
      %503 = vmatmul.f32.gmra.mxu0 %v388
      %v504 = vpop.f32.mrf.mxu0
      %v505 = vadd.f32 0.0, %v504
      %506 = vmatmul.f32.gmra.mxu0 %v391
      %v507 = vpop.f32.mrf.mxu0
      %v508 = vadd.f32 0.0, %v507
      %509 = vmatmul.f32.gmra.mxu0 %v394
      %v510 = vpop.f32.mrf.mxu0
      %v511 = vadd.f32 0.0, %v510
      %512 = vmatmul.f32.gmra.mxu0 %v397
      %v513 = vpop.f32.mrf.mxu0
      %v514 = vadd.f32 0.0, %v513
      %515 = vmatmul.f32.gmra.mxu0 %v400
      %v516 = vpop.f32.mrf.mxu0
      %v517 = vadd.f32 0.0, %v516
      %518 = vmatmul.f32.gmra.mxu0 %v403
      %v519 = vpop.f32.mrf.mxu0
      %v520 = vadd.f32 0.0, %v519
      %521 = vmatmul.f32.gmra.mxu0 %v406
      %v522 = vpop.f32.mrf.mxu0
      %v523 = vadd.f32 0.0, %v522
      %524 = vmatmul.f32.gmra.mxu0 %v409
      %v525 = vpop.f32.mrf.mxu0
      %v526 = vadd.f32 0.0, %v525
      %527 = vmatmul.f32.gmra.mxu0 %v412
      %v528 = vpop.f32.mrf.mxu0
      %v529 = vadd.f32 0.0, %v528
      %530 = vmatmul.f32.gmra.mxu0 %v415
      %v531 = vpop.f32.mrf.mxu0
      %v532 = vadd.f32 0.0, %v531
      %533 = vmatmul.f32.gmra.mxu0 %v418
      %v534 = vpop.f32.mrf.mxu0
      %v535 = vadd.f32 0.0, %v534
      %536 = vmatmul.f32.gmra.mxu0 %v421
      %v537 = vpop.f32.mrf.mxu0
      %v538 = vadd.f32 0.0, %v537
      %539 = vmatmul.f32.gmra.mxu0 %v424
      %v540 = vpop.f32.mrf.mxu0
      %v541 = vadd.f32 0.0, %v540
      %542 = vdwg.mxu0
      %v543 = vld [vmem:[%s2] sm:$0x1]
      %v545 = vperm.slane %v543, 0
      %v547 = vmul.f32 %v448, %v545
      %v548 = vmul.f32 %v451, %v545
      %v549 = vmul.f32 %v454, %v545
      %v550 = vmul.f32 %v457, %v545
      %v551 = vmul.f32 %v460, %v545
      %v552 = vmul.f32 %v463, %v545
      %v553 = vmul.f32 %v466, %v545
      %v554 = vmul.f32 %v469, %v545
      %v555 = vmul.f32 %v472, %v545
      %v556 = vmul.f32 %v475, %v545
      %v557 = vmul.f32 %v478, %v545
      %v558 = vmul.f32 %v481, %v545
      %v559 = vmul.f32 %v484, %v545
      %v560 = vmul.f32 %v487, %v545
      %v561 = vmul.f32 %v490, %v545
      %v562 = vmul.f32 %v493, %v545
      %v563 = vmul.f32 %v496, %v545
      %v564 = vmul.f32 %v499, %v545
      %v565 = vmul.f32 %v502, %v545
      %v566 = vmul.f32 %v505, %v545
      %v567 = vmul.f32 %v508, %v545
      %v568 = vmul.f32 %v511, %v545
      %v569 = vmul.f32 %v514, %v545
      %v570 = vmul.f32 %v517, %v545
      %v571 = vmul.f32 %v520, %v545
      %v572 = vmul.f32 %v523, %v545
      %v573 = vmul.f32 %v526, %v545
      %v574 = vmul.f32 %v529, %v545
      %v575 = vmul.f32 %v532, %v545
      %v576 = vmul.f32 %v535, %v545
      %v577 = vmul.f32 %v538, %v545
      %v578 = vmul.f32 %v541, %v545
      %v579 = vld [vmem:[%s3] sm:$0x1]
      %v581 = vperm.slane %v579, 0
      %v583 = vadd.f32 %v547, %v581
      %v584 = vadd.f32 %v548, %v581
      %v585 = vadd.f32 %v549, %v581
      %v586 = vadd.f32 %v550, %v581
      %v587 = vadd.f32 %v551, %v581
      %v588 = vadd.f32 %v552, %v581
      %v589 = vadd.f32 %v553, %v581
      %v590 = vadd.f32 %v554, %v581
      %v591 = vadd.f32 %v555, %v581
      %v592 = vadd.f32 %v556, %v581
      %v593 = vadd.f32 %v557, %v581
      %v594 = vadd.f32 %v558, %v581
      %v595 = vadd.f32 %v559, %v581
      %v596 = vadd.f32 %v560, %v581
      %v597 = vadd.f32 %v561, %v581
      %v598 = vadd.f32 %v562, %v581
      %v599 = vadd.f32 %v563, %v581
      %v600 = vadd.f32 %v564, %v581
      %v601 = vadd.f32 %v565, %v581
      %v602 = vadd.f32 %v566, %v581
      %v603 = vadd.f32 %v567, %v581
      %v604 = vadd.f32 %v568, %v581
      %v605 = vadd.f32 %v569, %v581
      %v606 = vadd.f32 %v570, %v581
      %v607 = vadd.f32 %v571, %v581
      %v608 = vadd.f32 %v572, %v581
      %v609 = vadd.f32 %v573, %v581
      %v610 = vadd.f32 %v574, %v581
      %v611 = vadd.f32 %v575, %v581
      %v612 = vadd.f32 %v576, %v581
      %v613 = vadd.f32 %v577, %v581
      %v614 = vadd.f32 %v578, %v581
      %v615 = vmax.f32 %v583, 0.0
      %v616 = vmax.f32 %v584, 0.0
      %v617 = vmax.f32 %v585, 0.0
      %v618 = vmax.f32 %v586, 0.0
      %v619 = vmax.f32 %v587, 0.0
      %v620 = vmax.f32 %v588, 0.0
      %v621 = vmax.f32 %v589, 0.0
      %v622 = vmax.f32 %v590, 0.0
      %v623 = vmax.f32 %v591, 0.0
      %v624 = vmax.f32 %v592, 0.0
      %v625 = vmax.f32 %v593, 0.0
      %v626 = vmax.f32 %v594, 0.0
      %v627 = vmax.f32 %v595, 0.0
      %v628 = vmax.f32 %v596, 0.0
      %v629 = vmax.f32 %v597, 0.0
      %v630 = vmax.f32 %v598, 0.0
      %v631 = vmax.f32 %v599, 0.0
      %v632 = vmax.f32 %v600, 0.0
      %v633 = vmax.f32 %v601, 0.0
      %v634 = vmax.f32 %v602, 0.0
      %v635 = vmax.f32 %v603, 0.0
      %v636 = vmax.f32 %v604, 0.0
      %v637 = vmax.f32 %v605, 0.0
      %v638 = vmax.f32 %v606, 0.0
      %v639 = vmax.f32 %v607, 0.0
      %v640 = vmax.f32 %v608, 0.0
      %v641 = vmax.f32 %v609, 0.0
      %v642 = vmax.f32 %v610, 0.0
      %v643 = vmax.f32 %v611, 0.0
      %v644 = vmax.f32 %v612, 0.0
      %v645 = vmax.f32 %v613, 0.0
      %v646 = vmax.f32 %v614, 0.0
      %v647 = vmin.f32 %v615, 6.0
      %v648 = vmin.f32 %v616, 6.0
      %v649 = vmin.f32 %v617, 6.0
      %v650 = vmin.f32 %v618, 6.0
      %v651 = vmin.f32 %v619, 6.0
      %v652 = vmin.f32 %v620, 6.0
      %v653 = vmin.f32 %v621, 6.0
      %v654 = vmin.f32 %v622, 6.0
      %v655 = vmin.f32 %v623, 6.0
      %v656 = vmin.f32 %v624, 6.0
      %v657 = vmin.f32 %v625, 6.0
      %v658 = vmin.f32 %v626, 6.0
      %v659 = vmin.f32 %v627, 6.0
      %v660 = vmin.f32 %v628, 6.0
      %v661 = vmin.f32 %v629, 6.0
      %v662 = vmin.f32 %v630, 6.0
      %v663 = vmin.f32 %v631, 6.0
      %v664 = vmin.f32 %v632, 6.0
      %v665 = vmin.f32 %v633, 6.0
      %v666 = vmin.f32 %v634, 6.0
      %v667 = vmin.f32 %v635, 6.0
      %v668 = vmin.f32 %v636, 6.0
      %v669 = vmin.f32 %v637, 6.0
      %v670 = vmin.f32 %v638, 6.0
      %v671 = vmin.f32 %v639, 6.0
      %v672 = vmin.f32 %v640, 6.0
      %v673 = vmin.f32 %v641, 6.0
      %v674 = vmin.f32 %v642, 6.0
      %v675 = vmin.f32 %v643, 6.0
      %v676 = vmin.f32 %v644, 6.0
      %v677 = vmin.f32 %v645, 6.0
      %v678 = vmin.f32 %v646, 6.0
      %679 = vst [vmem:[#allocation2] sm:$0x1] 0.0
      %680 = vst [vmem:[#allocation2 + $0x18] sm:$0x1] 0.0
      %681 = vst [vmem:[#allocation2 + $0x30] sm:$0x1] 0.0
      %682 = vst [vmem:[#allocation2 + $0x48] sm:$0x1] 0.0
      %683 = vst [vmem:[#allocation2 + $0x60] sm:$0x1] 0.0
      %684 = vst [vmem:[#allocation2 + $0x78] sm:$0x1] 0.0
      %685 = vst [vmem:[#allocation2 + $0x90] sm:$0x1] 0.0
      %686 = vst [vmem:[#allocation2 + $0xa8] sm:$0x1] 0.0
      %687 = vst [vmem:[#allocation2 + $0xc0] sm:$0x1] 0.0
      %688 = vst [vmem:[#allocation2 + $0xd8] sm:$0x1] 0.0
      %689 = vst [vmem:[#allocation2 + $0xf0] sm:$0x1] 0.0
      %690 = vst [vmem:[#allocation2 + $0x108] sm:$0x1] 0.0
      %691 = vst [vmem:[#allocation2 + $0x120] sm:$0x1] 0.0
      %692 = vst [vmem:[#allocation2 + $0x138] sm:$0x1] 0.0
      %693 = vst [vmem:[#allocation2 + $0x150] sm:$0x1] 0.0
      %694 = vst [vmem:[#allocation2 + $0x168] sm:$0x1] 0.0
      %695 = vst [vmem:[#allocation2 + $0x11] sm:$0x1] 0.0
      %696 = vst [vmem:[#allocation2 + $0x29] sm:$0x1] 0.0
      %697 = vst [vmem:[#allocation2 + $0x41] sm:$0x1] 0.0
      %698 = vst [vmem:[#allocation2 + $0x59] sm:$0x1] 0.0
      %699 = vst [vmem:[#allocation2 + $0x71] sm:$0x1] 0.0
      %700 = vst [vmem:[#allocation2 + $0x89] sm:$0x1] 0.0
      %701 = vst [vmem:[#allocation2 + $0xa1] sm:$0x1] 0.0
      %702 = vst [vmem:[#allocation2 + $0xb9] sm:$0x1] 0.0
      %703 = vst [vmem:[#allocation2 + $0xd1] sm:$0x1] 0.0
      %704 = vst [vmem:[#allocation2 + $0xe9] sm:$0x1] 0.0
      %705 = vst [vmem:[#allocation2 + $0x101] sm:$0x1] 0.0
      %706 = vst [vmem:[#allocation2 + $0x119] sm:$0x1] 0.0
      %707 = vst [vmem:[#allocation2 + $0x131] sm:$0x1] 0.0
      %708 = vst [vmem:[#allocation2 + $0x149] sm:$0x1] 0.0
      %709 = vst [vmem:[#allocation2 + $0x161] sm:$0x1] 0.0
      %710 = vst [vmem:[#allocation2 + $0x179] sm:$0x1] 0.0
      %711 = vst [vmem:[#allocation2 + $0x1] sm:$0xff] %v647
      %712 = vst [vmem:[#allocation2 + $0x9] sm:$0xff] %v648
      %713 = vst [vmem:[#allocation2 + $0x19] sm:$0xff] %v649
      %714 = vst [vmem:[#allocation2 + $0x21] sm:$0xff] %v650
      %715 = vst [vmem:[#allocation2 + $0x31] sm:$0xff] %v651
      %716 = vst [vmem:[#allocation2 + $0x39] sm:$0xff] %v652
      %717 = vst [vmem:[#allocation2 + $0x49] sm:$0xff] %v653
      %718 = vst [vmem:[#allocation2 + $0x51] sm:$0xff] %v654
      %719 = vst [vmem:[#allocation2 + $0x61] sm:$0xff] %v655
      %720 = vst [vmem:[#allocation2 + $0x69] sm:$0xff] %v656
      %721 = vst [vmem:[#allocation2 + $0x79] sm:$0xff] %v657
      %722 = vst [vmem:[#allocation2 + $0x81] sm:$0xff] %v658
      %723 = vst [vmem:[#allocation2 + $0x91] sm:$0xff] %v659
      %724 = vst [vmem:[#allocation2 + $0x99] sm:$0xff] %v660
      %725 = vst [vmem:[#allocation2 + $0xa9] sm:$0xff] %v661
      %726 = vst [vmem:[#allocation2 + $0xb1] sm:$0xff] %v662
      %727 = vst [vmem:[#allocation2 + $0xc1] sm:$0xff] %v663
      %728 = vst [vmem:[#allocation2 + $0xc9] sm:$0xff] %v664
      %729 = vst [vmem:[#allocation2 + $0xd9] sm:$0xff] %v665
      %730 = vst [vmem:[#allocation2 + $0xe1] sm:$0xff] %v666
      %731 = vst [vmem:[#allocation2 + $0xf1] sm:$0xff] %v667
      %732 = vst [vmem:[#allocation2 + $0xf9] sm:$0xff] %v668
      %733 = vst [vmem:[#allocation2 + $0x109] sm:$0xff] %v669
      %734 = vst [vmem:[#allocation2 + $0x111] sm:$0xff] %v670
      %735 = vst [vmem:[#allocation2 + $0x121] sm:$0xff] %v671
      %736 = vst [vmem:[#allocation2 + $0x129] sm:$0xff] %v672
      %737 = vst [vmem:[#allocation2 + $0x139] sm:$0xff] %v673
      %738 = vst [vmem:[#allocation2 + $0x141] sm:$0xff] %v674
      %739 = vst [vmem:[#allocation2 + $0x151] sm:$0xff] %v675
      %740 = vst [vmem:[#allocation2 + $0x159] sm:$0xff] %v676
      %741 = vst [vmem:[#allocation2 + $0x169] sm:$0xff] %v677
      %742 = vst [vmem:[#allocation2 + $0x171] sm:$0xff] %v678
      %v743 = vld [vmem:[#allocation2] sm:$0xff]
      %v744 = vld [vmem:[#allocation2 + $0x8] sm:$0xff]
      %v745 = vld [vmem:[#allocation2 + $0x18] sm:$0xff]
      %v746 = vld [vmem:[#allocation2 + $0x20] sm:$0xff]
      %v747 = vld [vmem:[#allocation2 + $0x30] sm:$0xff]
      %v748 = vld [vmem:[#allocation2 + $0x38] sm:$0xff]
      %v749 = vld [vmem:[#allocation2 + $0x48] sm:$0xff]
      %v750 = vld [vmem:[#allocation2 + $0x50] sm:$0xff]
      %v751 = vld [vmem:[#allocation2 + $0x60] sm:$0xff]
      %v752 = vld [vmem:[#allocation2 + $0x68] sm:$0xff]
      %v753 = vld [vmem:[#allocation2 + $0x78] sm:$0xff]
      %v754 = vld [vmem:[#allocation2 + $0x80] sm:$0xff]
      %v755 = vld [vmem:[#allocation2 + $0x90] sm:$0xff]
      %v756 = vld [vmem:[#allocation2 + $0x98] sm:$0xff]
      %v757 = vld [vmem:[#allocation2 + $0xa8] sm:$0xff]
      %v758 = vld [vmem:[#allocation2 + $0xb0] sm:$0xff]
      %v759 = vld [vmem:[#allocation2 + $0xc0] sm:$0xff]
      %v760 = vld [vmem:[#allocation2 + $0xc8] sm:$0xff]
      %v761 = vld [vmem:[#allocation2 + $0xd8] sm:$0xff]
      %v762 = vld [vmem:[#allocation2 + $0xe0] sm:$0xff]
      %v763 = vld [vmem:[#allocation2 + $0xf0] sm:$0xff]
      %v764 = vld [vmem:[#allocation2 + $0xf8] sm:$0xff]
      %v765 = vld [vmem:[#allocation2 + $0x108] sm:$0xff]
      %v766 = vld [vmem:[#allocation2 + $0x110] sm:$0xff]
      %v767 = vld [vmem:[#allocation2 + $0x120] sm:$0xff]
      %v768 = vld [vmem:[#allocation2 + $0x128] sm:$0xff]
      %v769 = vld [vmem:[#allocation2 + $0x138] sm:$0xff]
      %v770 = vld [vmem:[#allocation2 + $0x140] sm:$0xff]
      %v771 = vld [vmem:[#allocation2 + $0x150] sm:$0xff]
      %v772 = vld [vmem:[#allocation2 + $0x158] sm:$0xff]
      %v773 = vld [vmem:[#allocation2 + $0x168] sm:$0xff]
      %v774 = vld [vmem:[#allocation2 + $0x170] sm:$0xff]
      %v775 = vld [vmem:[#allocation2 + $0x1] sm:$0xff]
      %v776 = vld [vmem:[#allocation2 + $0x9] sm:$0xff]
      %v777 = vld [vmem:[#allocation2 + $0x19] sm:$0xff]
      %v778 = vld [vmem:[#allocation2 + $0x21] sm:$0xff]
      %v779 = vld [vmem:[#allocation2 + $0x31] sm:$0xff]
      %v780 = vld [vmem:[#allocation2 + $0x39] sm:$0xff]
      %v781 = vld [vmem:[#allocation2 + $0x49] sm:$0xff]
      %v782 = vld [vmem:[#allocation2 + $0x51] sm:$0xff]
      %v783 = vld [vmem:[#allocation2 + $0x61] sm:$0xff]
      %v784 = vld [vmem:[#allocation2 + $0x69] sm:$0xff]
      %v785 = vld [vmem:[#allocation2 + $0x79] sm:$0xff]
      %v786 = vld [vmem:[#allocation2 + $0x81] sm:$0xff]
      %v787 = vld [vmem:[#allocation2 + $0x91] sm:$0xff]
      %v788 = vld [vmem:[#allocation2 + $0x99] sm:$0xff]
      %v789 = vld [vmem:[#allocation2 + $0xa9] sm:$0xff]
      %v790 = vld [vmem:[#allocation2 + $0xb1] sm:$0xff]
      %v791 = vld [vmem:[#allocation2 + $0xc1] sm:$0xff]
      %v792 = vld [vmem:[#allocation2 + $0xc9] sm:$0xff]
      %v793 = vld [vmem:[#allocation2 + $0xd9] sm:$0xff]
      %v794 = vld [vmem:[#allocation2 + $0xe1] sm:$0xff]
      %v795 = vld [vmem:[#allocation2 + $0xf1] sm:$0xff]
      %v796 = vld [vmem:[#allocation2 + $0xf9] sm:$0xff]
      %v797 = vld [vmem:[#allocation2 + $0x109] sm:$0xff]
      %v798 = vld [vmem:[#allocation2 + $0x111] sm:$0xff]
      %v799 = vld [vmem:[#allocation2 + $0x121] sm:$0xff]
      %v800 = vld [vmem:[#allocation2 + $0x129] sm:$0xff]
      %v801 = vld [vmem:[#allocation2 + $0x139] sm:$0xff]
      %v802 = vld [vmem:[#allocation2 + $0x141] sm:$0xff]
      %v803 = vld [vmem:[#allocation2 + $0x151] sm:$0xff]
      %v804 = vld [vmem:[#allocation2 + $0x159] sm:$0xff]
      %v805 = vld [vmem:[#allocation2 + $0x169] sm:$0xff]
      %v806 = vld [vmem:[#allocation2 + $0x171] sm:$0xff]
      %v807 = vld [vmem:[#allocation2 + $0x2] sm:$0xff]
      %v808 = vld [vmem:[#allocation2 + $0xa] sm:$0xff]
      %v809 = vld [vmem:[#allocation2 + $0x1a] sm:$0xff]
      %v810 = vld [vmem:[#allocation2 + $0x22] sm:$0xff]
      %v811 = vld [vmem:[#allocation2 + $0x32] sm:$0xff]
      %v812 = vld [vmem:[#allocation2 + $0x3a] sm:$0xff]
      %v813 = vld [vmem:[#allocation2 + $0x4a] sm:$0xff]
      %v814 = vld [vmem:[#allocation2 + $0x52] sm:$0xff]
      %v815 = vld [vmem:[#allocation2 + $0x62] sm:$0xff]
      %v816 = vld [vmem:[#allocation2 + $0x6a] sm:$0xff]
      %v817 = vld [vmem:[#allocation2 + $0x7a] sm:$0xff]
      %v818 = vld [vmem:[#allocation2 + $0x82] sm:$0xff]
      %v819 = vld [vmem:[#allocation2 + $0x92] sm:$0xff]
      %v820 = vld [vmem:[#allocation2 + $0x9a] sm:$0xff]
      %v821 = vld [vmem:[#allocation2 + $0xaa] sm:$0xff]
      %v822 = vld [vmem:[#allocation2 + $0xb2] sm:$0xff]
      %v823 = vld [vmem:[#allocation2 + $0xc2] sm:$0xff]
      %v824 = vld [vmem:[#allocation2 + $0xca] sm:$0xff]
      %v825 = vld [vmem:[#allocation2 + $0xda] sm:$0xff]
      %v826 = vld [vmem:[#allocation2 + $0xe2] sm:$0xff]
      %v827 = vld [vmem:[#allocation2 + $0xf2] sm:$0xff]
      %v828 = vld [vmem:[#allocation2 + $0xfa] sm:$0xff]
      %v829 = vld [vmem:[#allocation2 + $0x10a] sm:$0xff]
      %v830 = vld [vmem:[#allocation2 + $0x112] sm:$0xff]
      %v831 = vld [vmem:[#allocation2 + $0x122] sm:$0xff]
      %v832 = vld [vmem:[#allocation2 + $0x12a] sm:$0xff]
      %v833 = vld [vmem:[#allocation2 + $0x13a] sm:$0xff]
      %v834 = vld [vmem:[#allocation2 + $0x142] sm:$0xff]
      %v835 = vld [vmem:[#allocation2 + $0x152] sm:$0xff]
      %v836 = vld [vmem:[#allocation2 + $0x15a] sm:$0xff]
      %v837 = vld [vmem:[#allocation2 + $0x16a] sm:$0xff]
      %v838 = vld [vmem:[#allocation2 + $0x172] sm:$0xff]
      %v839 = vld [vmem:[%s4] sm:$0x1]
      %v840 = vperm.slane %v839, 0
      %v841 = vmul.f32 %v840, 0.0
      %v842 = vmul.f32 %v743, %v840
      %v843 = vmul.f32 %v744, %v840
      %v844 = vmul.f32 %v745, %v840
      %v845 = vmul.f32 %v746, %v840
      %v846 = vmul.f32 %v747, %v840
      %v847 = vmul.f32 %v748, %v840
      %v848 = vmul.f32 %v749, %v840
      %v849 = vmul.f32 %v750, %v840
      %v850 = vmul.f32 %v751, %v840
      %v851 = vmul.f32 %v752, %v840
      %v852 = vmul.f32 %v753, %v840
      %v853 = vmul.f32 %v754, %v840
      %v854 = vmul.f32 %v755, %v840
      %v855 = vmul.f32 %v756, %v840
      %v856 = vmul.f32 %v757, %v840
      %v857 = vmul.f32 %v758, %v840
      %v858 = vmul.f32 %v759, %v840
      %v859 = vmul.f32 %v760, %v840
      %v860 = vmul.f32 %v761, %v840
      %v861 = vmul.f32 %v762, %v840
      %v862 = vmul.f32 %v763, %v840
      %v863 = vmul.f32 %v764, %v840
      %v864 = vmul.f32 %v765, %v840
      %v865 = vmul.f32 %v766, %v840
      %v866 = vmul.f32 %v767, %v840
      %v867 = vmul.f32 %v768, %v840
      %v868 = vmul.f32 %v769, %v840
      %v869 = vmul.f32 %v770, %v840
      %v870 = vmul.f32 %v771, %v840
      %v871 = vmul.f32 %v772, %v840
      %v872 = vadd.f32 %v841, 0.0
      %v873 = vadd.f32 %v842, 0.0
      %v874 = vadd.f32 %v843, 0.0
      %v875 = vadd.f32 %v844, 0.0
      %v876 = vadd.f32 %v845, 0.0
      %v877 = vadd.f32 %v846, 0.0
      %v878 = vadd.f32 %v847, 0.0
      %v879 = vadd.f32 %v848, 0.0
      %v880 = vadd.f32 %v849, 0.0
      %v881 = vadd.f32 %v850, 0.0
      %v882 = vadd.f32 %v851, 0.0
      %v883 = vadd.f32 %v852, 0.0
      %v884 = vadd.f32 %v853, 0.0
      %v885 = vadd.f32 %v854, 0.0
      %v886 = vadd.f32 %v855, 0.0
      %v887 = vadd.f32 %v856, 0.0
      %v888 = vadd.f32 %v857, 0.0
      %v889 = vadd.f32 %v858, 0.0
      %v890 = vadd.f32 %v859, 0.0
      %v891 = vadd.f32 %v860, 0.0
      %v892 = vadd.f32 %v861, 0.0
      %v893 = vadd.f32 %v862, 0.0
      %v894 = vadd.f32 %v863, 0.0
      %v895 = vadd.f32 %v864, 0.0
      %v896 = vadd.f32 %v865, 0.0
      %v897 = vadd.f32 %v866, 0.0
      %v898 = vadd.f32 %v867, 0.0
      %v899 = vadd.f32 %v868, 0.0
      %v900 = vadd.f32 %v869, 0.0
      %v901 = vadd.f32 %v870, 0.0
      %v902 = vadd.f32 %v871, 0.0
      %v903 = vld [vmem:[%s4 + $0x1] sm:$0x1]
      %v904 = vperm.slane %v903, 0
      %v905 = vmul.f32 %v904, 0.0
      %v906 = vmul.f32 %v775, %v904
      %v907 = vmul.f32 %v776, %v904
      %v908 = vmul.f32 %v777, %v904
      %v909 = vmul.f32 %v778, %v904
      %v910 = vmul.f32 %v779, %v904
      %v911 = vmul.f32 %v780, %v904
      %v912 = vmul.f32 %v781, %v904
      %v913 = vmul.f32 %v782, %v904
      %v914 = vmul.f32 %v783, %v904
      %v915 = vmul.f32 %v784, %v904
      %v916 = vmul.f32 %v785, %v904
      %v917 = vmul.f32 %v786, %v904
      %v918 = vmul.f32 %v787, %v904
      %v919 = vmul.f32 %v788, %v904
      %v920 = vmul.f32 %v789, %v904
      %v921 = vmul.f32 %v790, %v904
      %v922 = vmul.f32 %v791, %v904
      %v923 = vmul.f32 %v792, %v904
      %v924 = vmul.f32 %v793, %v904
      %v925 = vmul.f32 %v794, %v904
      %v926 = vmul.f32 %v795, %v904
      %v927 = vmul.f32 %v796, %v904
      %v928 = vmul.f32 %v797, %v904
      %v929 = vmul.f32 %v798, %v904
      %v930 = vmul.f32 %v799, %v904
      %v931 = vmul.f32 %v800, %v904
      %v932 = vmul.f32 %v801, %v904
      %v933 = vmul.f32 %v802, %v904
      %v934 = vmul.f32 %v803, %v904
      %v935 = vmul.f32 %v804, %v904
      %v936 = vadd.f32 %v872, %v905
      %v937 = vadd.f32 %v873, %v906
      %v938 = vadd.f32 %v874, %v907
      %v939 = vadd.f32 %v875, %v908
      %v940 = vadd.f32 %v876, %v909
      %v941 = vadd.f32 %v877, %v910
      %v942 = vadd.f32 %v878, %v911
      %v943 = vadd.f32 %v879, %v912
      %v944 = vadd.f32 %v880, %v913
      %v945 = vadd.f32 %v881, %v914
      %v946 = vadd.f32 %v882, %v915
      %v947 = vadd.f32 %v883, %v916
      %v948 = vadd.f32 %v884, %v917
      %v949 = vadd.f32 %v885, %v918
      %v950 = vadd.f32 %v886, %v919
      %v951 = vadd.f32 %v887, %v920
      %v952 = vadd.f32 %v888, %v921
      %v953 = vadd.f32 %v889, %v922
      %v954 = vadd.f32 %v890, %v923
      %v955 = vadd.f32 %v891, %v924
      %v956 = vadd.f32 %v892, %v925
      %v957 = vadd.f32 %v893, %v926
      %v958 = vadd.f32 %v894, %v927
      %v959 = vadd.f32 %v895, %v928
      %v960 = vadd.f32 %v896, %v929
      %v961 = vadd.f32 %v897, %v930
      %v962 = vadd.f32 %v898, %v931
      %v963 = vadd.f32 %v899, %v932
      %v964 = vadd.f32 %v900, %v933
      %v965 = vadd.f32 %v901, %v934
      %v966 = vadd.f32 %v902, %v935
      %v967 = vld [vmem:[%s4 + $0x2] sm:$0x1]
      %v968 = vperm.slane %v967, 0
      %v969 = vmul.f32 %v968, 0.0
      %v970 = vmul.f32 %v807, %v968
      %v971 = vmul.f32 %v808, %v968
      %v972 = vmul.f32 %v809, %v968
      %v973 = vmul.f32 %v810, %v968
      %v974 = vmul.f32 %v811, %v968
      %v975 = vmul.f32 %v812, %v968
      %v976 = vmul.f32 %v813, %v968
      %v977 = vmul.f32 %v814, %v968
      %v978 = vmul.f32 %v815, %v968
      %v979 = vmul.f32 %v816, %v968
      %v980 = vmul.f32 %v817, %v968
      %v981 = vmul.f32 %v818, %v968
      %v982 = vmul.f32 %v819, %v968
      %v983 = vmul.f32 %v820, %v968
      %v984 = vmul.f32 %v821, %v968
      %v985 = vmul.f32 %v822, %v968
      %v986 = vmul.f32 %v823, %v968
      %v987 = vmul.f32 %v824, %v968
      %v988 = vmul.f32 %v825, %v968
      %v989 = vmul.f32 %v826, %v968
      %v990 = vmul.f32 %v827, %v968
      %v991 = vmul.f32 %v828, %v968
      %v992 = vmul.f32 %v829, %v968
      %v993 = vmul.f32 %v830, %v968
      %v994 = vmul.f32 %v831, %v968
      %v995 = vmul.f32 %v832, %v968
      %v996 = vmul.f32 %v833, %v968
      %v997 = vmul.f32 %v834, %v968
      %v998 = vmul.f32 %v835, %v968
      %v999 = vmul.f32 %v836, %v968
      %v1000 = vadd.f32 %v936, %v969
      %v1001 = vadd.f32 %v937, %v970
      %v1002 = vadd.f32 %v938, %v971
      %v1003 = vadd.f32 %v939, %v972
      %v1004 = vadd.f32 %v940, %v973
      %v1005 = vadd.f32 %v941, %v974
      %v1006 = vadd.f32 %v942, %v975
      %v1007 = vadd.f32 %v943, %v976
      %v1008 = vadd.f32 %v944, %v977
      %v1009 = vadd.f32 %v945, %v978
      %v1010 = vadd.f32 %v946, %v979
      %v1011 = vadd.f32 %v947, %v980
      %v1012 = vadd.f32 %v948, %v981
      %v1013 = vadd.f32 %v949, %v982
      %v1014 = vadd.f32 %v950, %v983
      %v1015 = vadd.f32 %v951, %v984
      %v1016 = vadd.f32 %v952, %v985
      %v1017 = vadd.f32 %v953, %v986
      %v1018 = vadd.f32 %v954, %v987
      %v1019 = vadd.f32 %v955, %v988
      %v1020 = vadd.f32 %v956, %v989
      %v1021 = vadd.f32 %v957, %v990
      %v1022 = vadd.f32 %v958, %v991
      %v1023 = vadd.f32 %v959, %v992
      %v1024 = vadd.f32 %v960, %v993
      %v1025 = vadd.f32 %v961, %v994
      %v1026 = vadd.f32 %v962, %v995
      %v1027 = vadd.f32 %v963, %v996
      %v1028 = vadd.f32 %v964, %v997
      %v1029 = vadd.f32 %v965, %v998
      %v1030 = vadd.f32 %v966, %v999
      %s1031 = scalar_lea.vmem %s4, 4
      %v1032 = vld [vmem:[%s1031] sm:$0x1]
      %v1033 = vperm.slane %v1032, 0
      %v1034 = vmul.f32 %v743, %v1033
      %v1035 = vmul.f32 %v744, %v1033
      %v1036 = vmul.f32 %v745, %v1033
      %v1037 = vmul.f32 %v746, %v1033
      %v1038 = vmul.f32 %v747, %v1033
      %v1039 = vmul.f32 %v748, %v1033
      %v1040 = vmul.f32 %v749, %v1033
      %v1041 = vmul.f32 %v750, %v1033
      %v1042 = vmul.f32 %v751, %v1033
      %v1043 = vmul.f32 %v752, %v1033
      %v1044 = vmul.f32 %v753, %v1033
      %v1045 = vmul.f32 %v754, %v1033
      %v1046 = vmul.f32 %v755, %v1033
      %v1047 = vmul.f32 %v756, %v1033
      %v1048 = vmul.f32 %v757, %v1033
      %v1049 = vmul.f32 %v758, %v1033
      %v1050 = vmul.f32 %v759, %v1033
      %v1051 = vmul.f32 %v760, %v1033
      %v1052 = vmul.f32 %v761, %v1033
      %v1053 = vmul.f32 %v762, %v1033
      %v1054 = vmul.f32 %v763, %v1033
      %v1055 = vmul.f32 %v764, %v1033
      %v1056 = vmul.f32 %v765, %v1033
      %v1057 = vmul.f32 %v766, %v1033
      %v1058 = vmul.f32 %v767, %v1033
      %v1059 = vmul.f32 %v768, %v1033
      %v1060 = vmul.f32 %v769, %v1033
      %v1061 = vmul.f32 %v770, %v1033
      %v1062 = vmul.f32 %v771, %v1033
      %v1063 = vmul.f32 %v772, %v1033
      %v1064 = vmul.f32 %v773, %v1033
      %v1065 = vmul.f32 %v774, %v1033
      %v1066 = vadd.f32 %v1000, %v1034
      %v1067 = vadd.f32 %v1000, %v1035
      %v1068 = vadd.f32 %v1001, %v1036
      %v1069 = vadd.f32 %v1002, %v1037
      %v1070 = vadd.f32 %v1003, %v1038
      %v1071 = vadd.f32 %v1004, %v1039
      %v1072 = vadd.f32 %v1005, %v1040
      %v1073 = vadd.f32 %v1006, %v1041
      %v1074 = vadd.f32 %v1007, %v1042
      %v1075 = vadd.f32 %v1008, %v1043
      %v1076 = vadd.f32 %v1009, %v1044
      %v1077 = vadd.f32 %v1010, %v1045
      %v1078 = vadd.f32 %v1011, %v1046
      %v1079 = vadd.f32 %v1012, %v1047
      %v1080 = vadd.f32 %v1013, %v1048
      %v1081 = vadd.f32 %v1014, %v1049
      %v1082 = vadd.f32 %v1015, %v1050
      %v1083 = vadd.f32 %v1016, %v1051
      %v1084 = vadd.f32 %v1017, %v1052
      %v1085 = vadd.f32 %v1018, %v1053
      %v1086 = vadd.f32 %v1019, %v1054
      %v1087 = vadd.f32 %v1020, %v1055
      %v1088 = vadd.f32 %v1021, %v1056
      %v1089 = vadd.f32 %v1022, %v1057
      %v1090 = vadd.f32 %v1023, %v1058
      %v1091 = vadd.f32 %v1024, %v1059
      %v1092 = vadd.f32 %v1025, %v1060
      %v1093 = vadd.f32 %v1026, %v1061
      %v1094 = vadd.f32 %v1027, %v1062
      %v1095 = vadd.f32 %v1028, %v1063
      %v1096 = vadd.f32 %v1029, %v1064
      %v1097 = vadd.f32 %v1030, %v1065
      %v1098 = vld [vmem:[%s1031 + $0x1] sm:$0x1]
      %v1099 = vperm.slane %v1098, 0
      %v1100 = vmul.f32 %v775, %v1099
      %v1101 = vmul.f32 %v776, %v1099
      %v1102 = vmul.f32 %v777, %v1099
      %v1103 = vmul.f32 %v778, %v1099
      %v1104 = vmul.f32 %v779, %v1099
      %v1105 = vmul.f32 %v780, %v1099
      %v1106 = vmul.f32 %v781, %v1099
      %v1107 = vmul.f32 %v782, %v1099
      %v1108 = vmul.f32 %v783, %v1099
      %v1109 = vmul.f32 %v784, %v1099
      %v1110 = vmul.f32 %v785, %v1099
      %v1111 = vmul.f32 %v786, %v1099
      %v1112 = vmul.f32 %v787, %v1099
      %v1113 = vmul.f32 %v788, %v1099
      %v1114 = vmul.f32 %v789, %v1099
      %v1115 = vmul.f32 %v790, %v1099
      %v1116 = vmul.f32 %v791, %v1099
      %v1117 = vmul.f32 %v792, %v1099
      %v1118 = vmul.f32 %v793, %v1099
      %v1119 = vmul.f32 %v794, %v1099
      %v1120 = vmul.f32 %v795, %v1099
      %v1121 = vmul.f32 %v796, %v1099
      %v1122 = vmul.f32 %v797, %v1099
      %v1123 = vmul.f32 %v798, %v1099
      %v1124 = vmul.f32 %v799, %v1099
      %v1125 = vmul.f32 %v800, %v1099
      %v1126 = vmul.f32 %v801, %v1099
      %v1127 = vmul.f32 %v802, %v1099
      %v1128 = vmul.f32 %v803, %v1099
      %v1129 = vmul.f32 %v804, %v1099
      %v1130 = vmul.f32 %v805, %v1099
      %v1131 = vmul.f32 %v806, %v1099
      %v1132 = vadd.f32 %v1066, %v1100
      %v1133 = vadd.f32 %v1067, %v1101
      %v1134 = vadd.f32 %v1068, %v1102
      %v1135 = vadd.f32 %v1069, %v1103
      %v1136 = vadd.f32 %v1070, %v1104
      %v1137 = vadd.f32 %v1071, %v1105
      %v1138 = vadd.f32 %v1072, %v1106
      %v1139 = vadd.f32 %v1073, %v1107
      %v1140 = vadd.f32 %v1074, %v1108
      %v1141 = vadd.f32 %v1075, %v1109
      %v1142 = vadd.f32 %v1076, %v1110
      %v1143 = vadd.f32 %v1077, %v1111
      %v1144 = vadd.f32 %v1078, %v1112
      %v1145 = vadd.f32 %v1079, %v1113
      %v1146 = vadd.f32 %v1080, %v1114
      %v1147 = vadd.f32 %v1081, %v1115
      %v1148 = vadd.f32 %v1082, %v1116
      %v1149 = vadd.f32 %v1083, %v1117
      %v1150 = vadd.f32 %v1084, %v1118
      %v1151 = vadd.f32 %v1085, %v1119
      %v1152 = vadd.f32 %v1086, %v1120
      %v1153 = vadd.f32 %v1087, %v1121
      %v1154 = vadd.f32 %v1088, %v1122
      %v1155 = vadd.f32 %v1089, %v1123
      %v1156 = vadd.f32 %v1090, %v1124
      %v1157 = vadd.f32 %v1091, %v1125
      %v1158 = vadd.f32 %v1092, %v1126
      %v1159 = vadd.f32 %v1093, %v1127
      %v1160 = vadd.f32 %v1094, %v1128
      %v1161 = vadd.f32 %v1095, %v1129
      %v1162 = vadd.f32 %v1096, %v1130
      %v1163 = vadd.f32 %v1097, %v1131
      %v1164 = vld [vmem:[%s1031 + $0x2] sm:$0x1]
      %v1165 = vperm.slane %v1164, 0
      %v1166 = vmul.f32 %v807, %v1165
      %v1167 = vmul.f32 %v808, %v1165
      %v1168 = vmul.f32 %v809, %v1165
      %v1169 = vmul.f32 %v810, %v1165
      %v1170 = vmul.f32 %v811, %v1165
      %v1171 = vmul.f32 %v812, %v1165
      %v1172 = vmul.f32 %v813, %v1165
      %v1173 = vmul.f32 %v814, %v1165
      %v1174 = vmul.f32 %v815, %v1165
      %v1175 = vmul.f32 %v816, %v1165
      %v1176 = vmul.f32 %v817, %v1165
      %v1177 = vmul.f32 %v818, %v1165
      %v1178 = vmul.f32 %v819, %v1165
      %v1179 = vmul.f32 %v820, %v1165
      %v1180 = vmul.f32 %v821, %v1165
      %v1181 = vmul.f32 %v822, %v1165
      %v1182 = vmul.f32 %v823, %v1165
      %v1183 = vmul.f32 %v824, %v1165
      %v1184 = vmul.f32 %v825, %v1165
      %v1185 = vmul.f32 %v826, %v1165
      %v1186 = vmul.f32 %v827, %v1165
      %v1187 = vmul.f32 %v828, %v1165
      %v1188 = vmul.f32 %v829, %v1165
      %v1189 = vmul.f32 %v830, %v1165
      %v1190 = vmul.f32 %v831, %v1165
      %v1191 = vmul.f32 %v832, %v1165
      %v1192 = vmul.f32 %v833, %v1165
      %v1193 = vmul.f32 %v834, %v1165
      %v1194 = vmul.f32 %v835, %v1165
      %v1195 = vmul.f32 %v836, %v1165
      %v1196 = vmul.f32 %v837, %v1165
      %v1197 = vmul.f32 %v838, %v1165
      %v1198 = vadd.f32 %v1132, %v1166
      %v1199 = vadd.f32 %v1133, %v1167
      %v1200 = vadd.f32 %v1134, %v1168
      %v1201 = vadd.f32 %v1135, %v1169
      %v1202 = vadd.f32 %v1136, %v1170
      %v1203 = vadd.f32 %v1137, %v1171
      %v1204 = vadd.f32 %v1138, %v1172
      %v1205 = vadd.f32 %v1139, %v1173
      %v1206 = vadd.f32 %v1140, %v1174
      %v1207 = vadd.f32 %v1141, %v1175
      %v1208 = vadd.f32 %v1142, %v1176
      %v1209 = vadd.f32 %v1143, %v1177
      %v1210 = vadd.f32 %v1144, %v1178
      %v1211 = vadd.f32 %v1145, %v1179
      %v1212 = vadd.f32 %v1146, %v1180
      %v1213 = vadd.f32 %v1147, %v1181
      %v1214 = vadd.f32 %v1148, %v1182
      %v1215 = vadd.f32 %v1149, %v1183
      %v1216 = vadd.f32 %v1150, %v1184
      %v1217 = vadd.f32 %v1151, %v1185
      %v1218 = vadd.f32 %v1152, %v1186
      %v1219 = vadd.f32 %v1153, %v1187
      %v1220 = vadd.f32 %v1154, %v1188
      %v1221 = vadd.f32 %v1155, %v1189
      %v1222 = vadd.f32 %v1156, %v1190
      %v1223 = vadd.f32 %v1157, %v1191
      %v1224 = vadd.f32 %v1158, %v1192
      %v1225 = vadd.f32 %v1159, %v1193
      %v1226 = vadd.f32 %v1160, %v1194
      %v1227 = vadd.f32 %v1161, %v1195
      %v1228 = vadd.f32 %v1162, %v1196
      %v1229 = vadd.f32 %v1163, %v1197
      %s1230 = scalar_lea.vmem %s4, 8
      %v1231 = vld [vmem:[%s1230] sm:$0x1]
      %v1232 = vperm.slane %v1231, 0
      %v1233 = vmul.f32 %v745, %v1232
      %v1234 = vmul.f32 %v746, %v1232
      %v1235 = vmul.f32 %v747, %v1232
      %v1236 = vmul.f32 %v748, %v1232
      %v1237 = vmul.f32 %v749, %v1232
      %v1238 = vmul.f32 %v750, %v1232
      %v1239 = vmul.f32 %v751, %v1232
      %v1240 = vmul.f32 %v752, %v1232
      %v1241 = vmul.f32 %v753, %v1232
      %v1242 = vmul.f32 %v754, %v1232
      %v1243 = vmul.f32 %v755, %v1232
      %v1244 = vmul.f32 %v756, %v1232
      %v1245 = vmul.f32 %v757, %v1232
      %v1246 = vmul.f32 %v758, %v1232
      %v1247 = vmul.f32 %v759, %v1232
      %v1248 = vmul.f32 %v760, %v1232
      %v1249 = vmul.f32 %v761, %v1232
      %v1250 = vmul.f32 %v762, %v1232
      %v1251 = vmul.f32 %v763, %v1232
      %v1252 = vmul.f32 %v764, %v1232
      %v1253 = vmul.f32 %v765, %v1232
      %v1254 = vmul.f32 %v766, %v1232
      %v1255 = vmul.f32 %v767, %v1232
      %v1256 = vmul.f32 %v768, %v1232
      %v1257 = vmul.f32 %v769, %v1232
      %v1258 = vmul.f32 %v770, %v1232
      %v1259 = vmul.f32 %v771, %v1232
      %v1260 = vmul.f32 %v772, %v1232
      %v1261 = vmul.f32 %v773, %v1232
      %v1262 = vmul.f32 %v774, %v1232
      %v1263 = vmul.f32 %v1232, 0.0
      %v1264 = vadd.f32 %v1198, %v1233
      %v1265 = vadd.f32 %v1199, %v1234
      %v1266 = vadd.f32 %v1200, %v1235
      %v1267 = vadd.f32 %v1201, %v1236
      %v1268 = vadd.f32 %v1202, %v1237
      %v1269 = vadd.f32 %v1203, %v1238
      %v1270 = vadd.f32 %v1204, %v1239
      %v1271 = vadd.f32 %v1205, %v1240
      %v1272 = vadd.f32 %v1206, %v1241
      %v1273 = vadd.f32 %v1207, %v1242
      %v1274 = vadd.f32 %v1208, %v1243
      %v1275 = vadd.f32 %v1209, %v1244
      %v1276 = vadd.f32 %v1210, %v1245
      %v1277 = vadd.f32 %v1211, %v1246
      %v1278 = vadd.f32 %v1212, %v1247
      %v1279 = vadd.f32 %v1213, %v1248
      %v1280 = vadd.f32 %v1214, %v1249
      %v1281 = vadd.f32 %v1215, %v1250
      %v1282 = vadd.f32 %v1216, %v1251
      %v1283 = vadd.f32 %v1217, %v1252
      %v1284 = vadd.f32 %v1218, %v1253
      %v1285 = vadd.f32 %v1219, %v1254
      %v1286 = vadd.f32 %v1220, %v1255
      %v1287 = vadd.f32 %v1221, %v1256
      %v1288 = vadd.f32 %v1222, %v1257
      %v1289 = vadd.f32 %v1223, %v1258
      %v1290 = vadd.f32 %v1224, %v1259
      %v1291 = vadd.f32 %v1225, %v1260
      %v1292 = vadd.f32 %v1226, %v1261
      %v1293 = vadd.f32 %v1227, %v1262
      %v1294 = vadd.f32 %v1228, %v1263
      %v1295 = vadd.f32 %v1229, %v1263
      %v1296 = vld [vmem:[%s1230 + $0x1] sm:$0x1]
      %v1297 = vperm.slane %v1296, 0
      %v1298 = vmul.f32 %v777, %v1297
      %v1299 = vmul.f32 %v778, %v1297
      %v1300 = vmul.f32 %v779, %v1297
      %v1301 = vmul.f32 %v780, %v1297
      %v1302 = vmul.f32 %v781, %v1297
      %v1303 = vmul.f32 %v782, %v1297
      %v1304 = vmul.f32 %v783, %v1297
      %v1305 = vmul.f32 %v784, %v1297
      %v1306 = vmul.f32 %v785, %v1297
      %v1307 = vmul.f32 %v786, %v1297
      %v1308 = vmul.f32 %v787, %v1297
      %v1309 = vmul.f32 %v788, %v1297
      %v1310 = vmul.f32 %v789, %v1297
      %v1311 = vmul.f32 %v790, %v1297
      %v1312 = vmul.f32 %v791, %v1297
      %v1313 = vmul.f32 %v792, %v1297
      %v1314 = vmul.f32 %v793, %v1297
      %v1315 = vmul.f32 %v794, %v1297
      %v1316 = vmul.f32 %v795, %v1297
      %v1317 = vmul.f32 %v796, %v1297
      %v1318 = vmul.f32 %v797, %v1297
      %v1319 = vmul.f32 %v798, %v1297
      %v1320 = vmul.f32 %v799, %v1297
      %v1321 = vmul.f32 %v800, %v1297
      %v1322 = vmul.f32 %v801, %v1297
      %v1323 = vmul.f32 %v802, %v1297
      %v1324 = vmul.f32 %v803, %v1297
      %v1325 = vmul.f32 %v804, %v1297
      %v1326 = vmul.f32 %v805, %v1297
      %v1327 = vmul.f32 %v806, %v1297
      %v1328 = vmul.f32 %v1297, 0.0
      %v1329 = vadd.f32 %v1264, %v1298
      %v1330 = vadd.f32 %v1265, %v1299
      %v1331 = vadd.f32 %v1266, %v1300
      %v1332 = vadd.f32 %v1267, %v1301
      %v1333 = vadd.f32 %v1268, %v1302
      %v1334 = vadd.f32 %v1269, %v1303
      %v1335 = vadd.f32 %v1270, %v1304
      %v1336 = vadd.f32 %v1271, %v1305
      %v1337 = vadd.f32 %v1272, %v1306
      %v1338 = vadd.f32 %v1273, %v1307
      %v1339 = vadd.f32 %v1274, %v1308
      %v1340 = vadd.f32 %v1275, %v1309
      %v1341 = vadd.f32 %v1276, %v1310
      %v1342 = vadd.f32 %v1277, %v1311
      %v1343 = vadd.f32 %v1278, %v1312
      %v1344 = vadd.f32 %v1279, %v1313
      %v1345 = vadd.f32 %v1280, %v1314
      %v1346 = vadd.f32 %v1281, %v1315
      %v1347 = vadd.f32 %v1282, %v1316
      %v1348 = vadd.f32 %v1283, %v1317
      %v1349 = vadd.f32 %v1284, %v1318
      %v1350 = vadd.f32 %v1285, %v1319
      %v1351 = vadd.f32 %v1286, %v1320
      %v1352 = vadd.f32 %v1287, %v1321
      %v1353 = vadd.f32 %v1288, %v1322
      %v1354 = vadd.f32 %v1289, %v1323
      %v1355 = vadd.f32 %v1290, %v1324
      %v1356 = vadd.f32 %v1291, %v1325
      %v1357 = vadd.f32 %v1292, %v1326
      %v1358 = vadd.f32 %v1293, %v1327
      %v1359 = vadd.f32 %v1294, %v1328
      %v1360 = vadd.f32 %v1295, %v1328
      %v1361 = vld [vmem:[%s1230 + $0x2] sm:$0x1]
      %v1362 = vperm.slane %v1361, 0
      %v1363 = vmul.f32 %v809, %v1362
      %v1364 = vmul.f32 %v810, %v1362
      %v1365 = vmul.f32 %v811, %v1362
      %v1366 = vmul.f32 %v812, %v1362
      %v1367 = vmul.f32 %v813, %v1362
      %v1368 = vmul.f32 %v814, %v1362
      %v1369 = vmul.f32 %v815, %v1362
      %v1370 = vmul.f32 %v816, %v1362
      %v1371 = vmul.f32 %v817, %v1362
      %v1372 = vmul.f32 %v818, %v1362
      %v1373 = vmul.f32 %v819, %v1362
      %v1374 = vmul.f32 %v820, %v1362
      %v1375 = vmul.f32 %v821, %v1362
      %v1376 = vmul.f32 %v822, %v1362
      %v1377 = vmul.f32 %v823, %v1362
      %v1378 = vmul.f32 %v824, %v1362
      %v1379 = vmul.f32 %v825, %v1362
      %v1380 = vmul.f32 %v826, %v1362
      %v1381 = vmul.f32 %v827, %v1362
      %v1382 = vmul.f32 %v828, %v1362
      %v1383 = vmul.f32 %v829, %v1362
      %v1384 = vmul.f32 %v830, %v1362
      %v1385 = vmul.f32 %v831, %v1362
      %v1386 = vmul.f32 %v832, %v1362
      %v1387 = vmul.f32 %v833, %v1362
      %v1388 = vmul.f32 %v834, %v1362
      %v1389 = vmul.f32 %v835, %v1362
      %v1390 = vmul.f32 %v836, %v1362
      %v1391 = vmul.f32 %v837, %v1362
      %v1392 = vmul.f32 %v838, %v1362
      %v1393 = vmul.f32 %v1362, 0.0
      %v1394 = vadd.f32 %v1329, %v1363
      %v1395 = vadd.f32 %v1330, %v1364
      %v1396 = vadd.f32 %v1331, %v1365
      %v1397 = vadd.f32 %v1332, %v1366
      %v1398 = vadd.f32 %v1333, %v1367
      %v1399 = vadd.f32 %v1334, %v1368
      %v1400 = vadd.f32 %v1335, %v1369
      %v1401 = vadd.f32 %v1336, %v1370
      %v1402 = vadd.f32 %v1337, %v1371
      %v1403 = vadd.f32 %v1338, %v1372
      %v1404 = vadd.f32 %v1339, %v1373
      %v1405 = vadd.f32 %v1340, %v1374
      %v1406 = vadd.f32 %v1341, %v1375
      %v1407 = vadd.f32 %v1342, %v1376
      %v1408 = vadd.f32 %v1343, %v1377
      %v1409 = vadd.f32 %v1344, %v1378
      %v1410 = vadd.f32 %v1345, %v1379
      %v1411 = vadd.f32 %v1346, %v1380
      %v1412 = vadd.f32 %v1347, %v1381
      %v1413 = vadd.f32 %v1348, %v1382
      %v1414 = vadd.f32 %v1349, %v1383
      %v1415 = vadd.f32 %v1350, %v1384
      %v1416 = vadd.f32 %v1351, %v1385
      %v1417 = vadd.f32 %v1352, %v1386
      %v1418 = vadd.f32 %v1353, %v1387
      %v1419 = vadd.f32 %v1354, %v1388
      %v1420 = vadd.f32 %v1355, %v1389
      %v1421 = vadd.f32 %v1356, %v1390
      %v1422 = vadd.f32 %v1357, %v1391
      %v1423 = vadd.f32 %v1358, %v1392
      %v1424 = vadd.f32 %v1359, %v1393
      %v1425 = vadd.f32 %v1360, %v1393
      %vm1426 = vcmask 130048
      %1427 = vst.msk [vmem:[%s289] sm:$0xff] %vm1426, %v1394
      %1428 = vst.msk [vmem:[%s289 + $0x8] sm:$0xff] %vm1426, %v1395
      %1429 = vst.msk [vmem:[%s289 + $0x10] sm:$0xff] %vm1426, %v1396
      %1430 = vst.msk [vmem:[%s289 + $0x18] sm:$0xff] %vm1426, %v1397
      %1431 = vst.msk [vmem:[%s289 + $0x20] sm:$0xff] %vm1426, %v1398
      %1432 = vst.msk [vmem:[%s289 + $0x28] sm:$0xff] %vm1426, %v1399
      %1433 = vst.msk [vmem:[%s289 + $0x30] sm:$0xff] %vm1426, %v1400
      %1434 = vst.msk [vmem:[%s289 + $0x38] sm:$0xff] %vm1426, %v1401
      %1435 = vst.msk [vmem:[%s289 + $0x40] sm:$0xff] %vm1426, %v1402
      %1436 = vst.msk [vmem:[%s289 + $0x48] sm:$0xff] %vm1426, %v1403
      %1437 = vst.msk [vmem:[%s289 + $0x50] sm:$0xff] %vm1426, %v1404
      %1438 = vst.msk [vmem:[%s289 + $0x58] sm:$0xff] %vm1426, %v1405
      %1439 = vst.msk [vmem:[%s289 + $0x60] sm:$0xff] %vm1426, %v1406
      %1440 = vst.msk [vmem:[%s289 + $0x68] sm:$0xff] %vm1426, %v1407
      %1441 = vst.msk [vmem:[%s289 + $0x70] sm:$0xff] %vm1426, %v1408
      %1442 = vst.msk [vmem:[%s289 + $0x78] sm:$0xff] %vm1426, %v1409
      %1443 = vst.msk [vmem:[%s289 + $0x80] sm:$0xff] %vm1426, %v1410
      %1444 = vst.msk [vmem:[%s289 + $0x88] sm:$0xff] %vm1426, %v1411
      %1445 = vst.msk [vmem:[%s289 + $0x90] sm:$0xff] %vm1426, %v1412
      %1446 = vst.msk [vmem:[%s289 + $0x98] sm:$0xff] %vm1426, %v1413
      %1447 = vst.msk [vmem:[%s289 + $0xa0] sm:$0xff] %vm1426, %v1414
      %1448 = vst.msk [vmem:[%s289 + $0xa8] sm:$0xff] %vm1426, %v1415
      %1449 = vst.msk [vmem:[%s289 + $0xb0] sm:$0xff] %vm1426, %v1416
      %1450 = vst.msk [vmem:[%s289 + $0xb8] sm:$0xff] %vm1426, %v1417
      %1451 = vst.msk [vmem:[%s289 + $0xc0] sm:$0xff] %vm1426, %v1418
      %1452 = vst.msk [vmem:[%s289 + $0xc8] sm:$0xff] %vm1426, %v1419
      %1453 = vst.msk [vmem:[%s289 + $0xd0] sm:$0xff] %vm1426, %v1420
      %1454 = vst.msk [vmem:[%s289 + $0xd8] sm:$0xff] %vm1426, %v1421
      %1455 = vst.msk [vmem:[%s289 + $0xe0] sm:$0xff] %vm1426, %v1422
      %1456 = vst.msk [vmem:[%s289 + $0xe8] sm:$0xff] %vm1426, %v1423
      %1457 = vst.msk [vmem:[%s289 + $0xf0] sm:$0xff] %vm1426, %v1424
      %1458 = vst.msk [vmem:[%s289 + $0xf8] sm:$0xff] %vm1426, %v1425
      %v1459 = vsel %vm1426, %v1394, 0.0
      %v1460 = vsel %vm1426, %v1395, 0.0
      %v1461 = vadd.f32 %v1459, %v1460
      %v1462 = vsel %vm1426, %v1396, 0.0
      %v1463 = vadd.f32 %v1461, %v1462
      %v1464 = vsel %vm1426, %v1397, 0.0
      %v1465 = vadd.f32 %v1463, %v1464
      %v1466 = vsel %vm1426, %v1398, 0.0
      %v1467 = vadd.f32 %v1465, %v1466
      %v1468 = vsel %vm1426, %v1399, 0.0
      %v1469 = vadd.f32 %v1467, %v1468
      %v1470 = vsel %vm1426, %v1400, 0.0
      %v1471 = vadd.f32 %v1469, %v1470
      %v1472 = vsel %vm1426, %v1401, 0.0
      %v1473 = vadd.f32 %v1471, %v1472
      %v1474 = vsel %vm1426, %v1402, 0.0
      %v1475 = vadd.f32 %v1473, %v1474
      %v1476 = vsel %vm1426, %v1403, 0.0
      %v1477 = vadd.f32 %v1475, %v1476
      %v1478 = vsel %vm1426, %v1404, 0.0
      %v1479 = vadd.f32 %v1477, %v1478
      %v1480 = vsel %vm1426, %v1405, 0.0
      %v1481 = vadd.f32 %v1479, %v1480
      %v1482 = vsel %vm1426, %v1406, 0.0
      %v1483 = vadd.f32 %v1481, %v1482
      %v1484 = vsel %vm1426, %v1407, 0.0
      %v1485 = vadd.f32 %v1483, %v1484
      %v1486 = vsel %vm1426, %v1408, 0.0
      %v1487 = vadd.f32 %v1485, %v1486
      %v1488 = vsel %vm1426, %v1409, 0.0
      %v1489 = vadd.f32 %v1487, %v1488
      %v1490 = vsel %vm1426, %v1410, 0.0
      %v1491 = vadd.f32 %v1489, %v1490
      %v1492 = vsel %vm1426, %v1411, 0.0
      %v1493 = vadd.f32 %v1491, %v1492
      %v1494 = vsel %vm1426, %v1412, 0.0
      %v1495 = vadd.f32 %v1493, %v1494
      %v1496 = vsel %vm1426, %v1413, 0.0
      %v1497 = vadd.f32 %v1495, %v1496
      %v1498 = vsel %vm1426, %v1414, 0.0
      %v1499 = vadd.f32 %v1497, %v1498
      %v1500 = vsel %vm1426, %v1415, 0.0
      %v1501 = vadd.f32 %v1499, %v1500
      %v1502 = vsel %vm1426, %v1416, 0.0
      %v1503 = vadd.f32 %v1501, %v1502
      %v1504 = vsel %vm1426, %v1417, 0.0
      %v1505 = vadd.f32 %v1503, %v1504
      %v1506 = vsel %vm1426, %v1418, 0.0
      %v1507 = vadd.f32 %v1505, %v1506
      %v1508 = vsel %vm1426, %v1419, 0.0
      %v1509 = vadd.f32 %v1507, %v1508
      %v1510 = vsel %vm1426, %v1420, 0.0
      %v1511 = vadd.f32 %v1509, %v1510
      %v1512 = vsel %vm1426, %v1421, 0.0
      %v1513 = vadd.f32 %v1511, %v1512
      %v1514 = vsel %vm1426, %v1422, 0.0
      %v1515 = vadd.f32 %v1513, %v1514
      %v1516 = vsel %vm1426, %v1423, 0.0
      %v1517 = vadd.f32 %v1515, %v1516
      %v1518 = vsel %vm1426, %v1424, 0.0
      %v1519 = vadd.f32 %v1517, %v1518
      %v1520 = vsel %vm1426, %v1425, 0.0
      %v1521 = vadd.f32 %v1519, %v1520
      %v1522 = vrot.slane %v1521, 4
      %v1523 = vadd.f32 %v1521, %v1522
      %v1524 = vrot.slane %v1523, 2
      %v1525 = vadd.f32 %v1523, %v1524
      %v1526 = vrot.slane %v1525, 1
      %v1527 = vadd.f32 %v1525, %v1526
      %vm1528 = vcmask 122880
      %1529 = vst.msk [vmem:[%s292] sm:$0x1] %vm1528, %v1527
      %v1530 = vmul.f32 %v1394, %v1394
      %v1531 = vmul.f32 %v1395, %v1395
      %v1532 = vmul.f32 %v1396, %v1396
      %v1533 = vmul.f32 %v1397, %v1397
      %v1534 = vmul.f32 %v1398, %v1398
      %v1535 = vmul.f32 %v1399, %v1399
      %v1536 = vmul.f32 %v1400, %v1400
      %v1537 = vmul.f32 %v1401, %v1401
      %v1538 = vmul.f32 %v1402, %v1402
      %v1539 = vmul.f32 %v1403, %v1403
      %v1540 = vmul.f32 %v1404, %v1404
      %v1541 = vmul.f32 %v1405, %v1405
      %v1542 = vmul.f32 %v1406, %v1406
      %v1543 = vmul.f32 %v1407, %v1407
      %v1544 = vmul.f32 %v1408, %v1408
      %v1545 = vmul.f32 %v1409, %v1409
      %v1546 = vmul.f32 %v1410, %v1410
      %v1547 = vmul.f32 %v1411, %v1411
      %v1548 = vmul.f32 %v1412, %v1412
      %v1549 = vmul.f32 %v1413, %v1413
      %v1550 = vmul.f32 %v1414, %v1414
      %v1551 = vmul.f32 %v1415, %v1415
      %v1552 = vmul.f32 %v1416, %v1416
      %v1553 = vmul.f32 %v1417, %v1417
      %v1554 = vmul.f32 %v1418, %v1418
      %v1555 = vmul.f32 %v1419, %v1419
      %v1556 = vmul.f32 %v1420, %v1420
      %v1557 = vmul.f32 %v1421, %v1421
      %v1558 = vmul.f32 %v1422, %v1422
      %v1559 = vmul.f32 %v1423, %v1423
      %v1560 = vmul.f32 %v1424, %v1424
      %v1561 = vmul.f32 %v1425, %v1425
      %v1562 = vsel %vm1426, %v1530, 0.0
      %v1563 = vsel %vm1426, %v1531, 0.0
      %v1564 = vadd.f32 %v1562, %v1563
      %v1565 = vsel %vm1426, %v1532, 0.0
      %v1566 = vadd.f32 %v1564, %v1565
      %v1567 = vsel %vm1426, %v1533, 0.0
      %v1568 = vadd.f32 %v1566, %v1567
      %v1569 = vsel %vm1426, %v1534, 0.0
      %v1570 = vadd.f32 %v1568, %v1569
      %v1571 = vsel %vm1426, %v1535, 0.0
      %v1572 = vadd.f32 %v1570, %v1571
      %v1573 = vsel %vm1426, %v1536, 0.0
      %v1574 = vadd.f32 %v1572, %v1573
      %v1575 = vsel %vm1426, %v1537, 0.0
      %v1576 = vadd.f32 %v1574, %v1575
      %v1577 = vsel %vm1426, %v1538, 0.0
      %v1578 = vadd.f32 %v1576, %v1577
      %v1579 = vsel %vm1426, %v1539, 0.0
      %v1580 = vadd.f32 %v1578, %v1579
      %v1581 = vsel %vm1426, %v1540, 0.0
      %v1582 = vadd.f32 %v1580, %v1581
      %v1583 = vsel %vm1426, %v1541, 0.0
      %v1584 = vadd.f32 %v1582, %v1583
      %v1585 = vsel %vm1426, %v1542, 0.0
      %v1586 = vadd.f32 %v1584, %v1585
      %v1587 = vsel %vm1426, %v1543, 0.0
      %v1588 = vadd.f32 %v1586, %v1587
      %v1589 = vsel %vm1426, %v1544, 0.0
      %v1590 = vadd.f32 %v1588, %v1589
      %v1591 = vsel %vm1426, %v1545, 0.0
      %v1592 = vadd.f32 %v1590, %v1591
      %v1593 = vsel %vm1426, %v1546, 0.0
      %v1594 = vadd.f32 %v1592, %v1593
      %v1595 = vsel %vm1426, %v1547, 0.0
      %v1596 = vadd.f32 %v1594, %v1595
      %v1597 = vsel %vm1426, %v1548, 0.0
      %v1598 = vadd.f32 %v1596, %v1597
      %v1599 = vsel %vm1426, %v1549, 0.0
      %v1600 = vadd.f32 %v1598, %v1599
      %v1601 = vsel %vm1426, %v1550, 0.0
      %v1602 = vadd.f32 %v1600, %v1601
      %v1603 = vsel %vm1426, %v1551, 0.0
      %v1604 = vadd.f32 %v1602, %v1603
      %v1605 = vsel %vm1426, %v1552, 0.0
      %v1606 = vadd.f32 %v1604, %v1605
      %v1607 = vsel %vm1426, %v1553, 0.0
      %v1608 = vadd.f32 %v1606, %v1607
      %v1609 = vsel %vm1426, %v1554, 0.0
      %v1610 = vadd.f32 %v1608, %v1609
      %v1611 = vsel %vm1426, %v1555, 0.0
      %v1612 = vadd.f32 %v1610, %v1611
      %v1613 = vsel %vm1426, %v1556, 0.0
      %v1614 = vadd.f32 %v1612, %v1613
      %v1615 = vsel %vm1426, %v1557, 0.0
      %v1616 = vadd.f32 %v1614, %v1615
      %v1617 = vsel %vm1426, %v1558, 0.0
      %v1618 = vadd.f32 %v1616, %v1617
      %v1619 = vsel %vm1426, %v1559, 0.0
      %v1620 = vadd.f32 %v1618, %v1619
      %v1621 = vsel %vm1426, %v1560, 0.0
      %v1622 = vadd.f32 %v1620, %v1621
      %v1623 = vsel %vm1426, %v1561, 0.0
      %v1624 = vadd.f32 %v1622, %v1623
      %v1625 = vrot.slane %v1624, 4
      %v1626 = vadd.f32 %v1624, %v1625
      %v1627 = vrot.slane %v1626, 2
      %v1628 = vadd.f32 %v1626, %v1627
      %v1629 = vrot.slane %v1628, 1
      %v1630 = vadd.f32 %v1628, %v1629
      %1631 = vst.msk [vmem:[%s295] sm:$0x1] %vm1528, %v1630
      %p1632 = scmp.lt.s32.totalorder %s19, 1
      %s1633 = scalar_select %p1632, %s19, 1
      %s1634 = smul.addr %s1633, 32
      %s1635 = smul.addr %s1634, 8
      %s1636 = scalar_lea.vmem %s5, %s1635
      %p1637 = scmp.lt.s32.totalorder %s19, 1
      %s1638 = scalar_select %p1637, %s19, 1
      %s1639 = scalar_lea.vmem %s6, %s1638
      %p1640 = scmp.lt.s32.totalorder %s19, 1
      %s1641 = scalar_select %p1640, %s19, 1
      %s1642 = scalar_lea.vmem %s7, %s1641
      // Predicated region
      $region41: #{mobilenetv2_forward.4} parent=39 // pred_check
        %p1643 = pneg %p147
      $region42: #{mobilenetv2_forward.4} parent=39 // pred_check_branch
        %1645 = sbr.rel (%p1643) target = $region44
      $region43: #{mobilenetv2_forward.4} parent=39 // pred_region
        _
      $region44: #{mobilenetv2_forward.4} parent=39 // pred_fallthru
        _
      // Predicated region
      $region45: #{mobilenetv2_forward.4} parent=39 // pred_check
        %p1646 = pneg %p173
      $region46: #{mobilenetv2_forward.4} parent=39 // pred_check_branch
        %1648 = sbr.rel (%p1646) target = $region48
      $region47: #{mobilenetv2_forward.4} parent=39 // pred_region
        _
      $region48: #{mobilenetv2_forward.4} parent=39 // pred_fallthru
        _
      // Predicated region
      $region49: #{mobilenetv2_forward.4} parent=39 // pred_check
        %p1649 = pneg %p199
      $region50: #{mobilenetv2_forward.4} parent=39 // pred_check_branch
        %1651 = sbr.rel (%p1649) target = $region52
      $region51: #{mobilenetv2_forward.4} parent=39 // pred_region
        _
      $region52: #{mobilenetv2_forward.4} parent=39 // pred_fallthru
        _
    $region40: #{mobilenetv2_forward.4} parent=5 // pred_fallthru
      _
    %p1652 = scmp.le.s32.totalorder 2, %s14
    // Predicated region
    $region53: #{mobilenetv2_forward.4} parent=5 // pred_check
      %p1653 = pneg %p1652
    $region54: #{mobilenetv2_forward.4} parent=5 // pred_check_branch
      %1655 = sbr.rel (%p1653) target = $region56
    $region55: #{mobilenetv2_forward.4} parent=5 // pred_region
      %s1656 = ssub.s32 %s14, 2
      // Predicated region
      $region57: #{mobilenetv2_forward.4} parent=55 // pred_check
        %p1657 = pneg %p153
      $region58: #{mobilenetv2_forward.4} parent=55 // pred_check_branch
        %1659 = sbr.rel (%p1657) target = $region60
      $region59: #{mobilenetv2_forward.4} parent=55 // pred_region
        %p1660 = scmp.lt.s32.totalorder %s20, 1
        %s1661 = scalar_select %p1660, %s20, 1
        %s1662 = smul.addr %s1661, 32
        %s1663 = smul.addr %s1662, 8
        %s1664 = scalar_lea.vmem %s5, %s1663
      $region60: #{mobilenetv2_forward.4} parent=55 // pred_fallthru
        _
      // Predicated region
      $region61: #{mobilenetv2_forward.4} parent=55 // pred_check
        %p1665 = pneg %p179
      $region62: #{mobilenetv2_forward.4} parent=55 // pred_check_branch
        %1667 = sbr.rel (%p1665) target = $region64
      $region63: #{mobilenetv2_forward.4} parent=55 // pred_region
        %p1668 = scmp.lt.s32.totalorder %s20, 1
        %s1669 = scalar_select %p1668, %s20, 1
        %s1670 = scalar_lea.vmem %s6, %s1669
      $region64: #{mobilenetv2_forward.4} parent=55 // pred_fallthru
        _
      // Predicated region
      $region65: #{mobilenetv2_forward.4} parent=55 // pred_check
        %p1671 = pneg %p205
      $region66: #{mobilenetv2_forward.4} parent=55 // pred_check_branch
        %1673 = sbr.rel (%p1671) target = $region68
      $region67: #{mobilenetv2_forward.4} parent=55 // pred_region
        %p1674 = scmp.lt.s32.totalorder %s20, 1
        %s1675 = scalar_select %p1674, %s20, 1
        %s1676 = scalar_lea.vmem %s7, %s1675
      $region68: #{mobilenetv2_forward.4} parent=55 // pred_fallthru
        _
    $region56: #{mobilenetv2_forward.4} parent=5 // pred_fallthru
      _
  $region6: #{mobilenetv2_forward.4} parent=0 // loop_footer
    %s18 = sadd.s32 1, %s14
  $region7: #{mobilenetv2_forward.4} parent=0 // loop_footer_branch
    %13 = sbr.rel target = $region3
  $region8: #{mobilenetv2_forward.4} parent=0 // loop_exit
    _

</llo_original>
